<compile_context>
chip_gen: v6e
topology: v6e:2x2x1
jax: 0.10.0
libtpu: 0.0.40
codegen_flags: <defaults>
</compile_context>

<pallas_src>
import numpy as np
import jax
import jax.numpy as jnp
from jax.experimental import pallas as pl
from jax.experimental.pallas import tpu as pltpu


# ------------------------------ Pallas kernel ------------------------------ #

def _fused_disc_kernel(x_ref,
                       g1_ref, w1_ref, b1_ref,
                       g2_ref, w2_ref, b2_ref,
                       g3_ref, w3_ref, b3_ref,
                       wc_ref, bc_ref,
                       o_ref):
    """One image per grid step; everything VMEM-resident.

    x_ref : (H*W, Cin)          bf16  flattened NHWC input rows of this image
    g*_ref: (9, Ho*Wo, Hi*Wi)   bf16  constant 0/1 im2col gather matrices
    w*_ref: (9, Cin_l, Cout_l)  bf16  conv weights, one (Cin,Cout) slab per tap
    b*_ref: (1, Cout_l)         f32   conv biases
    wc_ref: (Cout3, 1)          bf16  1x1 classifier weight
    bc_ref: (1, 1)              f32   classifier bias
    o_ref : (1, Ho3*Wo3, 1)     f32   classifier logits for this image
    """

    def conv3x3_s2(x, g_ref, w_ref, b_ref):
        m_out = g_ref.shape[1]
        c_out = w_ref.shape[2]
        acc = jnp.zeros((m_out, c_out), jnp.float32)
        for tap in range(9):  # static unroll: 9 pairs of tiny MXU dots
            # gather the tap's input rows (0/1 matmul == im2col selection)
            rows = jnp.dot(g_ref[tap], x, preferred_element_type=jnp.float32)
            acc = acc + jnp.dot(rows.astype(jnp.bfloat16), w_ref[tap],
                                preferred_element_type=jnp.float32)
        return acc + b_ref[...]

    x = x_ref[...]                                                  # (HW, Cin) bf16
    y = conv3x3_s2(x, g1_ref, w1_ref, b1_ref)
    y = jnp.maximum(y, 0.0).astype(jnp.bfloat16)                    # ReLU
    y = conv3x3_s2(y, g2_ref, w2_ref, b2_ref)
    y = jnp.maximum(y, 0.0).astype(jnp.bfloat16)                    # ReLU
    y = conv3x3_s2(y, g3_ref, w3_ref, b3_ref)
    y = jnp.where(y > 0.0, y, 0.2 * y).astype(jnp.bfloat16)         # LeakyReLU(0.2)
    # fused 1x1 classifier epilogue
    out = jnp.dot(y, wc_ref[...], preferred_element_type=jnp.float32) + bc_ref[...]
    o_ref[0] = out.astype(o_ref.dtype)                              # (Ho3*Wo3, 1)


# --------------------------- constant preparation --------------------------- #

def _conv_out(d):
    return (d + 2 - 3) // 2 + 1          # 3x3, stride 2, pad 1


def _gather_mats_single_image(h, w):
    """(9, Ho*Wo, H*W) 0/1 matrices: row gather for tap (ky,kx) of a 3x3/s2/p1
    conv; out-of-bounds (padding) taps are all-zero rows."""
    ho, wo = _conv_out(h), _conv_out(w)
    g = np.zeros((9, ho * wo, h * w), np.float32)
    for tap in range(9):
        ky, kx = tap // 3, tap % 3
        for oy in range(ho):
            iy = 2 * oy + ky - 1
            if not (0 <= iy < h):
                continue
            for ox in range(wo):
                ix = 2 * ox + kx - 1
                if not (0 <= ix < w):
                    continue
                g[tap, oy * wo + ox, iy * w + ix] = 1.0
    return g, ho, wo


def _w_to_taps(w):
    """(Cout, Cin, 3, 3) -> (9, Cin, Cout), tap index = ky*3 + kx."""
    cout, cin = w.shape[0], w.shape[1]
    return jnp.transpose(w, (2, 3, 1, 0)).reshape(9, cin, cout)


def init_params(key, inplanes, planes=64):
    """Deterministic synthetic params matching FCDiscriminator_low.__init__ (OIHW)."""
    shapes = {
        "conv1": ((planes, inplanes, 3, 3), (planes,)),
        "conv2": ((planes * 2, planes, 3, 3), (planes * 2,)),
        "conv3": ((planes * 4, planes * 2, 3, 3), (planes * 4,)),
        "classifier": ((1, planes * 4, 1, 1), (1,)),
    }
    params = {}
    for name, (ws, bs) in shapes.items():
        key, kw, kb = jax.random.split(key, 3)
        fan_in = ws[1] * ws[2] * ws[3]
        scale = float(1.0 / np.sqrt(fan_in))
        params[name] = (
            jax.random.uniform(kw, ws, jnp.float32, -scale, scale),
            jax.random.uniform(kb, bs, jnp.float32, -scale, scale),
        )
    return params


def prepare_discriminator(params, input_hw):
    """Precompute all kernel-side constants ONCE: bf16 per-tap weight slabs,
    f32 (1, Cout) biases, bf16 per-layer gather matrices, classifier matrices."""
    h_in, w_in = input_hw
    consts = {"in_hw": (h_in, w_in)}
    hh, ww = h_in, w_in
    for i in range(1, 4):
        g, ho, wo = _gather_mats_single_image(hh, ww)
        wt, bt = params[f"conv{i}"]
        consts[f"g{i}"] = jnp.asarray(g, jnp.bfloat16)          # 0/1 -> exact in bf16
        consts[f"w{i}"] = _w_to_taps(wt).astype(jnp.bfloat16)
        consts[f"b{i}"] = bt.reshape(1, -1).astype(jnp.float32)
        hh, ww = ho, wo
    wc, bc = params["classifier"]
    consts["wc"] = wc.reshape(wc.shape[0], wc.shape[1]).T.astype(jnp.bfloat16)  # (C,1)
    consts["bc"] = bc.reshape(1, 1).astype(jnp.float32)
    consts["out_hw"] = (hh, ww)
    return consts


# --------------------------------- forward ---------------------------------- #

def fc_discriminator_low_forward(x_nchw, consts):
    """Forward pass equivalent to FCDiscriminator_low.forward. x: (N, Cin, H, W) f32."""
    n, cin, h, w = x_nchw.shape
    assert (h, w) == consts["in_hw"]
    ho3, wo3 = consts["out_hw"]

    # NCHW -> NHWC -> (N*H*W, Cin) rows, bf16 (halves input DMA, MXU-native)
    x_rows = jnp.transpose(x_nchw, (0, 2, 3, 1)).reshape(n * h * w, cin)
    x_rows = x_rows.astype(jnp.bfloat16)

    operands = [consts[k] for k in
                ("g1", "w1", "b1", "g2", "w2", "b2", "g3", "w3", "b3", "wc", "bc")]

    def resident(a):  # full-array block, same for every grid step (stays in VMEM)
        return pl.BlockSpec(a.shape, lambda i, nd=a.ndim: (0,) * nd)

    out = pl.pallas_call(
        _fused_disc_kernel,
        out_shape=jax.ShapeDtypeStruct((n, ho3 * wo3, 1), jnp.float32),
        grid=(n,),  # one image per grid step
        in_specs=[pl.BlockSpec((h * w, cin), lambda i: (i, 0))]
                 + [resident(a) for a in operands],
        out_specs=pl.BlockSpec((1, ho3 * wo3, 1), lambda i: (i, 0, 0)),
        compiler_params=pltpu.CompilerParams(
            dimension_semantics=("parallel",)),       # 2x on v7x dual-TC, free elsewhere
    )(x_rows, *operands)

    # (N, Ho3*Wo3, 1) -> (N, 1, Ho3, Wo3)   (NCHW like the PyTorch module)
    return jnp.transpose(out.reshape(n, ho3, wo3, 1), (0, 3, 1, 2))


# --------------------------- reference (pure JAX) --------------------------- #

def _conv_ref(x, w, b, stride, pad):
    y = jax.lax.conv_general_dilated(
        x, w, (stride, stride), [(pad, pad), (pad, pad)],
        dimension_numbers=("NCHW", "OIHW", "NCHW"))
    return y + b[None, :, None, None]


def fc_discriminator_low_ref(x, params):
    y = jnp.maximum(_conv_ref(x, *params["conv1"], 2, 1), 0.0)
    y = jnp.maximum(_conv_ref(y, *params["conv2"], 2, 1), 0.0)
    y = _conv_ref(y, *params["conv3"], 2, 1)
    y = jnp.where(y > 0.0, y, 0.2 * y)
    return _conv_ref(y, *params["classifier"], 1, 0)


# ----------------------------------- main ----------------------------------- #

if __name__ == "__main__":
    key = jax.random.PRNGKey(0)
    key, kx = jax.random.split(key)

    inplanes, planes = 4, 16
    batch, spatial = 2, 16
    x = jax.random.normal(kx, (batch, inplanes, spatial, spatial), jnp.float32)

    params = init_params(key, inplanes, planes)
    consts = prepare_discriminator(params, (spatial, spatial))

    fwd = jax.jit(lambda xi: fc_discriminator_low_forward(xi, consts))
    out = jax.block_until_ready(fwd(x))

    ref = jax.block_until_ready(fc_discriminator_low_ref(x, params))
    assert out.shape == (batch, 1, spatial // 8, spatial // 8), out.shape
    max_err = jnp.max(jnp.abs(out - ref))
    # bf16 matmul path -> relaxed tolerance (f32 accumulation keeps it tight)
    assert jnp.allclose(out, ref, atol=3e-2, rtol=3e-2), f"mismatch: max err {max_err}"

    print("KERNEL_OK")
</pallas_src>

<mosaic_0001>
module attributes {stable_mosaic.version = 11 : i64} {
  func.func @_fused_disc_kernel(%arg0: i32, %arg1: memref<256x4xbf16, #tpu.memory_space<vmem>>, %arg2: memref<9x64x256xbf16, #tpu.memory_space<vmem>>, %arg3: memref<9x4x16xbf16, #tpu.memory_space<vmem>>, %arg4: memref<1x16xf32, #tpu.memory_space<vmem>>, %arg5: memref<9x16x64xbf16, #tpu.memory_space<vmem>>, %arg6: memref<9x16x32xbf16, #tpu.memory_space<vmem>>, %arg7: memref<1x32xf32, #tpu.memory_space<vmem>>, %arg8: memref<9x4x16xbf16, #tpu.memory_space<vmem>>, %arg9: memref<9x32x64xbf16, #tpu.memory_space<vmem>>, %arg10: memref<1x64xf32, #tpu.memory_space<vmem>>, %arg11: memref<64x1xbf16, #tpu.memory_space<vmem>>, %arg12: memref<1x1xf32, #tpu.memory_space<vmem>>, %arg13: memref<1x4x1xf32, #tpu.memory_space<vmem>>) attributes {dimension_semantics = [#tpu.dimension_semantics<parallel>], iteration_bounds = array<i64: 2>, scalar_prefetch = 0 : i64, scratch_operands = 0 : i64, tpu.core_type = #tpu.core_type<tc>, window_params = [{transform_indices = @transform_0, window_bounds = array<i64: 256, 4>}, {pipeline_mode = #tpu.pipeline_mode<synchronous>, transform_indices = @transform_1, window_bounds = array<i64: 9, 64, 256>}, {pipeline_mode = #tpu.pipeline_mode<synchronous>, transform_indices = @transform_2, window_bounds = array<i64: 9, 4, 16>}, {pipeline_mode = #tpu.pipeline_mode<synchronous>, transform_indices = @transform_3, window_bounds = array<i64: 1, 16>}, {pipeline_mode = #tpu.pipeline_mode<synchronous>, transform_indices = @transform_4, window_bounds = array<i64: 9, 16, 64>}, {pipeline_mode = #tpu.pipeline_mode<synchronous>, transform_indices = @transform_5, window_bounds = array<i64: 9, 16, 32>}, {pipeline_mode = #tpu.pipeline_mode<synchronous>, transform_indices = @transform_6, window_bounds = array<i64: 1, 32>}, {pipeline_mode = #tpu.pipeline_mode<synchronous>, transform_indices = @transform_7, window_bounds = array<i64: 9, 4, 16>}, {pipeline_mode = #tpu.pipeline_mode<synchronous>, transform_indices = @transform_8, window_bounds = array<i64: 9, 32, 64>}, {pipeline_mode = #tpu.pipeline_mode<synchronous>, transform_indices = @transform_9, window_bounds = array<i64: 1, 64>}, {pipeline_mode = #tpu.pipeline_mode<synchronous>, transform_indices = @transform_10, window_bounds = array<i64: 64, 1>}, {pipeline_mode = #tpu.pipeline_mode<synchronous>, transform_indices = @transform_11, window_bounds = array<i64: 1, 1>}, {transform_indices = @transform_12, window_bounds = array<i64: 1, 4, 1>}]} {
    %c0 = arith.constant 0 : index
    %c0_0 = arith.constant 0 : index
    %0 = vector.load %arg1[%c0, %c0_0] : memref<256x4xbf16, #tpu.memory_space<vmem>>, vector<256x4xbf16>
    %cst = arith.constant 0.000000e+00 : f32
    %1 = vector.broadcast %cst : f32 to vector<64x16xf32>
    %c0_1 = arith.constant 0 : index
    %c0_2 = arith.constant 0 : index
    %c0_3 = arith.constant 0 : index
    %2 = vector.load %arg2[%c0_1, %c0_2, %c0_3] : memref<9x64x256xbf16, #tpu.memory_space<vmem>>, vector<1x64x256xbf16>
    %3 = vector.shape_cast %2 : vector<1x64x256xbf16> to vector<64x256xbf16>
    %cst_4 = arith.constant dense<0.000000e+00> : vector<64x4xf32>
    %4 = tpu.matmul %3, %0, %cst_4 {dimension_numbers = #tpu.dot_dimension_numbers<[1], [0], [0], [1], [0, 0, 1, 1], [], []>} : vector<64x256xbf16>, vector<256x4xbf16>, vector<64x4xf32> -> vector<64x4xf32>
    %5 = arith.truncf %4 : vector<64x4xf32> to vector<64x4xbf16>
    %c0_5 = arith.constant 0 : index
    %c0_6 = arith.constant 0 : index
    %c0_7 = arith.constant 0 : index
    %6 = vector.load %arg3[%c0_5, %c0_6, %c0_7] : memref<9x4x16xbf16, #tpu.memory_space<vmem>>, vector<1x4x16xbf16>
    %7 = vector.shape_cast %6 : vector<1x4x16xbf16> to vector<4x16xbf16>
    %cst_8 = arith.constant dense<0.000000e+00> : vector<64x16xf32>
    %8 = tpu.matmul %5, %7, %cst_8 {dimension_numbers = #tpu.dot_dimension_numbers<[1], [0], [0], [1], [0, 0, 1, 1], [], []>} : vector<64x4xbf16>, vector<4x16xbf16>, vector<64x16xf32> -> vector<64x16xf32>
    %9 = arith.addf %1, %8 : vector<64x16xf32>
    %c1 = arith.constant 1 : index
    %c0_9 = arith.constant 0 : index
    %c0_10 = arith.constant 0 : index
    %10 = vector.load %arg2[%c1, %c0_9, %c0_10] : memref<9x64x256xbf16, #tpu.memory_space<vmem>>, vector<1x64x256xbf16>
    %11 = vector.shape_cast %10 : vector<1x64x256xbf16> to vector<64x256xbf16>
    %cst_11 = arith.constant dense<0.000000e+00> : vector<64x4xf32>
    %12 = tpu.matmul %11, %0, %cst_11 {dimension_numbers = #tpu.dot_dimension_numbers<[1], [0], [0], [1], [0, 0, 1, 1], [], []>} : vector<64x256xbf16>, vector<256x4xbf16>, vector<64x4xf32> -> vector<64x4xf32>
    %13 = arith.truncf %12 : vector<64x4xf32> to vector<64x4xbf16>
    %c1_12 = arith.constant 1 : index
    %c0_13 = arith.constant 0 : index
    %c0_14 = arith.constant 0 : index
    %14 = vector.load %arg3[%c1_12, %c0_13, %c0_14] : memref<9x4x16xbf16, #tpu.memory_space<vmem>>, vector<1x4x16xbf16>
    %15 = vector.shape_cast %14 : vector<1x4x16xbf16> to vector<4x16xbf16>
    %cst_15 = arith.constant dense<0.000000e+00> : vector<64x16xf32>
    %16 = tpu.matmul %13, %15, %cst_15 {dimension_numbers = #tpu.dot_dimension_numbers<[1], [0], [0], [1], [0, 0, 1, 1], [], []>} : vector<64x4xbf16>, vector<4x16xbf16>, vector<64x16xf32> -> vector<64x16xf32>
    %17 = arith.addf %9, %16 : vector<64x16xf32>
    %c2 = arith.constant 2 : index
    %c0_16 = arith.constant 0 : index
    %c0_17 = arith.constant 0 : index
    %18 = vector.load %arg2[%c2, %c0_16, %c0_17] : memref<9x64x256xbf16, #tpu.memory_space<vmem>>, vector<1x64x256xbf16>
    %19 = vector.shape_cast %18 : vector<1x64x256xbf16> to vector<64x256xbf16>
    %cst_18 = arith.constant dense<0.000000e+00> : vector<64x4xf32>
    %20 = tpu.matmul %19, %0, %cst_18 {dimension_numbers = #tpu.dot_dimension_numbers<[1], [0], [0], [1], [0, 0, 1, 1], [], []>} : vector<64x256xbf16>, vector<256x4xbf16>, vector<64x4xf32> -> vector<64x4xf32>
    %21 = arith.truncf %20 : vector<64x4xf32> to vector<64x4xbf16>
    %c2_19 = arith.constant 2 : index
    %c0_20 = arith.constant 0 : index
    %c0_21 = arith.constant 0 : index
    %22 = vector.load %arg3[%c2_19, %c0_20, %c0_21] : memref<9x4x16xbf16, #tpu.memory_space<vmem>>, vector<1x4x16xbf16>
    %23 = vector.shape_cast %22 : vector<1x4x16xbf16> to vector<4x16xbf16>
    %cst_22 = arith.constant dense<0.000000e+00> : vector<64x16xf32>
    %24 = tpu.matmul %21, %23, %cst_22 {dimension_numbers = #tpu.dot_dimension_numbers<[1], [0], [0], [1], [0, 0, 1, 1], [], []>} : vector<64x4xbf16>, vector<4x16xbf16>, vector<64x16xf32> -> vector<64x16xf32>
    %25 = arith.addf %17, %24 : vector<64x16xf32>
    %c3 = arith.constant 3 : index
    %c0_23 = arith.constant 0 : index
    %c0_24 = arith.constant 0 : index
    %26 = vector.load %arg2[%c3, %c0_23, %c0_24] : memref<9x64x256xbf16, #tpu.memory_space<vmem>>, vector<1x64x256xbf16>
    %27 = vector.shape_cast %26 : vector<1x64x256xbf16> to vector<64x256xbf16>
    %cst_25 = arith.constant dense<0.000000e+00> : vector<64x4xf32>
    %28 = tpu.matmul %27, %0, %cst_25 {dimension_numbers = #tpu.dot_dimension_numbers<[1], [0], [0], [1], [0, 0, 1, 1], [], []>} : vector<64x256xbf16>, vector<256x4xbf16>, vector<64x4xf32> -> vector<64x4xf32>
    %29 = arith.truncf %28 : vector<64x4xf32> to vector<64x4xbf16>
    %c3_26 = arith.constant 3 : index
    %c0_27 = arith.constant 0 : index
    %c0_28 = arith.constant 0 : index
    %30 = vector.load %arg3[%c3_26, %c0_27, %c0_28] : memref<9x4x16xbf16, #tpu.memory_space<vmem>>, vector<1x4x16xbf16>
    %31 = vector.shape_cast %30 : vector<1x4x16xbf16> to vector<4x16xbf16>
    %cst_29 = arith.constant dense<0.000000e+00> : vector<64x16xf32>
    %32 = tpu.matmul %29, %31, %cst_29 {dimension_numbers = #tpu.dot_dimension_numbers<[1], [0], [0], [1], [0, 0, 1, 1], [], []>} : vector<64x4xbf16>, vector<4x16xbf16>, vector<64x16xf32> -> vector<64x16xf32>
    %33 = arith.addf %25, %32 : vector<64x16xf32>
    %c4 = arith.constant 4 : index
    %c0_30 = arith.constant 0 : index
    %c0_31 = arith.constant 0 : index
    %34 = vector.load %arg2[%c4, %c0_30, %c0_31] : memref<9x64x256xbf16, #tpu.memory_space<vmem>>, vector<1x64x256xbf16>
    %35 = vector.shape_cast %34 : vector<1x64x256xbf16> to vector<64x256xbf16>
    %cst_32 = arith.constant dense<0.000000e+00> : vector<64x4xf32>
    %36 = tpu.matmul %35, %0, %cst_32 {dimension_numbers = #tpu.dot_dimension_numbers<[1], [0], [0], [1], [0, 0, 1, 1], [], []>} : vector<64x256xbf16>, vector<256x4xbf16>, vector<64x4xf32> -> vector<64x4xf32>
    %37 = arith.truncf %36 : vector<64x4xf32> to vector<64x4xbf16>
    %c4_33 = arith.constant 4 : index
    %c0_34 = arith.constant 0 : index
    %c0_35 = arith.constant 0 : index
    %38 = vector.load %arg3[%c4_33, %c0_34, %c0_35] : memref<9x4x16xbf16, #tpu.memory_space<vmem>>, vector<1x4x16xbf16>
    %39 = vector.shape_cast %38 : vector<1x4x16xbf16> to vector<4x16xbf16>
    %cst_36 = arith.constant dense<0.000000e+00> : vector<64x16xf32>
    %40 = tpu.matmul %37, %39, %cst_36 {dimension_numbers = #tpu.dot_dimension_numbers<[1], [0], [0], [1], [0, 0, 1, 1], [], []>} : vector<64x4xbf16>, vector<4x16xbf16>, vector<64x16xf32> -> vector<64x16xf32>
    %41 = arith.addf %33, %40 : vector<64x16xf32>
    %c5 = arith.constant 5 : index
    %c0_37 = arith.constant 0 : index
    %c0_38 = arith.constant 0 : index
    %42 = vector.load %arg2[%c5, %c0_37, %c0_38] : memref<9x64x256xbf16, #tpu.memory_space<vmem>>, vector<1x64x256xbf16>
    %43 = vector.shape_cast %42 : vector<1x64x256xbf16> to vector<64x256xbf16>
    %cst_39 = arith.constant dense<0.000000e+00> : vector<64x4xf32>
    %44 = tpu.matmul %43, %0, %cst_39 {dimension_numbers = #tpu.dot_dimension_numbers<[1], [0], [0], [1], [0, 0, 1, 1], [], []>} : vector<64x256xbf16>, vector<256x4xbf16>, vector<64x4xf32> -> vector<64x4xf32>
    %45 = arith.truncf %44 : vector<64x4xf32> to vector<64x4xbf16>
    %c5_40 = arith.constant 5 : index
    %c0_41 = arith.constant 0 : index
    %c0_42 = arith.constant 0 : index
    %46 = vector.load %arg3[%c5_40, %c0_41, %c0_42] : memref<9x4x16xbf16, #tpu.memory_space<vmem>>, vector<1x4x16xbf16>
    %47 = vector.shape_cast %46 : vector<1x4x16xbf16> to vector<4x16xbf16>
    %cst_43 = arith.constant dense<0.000000e+00> : vector<64x16xf32>
    %48 = tpu.matmul %45, %47, %cst_43 {dimension_numbers = #tpu.dot_dimension_numbers<[1], [0], [0], [1], [0, 0, 1, 1], [], []>} : vector<64x4xbf16>, vector<4x16xbf16>, vector<64x16xf32> -> vector<64x16xf32>
    %49 = arith.addf %41, %48 : vector<64x16xf32>
    %c6 = arith.constant 6 : index
    %c0_44 = arith.constant 0 : index
    %c0_45 = arith.constant 0 : index
    %50 = vector.load %arg2[%c6, %c0_44, %c0_45] : memref<9x64x256xbf16, #tpu.memory_space<vmem>>, vector<1x64x256xbf16>
    %51 = vector.shape_cast %50 : vector<1x64x256xbf16> to vector<64x256xbf16>
    %cst_46 = arith.constant dense<0.000000e+00> : vector<64x4xf32>
    %52 = tpu.matmul %51, %0, %cst_46 {dimension_numbers = #tpu.dot_dimension_numbers<[1], [0], [0], [1], [0, 0, 1, 1], [], []>} : vector<64x256xbf16>, vector<256x4xbf16>, vector<64x4xf32> -> vector<64x4xf32>
    %53 = arith.truncf %52 : vector<64x4xf32> to vector<64x4xbf16>
    %c6_47 = arith.constant 6 : index
    %c0_48 = arith.constant 0 : index
    %c0_49 = arith.constant 0 : index
    %54 = vector.load %arg3[%c6_47, %c0_48, %c0_49] : memref<9x4x16xbf16, #tpu.memory_space<vmem>>, vector<1x4x16xbf16>
    %55 = vector.shape_cast %54 : vector<1x4x16xbf16> to vector<4x16xbf16>
    %cst_50 = arith.constant dense<0.000000e+00> : vector<64x16xf32>
    %56 = tpu.matmul %53, %55, %cst_50 {dimension_numbers = #tpu.dot_dimension_numbers<[1], [0], [0], [1], [0, 0, 1, 1], [], []>} : vector<64x4xbf16>, vector<4x16xbf16>, vector<64x16xf32> -> vector<64x16xf32>
    %57 = arith.addf %49, %56 : vector<64x16xf32>
    %c7 = arith.constant 7 : index
    %c0_51 = arith.constant 0 : index
    %c0_52 = arith.constant 0 : index
    %58 = vector.load %arg2[%c7, %c0_51, %c0_52] : memref<9x64x256xbf16, #tpu.memory_space<vmem>>, vector<1x64x256xbf16>
    %59 = vector.shape_cast %58 : vector<1x64x256xbf16> to vector<64x256xbf16>
    %cst_53 = arith.constant dense<0.000000e+00> : vector<64x4xf32>
    %60 = tpu.matmul %59, %0, %cst_53 {dimension_numbers = #tpu.dot_dimension_numbers<[1], [0], [0], [1], [0, 0, 1, 1], [], []>} : vector<64x256xbf16>, vector<256x4xbf16>, vector<64x4xf32> -> vector<64x4xf32>
    %61 = arith.truncf %60 : vector<64x4xf32> to vector<64x4xbf16>
    %c7_54 = arith.constant 7 : index
    %c0_55 = arith.constant 0 : index
    %c0_56 = arith.constant 0 : index
    %62 = vector.load %arg3[%c7_54, %c0_55, %c0_56] : memref<9x4x16xbf16, #tpu.memory_space<vmem>>, vector<1x4x16xbf16>
    %63 = vector.shape_cast %62 : vector<1x4x16xbf16> to vector<4x16xbf16>
    %cst_57 = arith.constant dense<0.000000e+00> : vector<64x16xf32>
    %64 = tpu.matmul %61, %63, %cst_57 {dimension_numbers = #tpu.dot_dimension_numbers<[1], [0], [0], [1], [0, 0, 1, 1], [], []>} : vector<64x4xbf16>, vector<4x16xbf16>, vector<64x16xf32> -> vector<64x16xf32>
    %65 = arith.addf %57, %64 : vector<64x16xf32>
    %c8 = arith.constant 8 : index
    %c0_58 = arith.constant 0 : index
    %c0_59 = arith.constant 0 : index
    %66 = vector.load %arg2[%c8, %c0_58, %c0_59] : memref<9x64x256xbf16, #tpu.memory_space<vmem>>, vector<1x64x256xbf16>
    %67 = vector.shape_cast %66 : vector<1x64x256xbf16> to vector<64x256xbf16>
    %cst_60 = arith.constant dense<0.000000e+00> : vector<64x4xf32>
    %68 = tpu.matmul %67, %0, %cst_60 {dimension_numbers = #tpu.dot_dimension_numbers<[1], [0], [0], [1], [0, 0, 1, 1], [], []>} : vector<64x256xbf16>, vector<256x4xbf16>, vector<64x4xf32> -> vector<64x4xf32>
    %69 = arith.truncf %68 : vector<64x4xf32> to vector<64x4xbf16>
    %c8_61 = arith.constant 8 : index
    %c0_62 = arith.constant 0 : index
    %c0_63 = arith.constant 0 : index
    %70 = vector.load %arg3[%c8_61, %c0_62, %c0_63] : memref<9x4x16xbf16, #tpu.memory_space<vmem>>, vector<1x4x16xbf16>
    %71 = vector.shape_cast %70 : vector<1x4x16xbf16> to vector<4x16xbf16>
    %cst_64 = arith.constant dense<0.000000e+00> : vector<64x16xf32>
    %72 = tpu.matmul %69, %71, %cst_64 {dimension_numbers = #tpu.dot_dimension_numbers<[1], [0], [0], [1], [0, 0, 1, 1], [], []>} : vector<64x4xbf16>, vector<4x16xbf16>, vector<64x16xf32> -> vector<64x16xf32>
    %73 = arith.addf %65, %72 : vector<64x16xf32>
    %c0_65 = arith.constant 0 : index
    %c0_66 = arith.constant 0 : index
    %74 = vector.load %arg4[%c0_65, %c0_66] : memref<1x16xf32, #tpu.memory_space<vmem>>, vector<1x16xf32>
    %75 = vector.broadcast %74 : vector<1x16xf32> to vector<64x16xf32>
    %76 = arith.addf %73, %75 : vector<64x16xf32>
    %cst_67 = arith.constant 0.000000e+00 : f32
    %77 = vector.broadcast %cst_67 : f32 to vector<64x16xf32>
    %78 = arith.maximumf %76, %77 : vector<64x16xf32>
    %79 = arith.truncf %78 : vector<64x16xf32> to vector<64x16xbf16>
    %cst_68 = arith.constant 0.000000e+00 : f32
    %80 = vector.broadcast %cst_68 : f32 to vector<16x32xf32>
    %c0_69 = arith.constant 0 : index
    %c0_70 = arith.constant 0 : index
    %c0_71 = arith.constant 0 : index
    %81 = vector.load %arg5[%c0_69, %c0_70, %c0_71] : memref<9x16x64xbf16, #tpu.memory_space<vmem>>, vector<1x16x64xbf16>
    %82 = vector.shape_cast %81 : vector<1x16x64xbf16> to vector<16x64xbf16>
    %cst_72 = arith.constant dense<0.000000e+00> : vector<16x16xf32>
    %83 = tpu.matmul %82, %79, %cst_72 {dimension_numbers = #tpu.dot_dimension_numbers<[1], [0], [0], [1], [0, 0, 1, 1], [], []>} : vector<16x64xbf16>, vector<64x16xbf16>, vector<16x16xf32> -> vector<16x16xf32>
    %84 = arith.truncf %83 : vector<16x16xf32> to vector<16x16xbf16>
    %c0_73 = arith.constant 0 : index
    %c0_74 = arith.constant 0 : index
    %c0_75 = arith.constant 0 : index
    %85 = vector.load %arg6[%c0_73, %c0_74, %c0_75] : memref<9x16x32xbf16, #tpu.memory_space<vmem>>, vector<1x16x32xbf16>
    %86 = vector.shape_cast %85 : vector<1x16x32xbf16> to vector<16x32xbf16>
    %cst_76 = arith.constant dense<0.000000e+00> : vector<16x32xf32>
    %87 = tpu.matmul %84, %86, %cst_76 {dimension_numbers = #tpu.dot_dimension_numbers<[1], [0], [0], [1], [0, 0, 1, 1], [], []>} : vector<16x16xbf16>, vector<16x32xbf16>, vector<16x32xf32> -> vector<16x32xf32>
    %88 = arith.addf %80, %87 : vector<16x32xf32>
    %c1_77 = arith.constant 1 : index
    %c0_78 = arith.constant 0 : index
    %c0_79 = arith.constant 0 : index
    %89 = vector.load %arg5[%c1_77, %c0_78, %c0_79] : memref<9x16x64xbf16, #tpu.memory_space<vmem>>, vector<1x16x64xbf16>
    %90 = vector.shape_cast %89 : vector<1x16x64xbf16> to vector<16x64xbf16>
    %cst_80 = arith.constant dense<0.000000e+00> : vector<16x16xf32>
    %91 = tpu.matmul %90, %79, %cst_80 {dimension_numbers = #tpu.dot_dimension_numbers<[1], [0], [0], [1], [0, 0, 1, 1], [], []>} : vector<16x64xbf16>, vector<64x16xbf16>, vector<16x16xf32> -> vector<16x16xf32>
    %92 = arith.truncf %91 : vector<16x16xf32> to vector<16x16xbf16>
    %c1_81 = arith.constant 1 : index
    %c0_82 = arith.constant 0 : index
    %c0_83 = arith.constant 0 : index
    %93 = vector.load %arg6[%c1_81, %c0_82, %c0_83] : memref<9x16x32xbf16, #tpu.memory_space<vmem>>, vector<1x16x32xbf16>
    %94 = vector.shape_cast %93 : vector<1x16x32xbf16> to vector<16x32xbf16>
    %cst_84 = arith.constant dense<0.000000e+00> : vector<16x32xf32>
    %95 = tpu.matmul %92, %94, %cst_84 {dimension_numbers = #tpu.dot_dimension_numbers<[1], [0], [0], [1], [0, 0, 1, 1], [], []>} : vector<16x16xbf16>, vector<16x32xbf16>, vector<16x32xf32> -> vector<16x32xf32>
    %96 = arith.addf %88, %95 : vector<16x32xf32>
    %c2_85 = arith.constant 2 : index
    %c0_86 = arith.constant 0 : index
    %c0_87 = arith.constant 0 : index
    %97 = vector.load %arg5[%c2_85, %c0_86, %c0_87] : memref<9x16x64xbf16, #tpu.memory_space<vmem>>, vector<1x16x64xbf16>
    %98 = vector.shape_cast %97 : vector<1x16x64xbf16> to vector<16x64xbf16>
    %cst_88 = arith.constant dense<0.000000e+00> : vector<16x16xf32>
    %99 = tpu.matmul %98, %79, %cst_88 {dimension_numbers = #tpu.dot_dimension_numbers<[1], [0], [0], [1], [0, 0, 1, 1], [], []>} : vector<16x64xbf16>, vector<64x16xbf16>, vector<16x16xf32> -> vector<16x16xf32>
    %100 = arith.truncf %99 : vector<16x16xf32> to vector<16x16xbf16>
    %c2_89 = arith.constant 2 : index
    %c0_90 = arith.constant 0 : index
    %c0_91 = arith.constant 0 : index
    %101 = vector.load %arg6[%c2_89, %c0_90, %c0_91] : memref<9x16x32xbf16, #tpu.memory_space<vmem>>, vector<1x16x32xbf16>
    %102 = vector.shape_cast %101 : vector<1x16x32xbf16> to vector<16x32xbf16>
    %cst_92 = arith.constant dense<0.000000e+00> : vector<16x32xf32>
    %103 = tpu.matmul %100, %102, %cst_92 {dimension_numbers = #tpu.dot_dimension_numbers<[1], [0], [0], [1], [0, 0, 1, 1], [], []>} : vector<16x16xbf16>, vector<16x32xbf16>, vector<16x32xf32> -> vector<16x32xf32>
    %104 = arith.addf %96, %103 : vector<16x32xf32>
    %c3_93 = arith.constant 3 : index
    %c0_94 = arith.constant 0 : index
    %c0_95 = arith.constant 0 : index
    %105 = vector.load %arg5[%c3_93, %c0_94, %c0_95] : memref<9x16x64xbf16, #tpu.memory_space<vmem>>, vector<1x16x64xbf16>
    %106 = vector.shape_cast %105 : vector<1x16x64xbf16> to vector<16x64xbf16>
    %cst_96 = arith.constant dense<0.000000e+00> : vector<16x16xf32>
    %107 = tpu.matmul %106, %79, %cst_96 {dimension_numbers = #tpu.dot_dimension_numbers<[1], [0], [0], [1], [0, 0, 1, 1], [], []>} : vector<16x64xbf16>, vector<64x16xbf16>, vector<16x16xf32> -> vector<16x16xf32>
    %108 = arith.truncf %107 : vector<16x16xf32> to vector<16x16xbf16>
    %c3_97 = arith.constant 3 : index
    %c0_98 = arith.constant 0 : index
    %c0_99 = arith.constant 0 : index
    %109 = vector.load %arg6[%c3_97, %c0_98, %c0_99] : memref<9x16x32xbf16, #tpu.memory_space<vmem>>, vector<1x16x32xbf16>
    %110 = vector.shape_cast %109 : vector<1x16x32xbf16> to vector<16x32xbf16>
    %cst_100 = arith.constant dense<0.000000e+00> : vector<16x32xf32>
    %111 = tpu.matmul %108, %110, %cst_100 {dimension_numbers = #tpu.dot_dimension_numbers<[1], [0], [0], [1], [0, 0, 1, 1], [], []>} : vector<16x16xbf16>, vector<16x32xbf16>, vector<16x32xf32> -> vector<16x32xf32>
    %112 = arith.addf %104, %111 : vector<16x32xf32>
    %c4_101 = arith.constant 4 : index
    %c0_102 = arith.constant 0 : index
    %c0_103 = arith.constant 0 : index
    %113 = vector.load %arg5[%c4_101, %c0_102, %c0_103] : memref<9x16x64xbf16, #tpu.memory_space<vmem>>, vector<1x16x64xbf16>
    %114 = vector.shape_cast %113 : vector<1x16x64xbf16> to vector<16x64xbf16>
    %cst_104 = arith.constant dense<0.000000e+00> : vector<16x16xf32>
    %115 = tpu.matmul %114, %79, %cst_104 {dimension_numbers = #tpu.dot_dimension_numbers<[1], [0], [0], [1], [0, 0, 1, 1], [], []>} : vector<16x64xbf16>, vector<64x16xbf16>, vector<16x16xf32> -> vector<16x16xf32>
    %116 = arith.truncf %115 : vector<16x16xf32> to vector<16x16xbf16>
    %c4_105 = arith.constant 4 : index
    %c0_106 = arith.constant 0 : index
    %c0_107 = arith.constant 0 : index
    %117 = vector.load %arg6[%c4_105, %c0_106, %c0_107] : memref<9x16x32xbf16, #tpu.memory_space<vmem>>, vector<1x16x32xbf16>
    %118 = vector.shape_cast %117 : vector<1x16x32xbf16> to vector<16x32xbf16>
    %cst_108 = arith.constant dense<0.000000e+00> : vector<16x32xf32>
    %119 = tpu.matmul %116, %118, %cst_108 {dimension_numbers = #tpu.dot_dimension_numbers<[1], [0], [0], [1], [0, 0, 1, 1], [], []>} : vector<16x16xbf16>, vector<16x32xbf16>, vector<16x32xf32> -> vector<16x32xf32>
    %120 = arith.addf %112, %119 : vector<16x32xf32>
    %c5_109 = arith.constant 5 : index
    %c0_110 = arith.constant 0 : index
    %c0_111 = arith.constant 0 : index
    %121 = vector.load %arg5[%c5_109, %c0_110, %c0_111] : memref<9x16x64xbf16, #tpu.memory_space<vmem>>, vector<1x16x64xbf16>
    %122 = vector.shape_cast %121 : vector<1x16x64xbf16> to vector<16x64xbf16>
    %cst_112 = arith.constant dense<0.000000e+00> : vector<16x16xf32>
    %123 = tpu.matmul %122, %79, %cst_112 {dimension_numbers = #tpu.dot_dimension_numbers<[1], [0], [0], [1], [0, 0, 1, 1], [], []>} : vector<16x64xbf16>, vector<64x16xbf16>, vector<16x16xf32> -> vector<16x16xf32>
    %124 = arith.truncf %123 : vector<16x16xf32> to vector<16x16xbf16>
    %c5_113 = arith.constant 5 : index
    %c0_114 = arith.constant 0 : index
    %c0_115 = arith.constant 0 : index
    %125 = vector.load %arg6[%c5_113, %c0_114, %c0_115] : memref<9x16x32xbf16, #tpu.memory_space<vmem>>, vector<1x16x32xbf16>
    %126 = vector.shape_cast %125 : vector<1x16x32xbf16> to vector<16x32xbf16>
    %cst_116 = arith.constant dense<0.000000e+00> : vector<16x32xf32>
    %127 = tpu.matmul %124, %126, %cst_116 {dimension_numbers = #tpu.dot_dimension_numbers<[1], [0], [0], [1], [0, 0, 1, 1], [], []>} : vector<16x16xbf16>, vector<16x32xbf16>, vector<16x32xf32> -> vector<16x32xf32>
    %128 = arith.addf %120, %127 : vector<16x32xf32>
    %c6_117 = arith.constant 6 : index
    %c0_118 = arith.constant 0 : index
    %c0_119 = arith.constant 0 : index
    %129 = vector.load %arg5[%c6_117, %c0_118, %c0_119] : memref<9x16x64xbf16, #tpu.memory_space<vmem>>, vector<1x16x64xbf16>
    %130 = vector.shape_cast %129 : vector<1x16x64xbf16> to vector<16x64xbf16>
    %cst_120 = arith.constant dense<0.000000e+00> : vector<16x16xf32>
    %131 = tpu.matmul %130, %79, %cst_120 {dimension_numbers = #tpu.dot_dimension_numbers<[1], [0], [0], [1], [0, 0, 1, 1], [], []>} : vector<16x64xbf16>, vector<64x16xbf16>, vector<16x16xf32> -> vector<16x16xf32>
    %132 = arith.truncf %131 : vector<16x16xf32> to vector<16x16xbf16>
    %c6_121 = arith.constant 6 : index
    %c0_122 = arith.constant 0 : index
    %c0_123 = arith.constant 0 : index
    %133 = vector.load %arg6[%c6_121, %c0_122, %c0_123] : memref<9x16x32xbf16, #tpu.memory_space<vmem>>, vector<1x16x32xbf16>
    %134 = vector.shape_cast %133 : vector<1x16x32xbf16> to vector<16x32xbf16>
    %cst_124 = arith.constant dense<0.000000e+00> : vector<16x32xf32>
    %135 = tpu.matmul %132, %134, %cst_124 {dimension_numbers = #tpu.dot_dimension_numbers<[1], [0], [0], [1], [0, 0, 1, 1], [], []>} : vector<16x16xbf16>, vector<16x32xbf16>, vector<16x32xf32> -> vector<16x32xf32>
    %136 = arith.addf %128, %135 : vector<16x32xf32>
    %c7_125 = arith.constant 7 : index
    %c0_126 = arith.constant 0 : index
    %c0_127 = arith.constant 0 : index
    %137 = vector.load %arg5[%c7_125, %c0_126, %c0_127] : memref<9x16x64xbf16, #tpu.memory_space<vmem>>, vector<1x16x64xbf16>
    %138 = vector.shape_cast %137 : vector<1x16x64xbf16> to vector<16x64xbf16>
    %cst_128 = arith.constant dense<0.000000e+00> : vector<16x16xf32>
    %139 = tpu.matmul %138, %79, %cst_128 {dimension_numbers = #tpu.dot_dimension_numbers<[1], [0], [0], [1], [0, 0, 1, 1], [], []>} : vector<16x64xbf16>, vector<64x16xbf16>, vector<16x16xf32> -> vector<16x16xf32>
    %140 = arith.truncf %139 : vector<16x16xf32> to vector<16x16xbf16>
    %c7_129 = arith.constant 7 : index
    %c0_130 = arith.constant 0 : index
    %c0_131 = arith.constant 0 : index
    %141 = vector.load %arg6[%c7_129, %c0_130, %c0_131] : memref<9x16x32xbf16, #tpu.memory_space<vmem>>, vector<1x16x32xbf16>
    %142 = vector.shape_cast %141 : vector<1x16x32xbf16> to vector<16x32xbf16>
    %cst_132 = arith.constant dense<0.000000e+00> : vector<16x32xf32>
    %143 = tpu.matmul %140, %142, %cst_132 {dimension_numbers = #tpu.dot_dimension_numbers<[1], [0], [0], [1], [0, 0, 1, 1], [], []>} : vector<16x16xbf16>, vector<16x32xbf16>, vector<16x32xf32> -> vector<16x32xf32>
    %144 = arith.addf %136, %143 : vector<16x32xf32>
    %c8_133 = arith.constant 8 : index
    %c0_134 = arith.constant 0 : index
    %c0_135 = arith.constant 0 : index
    %145 = vector.load %arg5[%c8_133, %c0_134, %c0_135] : memref<9x16x64xbf16, #tpu.memory_space<vmem>>, vector<1x16x64xbf16>
    %146 = vector.shape_cast %145 : vector<1x16x64xbf16> to vector<16x64xbf16>
    %cst_136 = arith.constant dense<0.000000e+00> : vector<16x16xf32>
    %147 = tpu.matmul %146, %79, %cst_136 {dimension_numbers = #tpu.dot_dimension_numbers<[1], [0], [0], [1], [0, 0, 1, 1], [], []>} : vector<16x64xbf16>, vector<64x16xbf16>, vector<16x16xf32> -> vector<16x16xf32>
    %148 = arith.truncf %147 : vector<16x16xf32> to vector<16x16xbf16>
    %c8_137 = arith.constant 8 : index
    %c0_138 = arith.constant 0 : index
    %c0_139 = arith.constant 0 : index
    %149 = vector.load %arg6[%c8_137, %c0_138, %c0_139] : memref<9x16x32xbf16, #tpu.memory_space<vmem>>, vector<1x16x32xbf16>
    %150 = vector.shape_cast %149 : vector<1x16x32xbf16> to vector<16x32xbf16>
    %cst_140 = arith.constant dense<0.000000e+00> : vector<16x32xf32>
    %151 = tpu.matmul %148, %150, %cst_140 {dimension_numbers = #tpu.dot_dimension_numbers<[1], [0], [0], [1], [0, 0, 1, 1], [], []>} : vector<16x16xbf16>, vector<16x32xbf16>, vector<16x32xf32> -> vector<16x32xf32>
    %152 = arith.addf %144, %151 : vector<16x32xf32>
    %c0_141 = arith.constant 0 : index
    %c0_142 = arith.constant 0 : index
    %153 = vector.load %arg7[%c0_141, %c0_142] : memref<1x32xf32, #tpu.memory_space<vmem>>, vector<1x32xf32>
    %154 = vector.broadcast %153 : vector<1x32xf32> to vector<16x32xf32>
    %155 = arith.addf %152, %154 : vector<16x32xf32>
    %cst_143 = arith.constant 0.000000e+00 : f32
    %156 = vector.broadcast %cst_143 : f32 to vector<16x32xf32>
    %157 = arith.maximumf %155, %156 : vector<16x32xf32>
    %158 = arith.truncf %157 : vector<16x32xf32> to vector<16x32xbf16>
    %cst_144 = arith.constant 0.000000e+00 : f32
    %159 = vector.broadcast %cst_144 : f32 to vector<4x64xf32>
    %c0_145 = arith.constant 0 : index
    %c0_146 = arith.constant 0 : index
    %c0_147 = arith.constant 0 : index
    %160 = vector.load %arg8[%c0_145, %c0_146, %c0_147] : memref<9x4x16xbf16, #tpu.memory_space<vmem>>, vector<1x4x16xbf16>
    %161 = vector.shape_cast %160 : vector<1x4x16xbf16> to vector<4x16xbf16>
    %cst_148 = arith.constant dense<0.000000e+00> : vector<4x32xf32>
    %162 = tpu.matmul %161, %158, %cst_148 {dimension_numbers = #tpu.dot_dimension_numbers<[1], [0], [0], [1], [0, 0, 1, 1], [], []>} : vector<4x16xbf16>, vector<16x32xbf16>, vector<4x32xf32> -> vector<4x32xf32>
    %163 = arith.truncf %162 : vector<4x32xf32> to vector<4x32xbf16>
    %c0_149 = arith.constant 0 : index
    %c0_150 = arith.constant 0 : index
    %c0_151 = arith.constant 0 : index
    %164 = vector.load %arg9[%c0_149, %c0_150, %c0_151] : memref<9x32x64xbf16, #tpu.memory_space<vmem>>, vector<1x32x64xbf16>
    %165 = vector.shape_cast %164 : vector<1x32x64xbf16> to vector<32x64xbf16>
    %cst_152 = arith.constant dense<0.000000e+00> : vector<4x64xf32>
    %166 = tpu.matmul %163, %165, %cst_152 {dimension_numbers = #tpu.dot_dimension_numbers<[1], [0], [0], [1], [0, 0, 1, 1], [], []>} : vector<4x32xbf16>, vector<32x64xbf16>, vector<4x64xf32> -> vector<4x64xf32>
    %167 = arith.addf %159, %166 : vector<4x64xf32>
    %c1_153 = arith.constant 1 : index
    %c0_154 = arith.constant 0 : index
    %c0_155 = arith.constant 0 : index
    %168 = vector.load %arg8[%c1_153, %c0_154, %c0_155] : memref<9x4x16xbf16, #tpu.memory_space<vmem>>, vector<1x4x16xbf16>
    %169 = vector.shape_cast %168 : vector<1x4x16xbf16> to vector<4x16xbf16>
    %cst_156 = arith.constant dense<0.000000e+00> : vector<4x32xf32>
    %170 = tpu.matmul %169, %158, %cst_156 {dimension_numbers = #tpu.dot_dimension_numbers<[1], [0], [0], [1], [0, 0, 1, 1], [], []>} : vector<4x16xbf16>, vector<16x32xbf16>, vector<4x32xf32> -> vector<4x32xf32>
    %171 = arith.truncf %170 : vector<4x32xf32> to vector<4x32xbf16>
    %c1_157 = arith.constant 1 : index
    %c0_158 = arith.constant 0 : index
    %c0_159 = arith.constant 0 : index
    %172 = vector.load %arg9[%c1_157, %c0_158, %c0_159] : memref<9x32x64xbf16, #tpu.memory_space<vmem>>, vector<1x32x64xbf16>
    %173 = vector.shape_cast %172 : vector<1x32x64xbf16> to vector<32x64xbf16>
    %cst_160 = arith.constant dense<0.000000e+00> : vector<4x64xf32>
    %174 = tpu.matmul %171, %173, %cst_160 {dimension_numbers = #tpu.dot_dimension_numbers<[1], [0], [0], [1], [0, 0, 1, 1], [], []>} : vector<4x32xbf16>, vector<32x64xbf16>, vector<4x64xf32> -> vector<4x64xf32>
    %175 = arith.addf %167, %174 : vector<4x64xf32>
    %c2_161 = arith.constant 2 : index
    %c0_162 = arith.constant 0 : index
    %c0_163 = arith.constant 0 : index
    %176 = vector.load %arg8[%c2_161, %c0_162, %c0_163] : memref<9x4x16xbf16, #tpu.memory_space<vmem>>, vector<1x4x16xbf16>
    %177 = vector.shape_cast %176 : vector<1x4x16xbf16> to vector<4x16xbf16>
    %cst_164 = arith.constant dense<0.000000e+00> : vector<4x32xf32>
    %178 = tpu.matmul %177, %158, %cst_164 {dimension_numbers = #tpu.dot_dimension_numbers<[1], [0], [0], [1], [0, 0, 1, 1], [], []>} : vector<4x16xbf16>, vector<16x32xbf16>, vector<4x32xf32> -> vector<4x32xf32>
    %179 = arith.truncf %178 : vector<4x32xf32> to vector<4x32xbf16>
    %c2_165 = arith.constant 2 : index
    %c0_166 = arith.constant 0 : index
    %c0_167 = arith.constant 0 : index
    %180 = vector.load %arg9[%c2_165, %c0_166, %c0_167] : memref<9x32x64xbf16, #tpu.memory_space<vmem>>, vector<1x32x64xbf16>
    %181 = vector.shape_cast %180 : vector<1x32x64xbf16> to vector<32x64xbf16>
    %cst_168 = arith.constant dense<0.000000e+00> : vector<4x64xf32>
    %182 = tpu.matmul %179, %181, %cst_168 {dimension_numbers = #tpu.dot_dimension_numbers<[1], [0], [0], [1], [0, 0, 1, 1], [], []>} : vector<4x32xbf16>, vector<32x64xbf16>, vector<4x64xf32> -> vector<4x64xf32>
    %183 = arith.addf %175, %182 : vector<4x64xf32>
    %c3_169 = arith.constant 3 : index
    %c0_170 = arith.constant 0 : index
    %c0_171 = arith.constant 0 : index
    %184 = vector.load %arg8[%c3_169, %c0_170, %c0_171] : memref<9x4x16xbf16, #tpu.memory_space<vmem>>, vector<1x4x16xbf16>
    %185 = vector.shape_cast %184 : vector<1x4x16xbf16> to vector<4x16xbf16>
    %cst_172 = arith.constant dense<0.000000e+00> : vector<4x32xf32>
    %186 = tpu.matmul %185, %158, %cst_172 {dimension_numbers = #tpu.dot_dimension_numbers<[1], [0], [0], [1], [0, 0, 1, 1], [], []>} : vector<4x16xbf16>, vector<16x32xbf16>, vector<4x32xf32> -> vector<4x32xf32>
    %187 = arith.truncf %186 : vector<4x32xf32> to vector<4x32xbf16>
    %c3_173 = arith.constant 3 : index
    %c0_174 = arith.constant 0 : index
    %c0_175 = arith.constant 0 : index
    %188 = vector.load %arg9[%c3_173, %c0_174, %c0_175] : memref<9x32x64xbf16, #tpu.memory_space<vmem>>, vector<1x32x64xbf16>
    %189 = vector.shape_cast %188 : vector<1x32x64xbf16> to vector<32x64xbf16>
    %cst_176 = arith.constant dense<0.000000e+00> : vector<4x64xf32>
    %190 = tpu.matmul %187, %189, %cst_176 {dimension_numbers = #tpu.dot_dimension_numbers<[1], [0], [0], [1], [0, 0, 1, 1], [], []>} : vector<4x32xbf16>, vector<32x64xbf16>, vector<4x64xf32> -> vector<4x64xf32>
    %191 = arith.addf %183, %190 : vector<4x64xf32>
    %c4_177 = arith.constant 4 : index
    %c0_178 = arith.constant 0 : index
    %c0_179 = arith.constant 0 : index
    %192 = vector.load %arg8[%c4_177, %c0_178, %c0_179] : memref<9x4x16xbf16, #tpu.memory_space<vmem>>, vector<1x4x16xbf16>
    %193 = vector.shape_cast %192 : vector<1x4x16xbf16> to vector<4x16xbf16>
    %cst_180 = arith.constant dense<0.000000e+00> : vector<4x32xf32>
    %194 = tpu.matmul %193, %158, %cst_180 {dimension_numbers = #tpu.dot_dimension_numbers<[1], [0], [0], [1], [0, 0, 1, 1], [], []>} : vector<4x16xbf16>, vector<16x32xbf16>, vector<4x32xf32> -> vector<4x32xf32>
    %195 = arith.truncf %194 : vector<4x32xf32> to vector<4x32xbf16>
    %c4_181 = arith.constant 4 : index
    %c0_182 = arith.constant 0 : index
    %c0_183 = arith.constant 0 : index
    %196 = vector.load %arg9[%c4_181, %c0_182, %c0_183] : memref<9x32x64xbf16, #tpu.memory_space<vmem>>, vector<1x32x64xbf16>
    %197 = vector.shape_cast %196 : vector<1x32x64xbf16> to vector<32x64xbf16>
    %cst_184 = arith.constant dense<0.000000e+00> : vector<4x64xf32>
    %198 = tpu.matmul %195, %197, %cst_184 {dimension_numbers = #tpu.dot_dimension_numbers<[1], [0], [0], [1], [0, 0, 1, 1], [], []>} : vector<4x32xbf16>, vector<32x64xbf16>, vector<4x64xf32> -> vector<4x64xf32>
    %199 = arith.addf %191, %198 : vector<4x64xf32>
    %c5_185 = arith.constant 5 : index
    %c0_186 = arith.constant 0 : index
    %c0_187 = arith.constant 0 : index
    %200 = vector.load %arg8[%c5_185, %c0_186, %c0_187] : memref<9x4x16xbf16, #tpu.memory_space<vmem>>, vector<1x4x16xbf16>
    %201 = vector.shape_cast %200 : vector<1x4x16xbf16> to vector<4x16xbf16>
    %cst_188 = arith.constant dense<0.000000e+00> : vector<4x32xf32>
    %202 = tpu.matmul %201, %158, %cst_188 {dimension_numbers = #tpu.dot_dimension_numbers<[1], [0], [0], [1], [0, 0, 1, 1], [], []>} : vector<4x16xbf16>, vector<16x32xbf16>, vector<4x32xf32> -> vector<4x32xf32>
    %203 = arith.truncf %202 : vector<4x32xf32> to vector<4x32xbf16>
    %c5_189 = arith.constant 5 : index
    %c0_190 = arith.constant 0 : index
    %c0_191 = arith.constant 0 : index
    %204 = vector.load %arg9[%c5_189, %c0_190, %c0_191] : memref<9x32x64xbf16, #tpu.memory_space<vmem>>, vector<1x32x64xbf16>
    %205 = vector.shape_cast %204 : vector<1x32x64xbf16> to vector<32x64xbf16>
    %cst_192 = arith.constant dense<0.000000e+00> : vector<4x64xf32>
    %206 = tpu.matmul %203, %205, %cst_192 {dimension_numbers = #tpu.dot_dimension_numbers<[1], [0], [0], [1], [0, 0, 1, 1], [], []>} : vector<4x32xbf16>, vector<32x64xbf16>, vector<4x64xf32> -> vector<4x64xf32>
    %207 = arith.addf %199, %206 : vector<4x64xf32>
    %c6_193 = arith.constant 6 : index
    %c0_194 = arith.constant 0 : index
    %c0_195 = arith.constant 0 : index
    %208 = vector.load %arg8[%c6_193, %c0_194, %c0_195] : memref<9x4x16xbf16, #tpu.memory_space<vmem>>, vector<1x4x16xbf16>
    %209 = vector.shape_cast %208 : vector<1x4x16xbf16> to vector<4x16xbf16>
    %cst_196 = arith.constant dense<0.000000e+00> : vector<4x32xf32>
    %210 = tpu.matmul %209, %158, %cst_196 {dimension_numbers = #tpu.dot_dimension_numbers<[1], [0], [0], [1], [0, 0, 1, 1], [], []>} : vector<4x16xbf16>, vector<16x32xbf16>, vector<4x32xf32> -> vector<4x32xf32>
    %211 = arith.truncf %210 : vector<4x32xf32> to vector<4x32xbf16>
    %c6_197 = arith.constant 6 : index
    %c0_198 = arith.constant 0 : index
    %c0_199 = arith.constant 0 : index
    %212 = vector.load %arg9[%c6_197, %c0_198, %c0_199] : memref<9x32x64xbf16, #tpu.memory_space<vmem>>, vector<1x32x64xbf16>
    %213 = vector.shape_cast %212 : vector<1x32x64xbf16> to vector<32x64xbf16>
    %cst_200 = arith.constant dense<0.000000e+00> : vector<4x64xf32>
    %214 = tpu.matmul %211, %213, %cst_200 {dimension_numbers = #tpu.dot_dimension_numbers<[1], [0], [0], [1], [0, 0, 1, 1], [], []>} : vector<4x32xbf16>, vector<32x64xbf16>, vector<4x64xf32> -> vector<4x64xf32>
    %215 = arith.addf %207, %214 : vector<4x64xf32>
    %c7_201 = arith.constant 7 : index
    %c0_202 = arith.constant 0 : index
    %c0_203 = arith.constant 0 : index
    %216 = vector.load %arg8[%c7_201, %c0_202, %c0_203] : memref<9x4x16xbf16, #tpu.memory_space<vmem>>, vector<1x4x16xbf16>
    %217 = vector.shape_cast %216 : vector<1x4x16xbf16> to vector<4x16xbf16>
    %cst_204 = arith.constant dense<0.000000e+00> : vector<4x32xf32>
    %218 = tpu.matmul %217, %158, %cst_204 {dimension_numbers = #tpu.dot_dimension_numbers<[1], [0], [0], [1], [0, 0, 1, 1], [], []>} : vector<4x16xbf16>, vector<16x32xbf16>, vector<4x32xf32> -> vector<4x32xf32>
    %219 = arith.truncf %218 : vector<4x32xf32> to vector<4x32xbf16>
    %c7_205 = arith.constant 7 : index
    %c0_206 = arith.constant 0 : index
    %c0_207 = arith.constant 0 : index
    %220 = vector.load %arg9[%c7_205, %c0_206, %c0_207] : memref<9x32x64xbf16, #tpu.memory_space<vmem>>, vector<1x32x64xbf16>
    %221 = vector.shape_cast %220 : vector<1x32x64xbf16> to vector<32x64xbf16>
    %cst_208 = arith.constant dense<0.000000e+00> : vector<4x64xf32>
    %222 = tpu.matmul %219, %221, %cst_208 {dimension_numbers = #tpu.dot_dimension_numbers<[1], [0], [0], [1], [0, 0, 1, 1], [], []>} : vector<4x32xbf16>, vector<32x64xbf16>, vector<4x64xf32> -> vector<4x64xf32>
    %223 = arith.addf %215, %222 : vector<4x64xf32>
    %c8_209 = arith.constant 8 : index
    %c0_210 = arith.constant 0 : index
    %c0_211 = arith.constant 0 : index
    %224 = vector.load %arg8[%c8_209, %c0_210, %c0_211] : memref<9x4x16xbf16, #tpu.memory_space<vmem>>, vector<1x4x16xbf16>
    %225 = vector.shape_cast %224 : vector<1x4x16xbf16> to vector<4x16xbf16>
    %cst_212 = arith.constant dense<0.000000e+00> : vector<4x32xf32>
    %226 = tpu.matmul %225, %158, %cst_212 {dimension_numbers = #tpu.dot_dimension_numbers<[1], [0], [0], [1], [0, 0, 1, 1], [], []>} : vector<4x16xbf16>, vector<16x32xbf16>, vector<4x32xf32> -> vector<4x32xf32>
    %227 = arith.truncf %226 : vector<4x32xf32> to vector<4x32xbf16>
    %c8_213 = arith.constant 8 : index
    %c0_214 = arith.constant 0 : index
    %c0_215 = arith.constant 0 : index
    %228 = vector.load %arg9[%c8_213, %c0_214, %c0_215] : memref<9x32x64xbf16, #tpu.memory_space<vmem>>, vector<1x32x64xbf16>
    %229 = vector.shape_cast %228 : vector<1x32x64xbf16> to vector<32x64xbf16>
    %cst_216 = arith.constant dense<0.000000e+00> : vector<4x64xf32>
    %230 = tpu.matmul %227, %229, %cst_216 {dimension_numbers = #tpu.dot_dimension_numbers<[1], [0], [0], [1], [0, 0, 1, 1], [], []>} : vector<4x32xbf16>, vector<32x64xbf16>, vector<4x64xf32> -> vector<4x64xf32>
    %231 = arith.addf %223, %230 : vector<4x64xf32>
    %c0_217 = arith.constant 0 : index
    %c0_218 = arith.constant 0 : index
    %232 = vector.load %arg10[%c0_217, %c0_218] : memref<1x64xf32, #tpu.memory_space<vmem>>, vector<1x64xf32>
    %233 = vector.broadcast %232 : vector<1x64xf32> to vector<4x64xf32>
    %234 = arith.addf %231, %233 : vector<4x64xf32>
    %cst_219 = arith.constant 0.000000e+00 : f32
    %235 = vector.broadcast %cst_219 : f32 to vector<4x64xf32>
    %236 = arith.cmpf ogt, %234, %235 : vector<4x64xf32>
    %cst_220 = arith.constant 2.000000e-01 : f32
    %237 = vector.broadcast %cst_220 : f32 to vector<4x64xf32>
    %238 = arith.mulf %237, %234 : vector<4x64xf32>
    %239 = arith.select %236, %234, %238 : vector<4x64xi1>, vector<4x64xf32>
    %240 = arith.truncf %239 : vector<4x64xf32> to vector<4x64xbf16>
    %c0_221 = arith.constant 0 : index
    %c0_222 = arith.constant 0 : index
    %241 = vector.load %arg11[%c0_221, %c0_222] : memref<64x1xbf16, #tpu.memory_space<vmem>>, vector<64x1xbf16>
    %cst_223 = arith.constant dense<0.000000e+00> : vector<4x1xf32>
    %242 = tpu.matmul %240, %241, %cst_223 {dimension_numbers = #tpu.dot_dimension_numbers<[1], [0], [0], [1], [0, 0, 1, 1], [], []>} : vector<4x64xbf16>, vector<64x1xbf16>, vector<4x1xf32> -> vector<4x1xf32>
    %c0_224 = arith.constant 0 : index
    %c0_225 = arith.constant 0 : index
    %243 = vector.load %arg12[%c0_224, %c0_225] : memref<1x1xf32, #tpu.memory_space<vmem>>, vector<1x1xf32>
    %244 = vector.broadcast %243 : vector<1x1xf32> to vector<4x1xf32>
    %245 = arith.addf %242, %244 : vector<4x1xf32>
    %c0_226 = arith.constant 0 : index
    %c0_227 = arith.constant 0 : index
    %c0_228 = arith.constant 0 : index
    %246 = vector.load %arg13[%c0_226, %c0_227, %c0_228] : memref<1x4x1xf32, #tpu.memory_space<vmem>>, vector<1x4x1xf32>
    %247 = vector.shape_cast %246 : vector<1x4x1xf32> to vector<4x1xf32>
    %248 = vector.shape_cast %245 : vector<4x1xf32> to vector<1x4x1xf32>
    tpu.vector_store %arg13[%c0_226, %c0_227, %c0_228], %248 {strides = array<i32>} : memref<1x4x1xf32, #tpu.memory_space<vmem>>, vector<1x4x1xf32>,
    return
  }
  func.func @transform_0(%arg0: i32) -> (i32, i32) {
    %c0_i32 = arith.constant 0 : i32
    %c0_i32_0 = arith.constant 0 : i32
    return %arg0, %c0_i32 : i32, i32
  }
  func.func @transform_1(%arg0: i32) -> (i32, i32, i32) {
    %c0_i32 = arith.constant 0 : i32
    %c0_i32_0 = arith.constant 0 : i32
    %c0_i32_1 = arith.constant 0 : i32
    %c0_i32_2 = arith.constant 0 : i32
    return %c0_i32, %c0_i32_0, %c0_i32_1 : i32, i32, i32
  }
  func.func @transform_2(%arg0: i32) -> (i32, i32, i32) {
    %c0_i32 = arith.constant 0 : i32
    %c0_i32_0 = arith.constant 0 : i32
    %c0_i32_1 = arith.constant 0 : i32
    %c0_i32_2 = arith.constant 0 : i32
    return %c0_i32, %c0_i32_0, %c0_i32_1 : i32, i32, i32
  }
  func.func @transform_3(%arg0: i32) -> (i32, i32) {
    %c0_i32 = arith.constant 0 : i32
    %c0_i32_0 = arith.constant 0 : i32
    %c0_i32_1 = arith.constant 0 : i32
    return %c0_i32, %c0_i32_0 : i32, i32
  }
  func.func @transform_4(%arg0: i32) -> (i32, i32, i32) {
    %c0_i32 = arith.constant 0 : i32
    %c0_i32_0 = arith.constant 0 : i32
    %c0_i32_1 = arith.constant 0 : i32
    %c0_i32_2 = arith.constant 0 : i32
    return %c0_i32, %c0_i32_0, %c0_i32_1 : i32, i32, i32
  }
  func.func @transform_5(%arg0: i32) -> (i32, i32, i32) {
    %c0_i32 = arith.constant 0 : i32
    %c0_i32_0 = arith.constant 0 : i32
    %c0_i32_1 = arith.constant 0 : i32
    %c0_i32_2 = arith.constant 0 : i32
    return %c0_i32, %c0_i32_0, %c0_i32_1 : i32, i32, i32
  }
  func.func @transform_6(%arg0: i32) -> (i32, i32) {
    %c0_i32 = arith.constant 0 : i32
    %c0_i32_0 = arith.constant 0 : i32
    %c0_i32_1 = arith.constant 0 : i32
    return %c0_i32, %c0_i32_0 : i32, i32
  }
  func.func @transform_7(%arg0: i32) -> (i32, i32, i32) {
    %c0_i32 = arith.constant 0 : i32
    %c0_i32_0 = arith.constant 0 : i32
    %c0_i32_1 = arith.constant 0 : i32
    %c0_i32_2 = arith.constant 0 : i32
    return %c0_i32, %c0_i32_0, %c0_i32_1 : i32, i32, i32
  }
  func.func @transform_8(%arg0: i32) -> (i32, i32, i32) {
    %c0_i32 = arith.constant 0 : i32
    %c0_i32_0 = arith.constant 0 : i32
    %c0_i32_1 = arith.constant 0 : i32
    %c0_i32_2 = arith.constant 0 : i32
    return %c0_i32, %c0_i32_0, %c0_i32_1 : i32, i32, i32
  }
  func.func @transform_9(%arg0: i32) -> (i32, i32) {
    %c0_i32 = arith.constant 0 : i32
    %c0_i32_0 = arith.constant 0 : i32
    %c0_i32_1 = arith.constant 0 : i32
    return %c0_i32, %c0_i32_0 : i32, i32
  }
  func.func @transform_10(%arg0: i32) -> (i32, i32) {
    %c0_i32 = arith.constant 0 : i32
    %c0_i32_0 = arith.constant 0 : i32
    %c0_i32_1 = arith.constant 0 : i32
    return %c0_i32, %c0_i32_0 : i32, i32
  }
  func.func @transform_11(%arg0: i32) -> (i32, i32) {
    %c0_i32 = arith.constant 0 : i32
    %c0_i32_0 = arith.constant 0 : i32
    %c0_i32_1 = arith.constant 0 : i32
    return %c0_i32, %c0_i32_0 : i32, i32
  }
  func.func @transform_12(%arg0: i32) -> (i32, i32, i32) {
    %c0_i32 = arith.constant 0 : i32
    %c0_i32_0 = arith.constant 0 : i32
    %c0_i32_1 = arith.constant 0 : i32
    return %arg0, %c0_i32, %c0_i32_0 : i32, i32, i32
  }
}

</mosaic_0001>

<llo_original>
// kernel: _lambda_.1
$region0: #{_lambda_.1}
  #allocation0 [shape = 'u32[]', space=smem, size = 0x4, offset = 0x4, fixed_abs, tag = 'smem constant byte address 0x4 - core index']
  #allocation1 [shape = 'u32[144,128]{1,0:T(1,128)}', space=vmem, size = 0x12000, scoped, tag = 'internal scratch']
  #allocation2 [shape = 'f32[1,1]{1,0:T(1,128)S(1)}', space=vmem, size = 0x200, scoped, tag = 'scoped memory for _lambda_.1']
  %s0 = inlined_call_operand.vmem [shape: bf16[512,4], index: 0, kind: input, shape index: {}]
  %s1 = inlined_call_operand.hbm [shape: bf16[9,64,256], index: 1, kind: input, shape index: {}]
  %s2 = inlined_call_operand.vmem [shape: bf16[9,4,16], index: 2, kind: input, shape index: {}]
  %s3 = inlined_call_operand.vmem [shape: f32[1,16], index: 3, kind: input, shape index: {}]
  %s4 = inlined_call_operand.vmem [shape: bf16[9,16,64], index: 4, kind: input, shape index: {}]
  %s5 = inlined_call_operand.vmem [shape: bf16[9,16,32], index: 5, kind: input, shape index: {}]
  %s6 = inlined_call_operand.vmem [shape: f32[1,32], index: 6, kind: input, shape index: {}]
  %s7 = inlined_call_operand.vmem [shape: bf16[9,4,16], index: 7, kind: input, shape index: {}]
  %s8 = inlined_call_operand.vmem [shape: bf16[9,32,64], index: 8, kind: input, shape index: {}]
  %s9 = inlined_call_operand.vmem [shape: f32[1,64], index: 9, kind: input, shape index: {}]
  %s10 = inlined_call_operand.vmem [shape: bf16[64,1], index: 10, kind: input, shape index: {}]
  %s11 = inlined_call_operand.<no memory space> [shape: f32[1,1], index: 11, kind: input, shape index: {}]
  %s12 = inlined_call_operand.vmem [shape: f32[2,4,1], index: 12, kind: output, shape index: {}]
  %s13 = sld [smem:[#allocation0]]
  $region85: #{_lambda_.1} parent=0
    _
  %s15 = ssub.s32 1, %s13
  %s16 = scalar_select 0, %s15, %s13
  %v17 = vstv %s11
  %18 = vst [vmem:[#allocation2] sm:$0x1] %v17
  $region1: #{_lambda_.1} parent=0
    #allocation3 [shape = 'u8[294912]{0}', space=vmem, size = 0x48000, scoped, tag = 'input window, operand 1, single buffered']
    #allocation4 [shape = 's32[2]{0}', space=sflag, size = 0x8, scoped, tag = 'scoped memory for _lambda_.1']
    %19 = vsyncpa [#allocation4], 0
    loop: start=0, step=1, limit=4
    $region2: #{_lambda_.1} parent=1 // loop_pre_header
      _
    $region3: #{_lambda_.1} parent=1 // loop_header
      %s21 = sphi 0, %s25
      %p22 = scmp.ge.s32.totalorder %s21, 4
      %s31 = sphi 0, %s33
      %s34 = sphi 0, %s31
      %s35 = sphi 0, %s34
      %s51 = sphi 0, %s35
      %s55 = sphi 0, %s55
      %s57 = sphi 0, %s55
      %s58 = sphi 0, %s57
      %s72 = sphi 0, %s58
      %s76 = sphi 0, %s76
      %s78 = sphi 0, %s76
      %s79 = sphi 0, %s78
      %s93 = sphi 0, %s79
      %s97 = sphi 0, %s97
      %s99 = sphi 0, %s97
      %s100 = sphi 0, %s99
      %s114 = sphi 0, %s100
      %s118 = sphi 0, %s118
      %s120 = sphi 0, %s118
      %s121 = sphi 0, %s120
      %s135 = sphi 0, %s121
      %s139 = sphi 0, %s139
      %s141 = sphi 0, %s139
      %s142 = sphi 0, %s141
      %s156 = sphi 0, %s142
      %s160 = sphi 0, %s160
      %s162 = sphi 0, %s160
      %s163 = sphi 0, %s162
      %s177 = sphi 0, %s163
      %s181 = sphi 0, %s181
      %s183 = sphi 0, %s181
      %s184 = sphi 0, %s183
      %s198 = sphi 0, %s184
      %s202 = sphi 0, %s202
      %s204 = sphi 0, %s202
      %s205 = sphi 0, %s204
      %s219 = sphi 0, %s205
      %s223 = sphi 0, %s223
      %s225 = sphi 0, %s223
      %s226 = sphi 0, %s225
      %s240 = sphi 0, %s226
      %s244 = sphi 0, %s244
      %s246 = sphi 0, %s244
      %s247 = sphi 0, %s246
      %s261 = sphi 0, %s247
      %s265 = sphi 0, %s265
      %s267 = sphi 0, %s265
      %s268 = sphi 0, %s267
      %s282 = sphi 0, %s268
      %s288 = sphi 0, %s290
      %s291 = sphi 0, %s288
      %s292 = sphi 0, %s291
      %s308 = sphi 0, %s292
    $region4: #{_lambda_.1} parent=1 // loop_header_branch
      %24 = sbr.rel (%p22) target = $region8
    $region5: #{_lambda_.1} parent=1 // loop_body
      %s26 = ssub.s32 %s21, 1
      %s27 = ssub.s32 %s21, 2
      %s28 = sadd.s32 %s21, 1
      %s29 = ssub.s32 %s21, %s28
      %p30 = scmp.eq.s32.totalorder %s29, 0
      %s32 = sadd.s32 %s31, 1
      %s33 = scalar_select %p30, %s31, %s32
      %p36 = pneg %p30
      %p37 = scmp.eq.s32.totalorder %s21, 1
      %p38 = por %p36, %p37
      %p39 = scmp.ne.s32.totalorder %s31, %s34
      %p40 = scmp.eq.s32.totalorder %s21, 0
      %p41 = por %p39, %p40
      %p42 = scmp.ne.s32.totalorder %s31, %s34
      %p43 = scmp.eq.s32.totalorder %s26, 1
      %p44 = por %p42, %p43
      %p45 = scmp.ne.s32.totalorder %s34, %s35
      %p46 = scmp.eq.s32.totalorder %s26, 0
      %p47 = por %p45, %p46
      %p48 = scmp.ne.s32.totalorder %s34, %s35
      %p49 = scmp.eq.s32.totalorder %s27, 1
      %p50 = por %p48, %p49
      %p52 = scmp.ne.s32.totalorder %s35, %s51
      %p53 = scmp.eq.s32.totalorder %s27, 0
      %p54 = por %p52, %p53
      %s56 = sadd.s32 %s55, 1
      %p59 = scmp.eq.s32.totalorder %s21, 1
      %p60 = scmp.ne.s32.totalorder %s55, %s57
      %p61 = scmp.eq.s32.totalorder %s21, 0
      %p62 = por %p60, %p61
      %p63 = scmp.ne.s32.totalorder %s55, %s57
      %p64 = scmp.eq.s32.totalorder %s26, 1
      %p65 = por %p63, %p64
      %p66 = scmp.ne.s32.totalorder %s57, %s58
      %p67 = scmp.eq.s32.totalorder %s26, 0
      %p68 = por %p66, %p67
      %p69 = scmp.ne.s32.totalorder %s57, %s58
      %p70 = scmp.eq.s32.totalorder %s27, 1
      %p71 = por %p69, %p70
      %p73 = scmp.ne.s32.totalorder %s58, %s72
      %p74 = scmp.eq.s32.totalorder %s27, 0
      %p75 = por %p73, %p74
      %s77 = sadd.s32 %s76, 1
      %p80 = scmp.eq.s32.totalorder %s21, 1
      %p81 = scmp.ne.s32.totalorder %s76, %s78
      %p82 = scmp.eq.s32.totalorder %s21, 0
      %p83 = por %p81, %p82
      %p84 = scmp.ne.s32.totalorder %s76, %s78
      %p85 = scmp.eq.s32.totalorder %s26, 1
      %p86 = por %p84, %p85
      %p87 = scmp.ne.s32.totalorder %s78, %s79
      %p88 = scmp.eq.s32.totalorder %s26, 0
      %p89 = por %p87, %p88
      %p90 = scmp.ne.s32.totalorder %s78, %s79
      %p91 = scmp.eq.s32.totalorder %s27, 1
      %p92 = por %p90, %p91
      %p94 = scmp.ne.s32.totalorder %s79, %s93
      %p95 = scmp.eq.s32.totalorder %s27, 0
      %p96 = por %p94, %p95
      %s98 = sadd.s32 %s97, 1
      %p101 = scmp.eq.s32.totalorder %s21, 1
      %p102 = scmp.ne.s32.totalorder %s97, %s99
      %p103 = scmp.eq.s32.totalorder %s21, 0
      %p104 = por %p102, %p103
      %p105 = scmp.ne.s32.totalorder %s97, %s99
      %p106 = scmp.eq.s32.totalorder %s26, 1
      %p107 = por %p105, %p106
      %p108 = scmp.ne.s32.totalorder %s99, %s100
      %p109 = scmp.eq.s32.totalorder %s26, 0
      %p110 = por %p108, %p109
      %p111 = scmp.ne.s32.totalorder %s99, %s100
      %p112 = scmp.eq.s32.totalorder %s27, 1
      %p113 = por %p111, %p112
      %p115 = scmp.ne.s32.totalorder %s100, %s114
      %p116 = scmp.eq.s32.totalorder %s27, 0
      %p117 = por %p115, %p116
      %s119 = sadd.s32 %s118, 1
      %p122 = scmp.eq.s32.totalorder %s21, 1
      %p123 = scmp.ne.s32.totalorder %s118, %s120
      %p124 = scmp.eq.s32.totalorder %s21, 0
      %p125 = por %p123, %p124
      %p126 = scmp.ne.s32.totalorder %s118, %s120
      %p127 = scmp.eq.s32.totalorder %s26, 1
      %p128 = por %p126, %p127
      %p129 = scmp.ne.s32.totalorder %s120, %s121
      %p130 = scmp.eq.s32.totalorder %s26, 0
      %p131 = por %p129, %p130
      %p132 = scmp.ne.s32.totalorder %s120, %s121
      %p133 = scmp.eq.s32.totalorder %s27, 1
      %p134 = por %p132, %p133
      %p136 = scmp.ne.s32.totalorder %s121, %s135
      %p137 = scmp.eq.s32.totalorder %s27, 0
      %p138 = por %p136, %p137
      %s140 = sadd.s32 %s139, 1
      %p143 = scmp.eq.s32.totalorder %s21, 1
      %p144 = scmp.ne.s32.totalorder %s139, %s141
      %p145 = scmp.eq.s32.totalorder %s21, 0
      %p146 = por %p144, %p145
      %p147 = scmp.ne.s32.totalorder %s139, %s141
      %p148 = scmp.eq.s32.totalorder %s26, 1
      %p149 = por %p147, %p148
      %p150 = scmp.ne.s32.totalorder %s141, %s142
      %p151 = scmp.eq.s32.totalorder %s26, 0
      %p152 = por %p150, %p151
      %p153 = scmp.ne.s32.totalorder %s141, %s142
      %p154 = scmp.eq.s32.totalorder %s27, 1
      %p155 = por %p153, %p154
      %p157 = scmp.ne.s32.totalorder %s142, %s156
      %p158 = scmp.eq.s32.totalorder %s27, 0
      %p159 = por %p157, %p158
      %s161 = sadd.s32 %s160, 1
      %p164 = scmp.eq.s32.totalorder %s21, 1
      %p165 = scmp.ne.s32.totalorder %s160, %s162
      %p166 = scmp.eq.s32.totalorder %s21, 0
      %p167 = por %p165, %p166
      %p168 = scmp.ne.s32.totalorder %s160, %s162
      %p169 = scmp.eq.s32.totalorder %s26, 1
      %p170 = por %p168, %p169
      %p171 = scmp.ne.s32.totalorder %s162, %s163
      %p172 = scmp.eq.s32.totalorder %s26, 0
      %p173 = por %p171, %p172
      %p174 = scmp.ne.s32.totalorder %s162, %s163
      %p175 = scmp.eq.s32.totalorder %s27, 1
      %p176 = por %p174, %p175
      %p178 = scmp.ne.s32.totalorder %s163, %s177
      %p179 = scmp.eq.s32.totalorder %s27, 0
      %p180 = por %p178, %p179
      %s182 = sadd.s32 %s181, 1
      %p185 = scmp.eq.s32.totalorder %s21, 1
      %p186 = scmp.ne.s32.totalorder %s181, %s183
      %p187 = scmp.eq.s32.totalorder %s21, 0
      %p188 = por %p186, %p187
      %p189 = scmp.ne.s32.totalorder %s181, %s183
      %p190 = scmp.eq.s32.totalorder %s26, 1
      %p191 = por %p189, %p190
      %p192 = scmp.ne.s32.totalorder %s183, %s184
      %p193 = scmp.eq.s32.totalorder %s26, 0
      %p194 = por %p192, %p193
      %p195 = scmp.ne.s32.totalorder %s183, %s184
      %p196 = scmp.eq.s32.totalorder %s27, 1
      %p197 = por %p195, %p196
      %p199 = scmp.ne.s32.totalorder %s184, %s198
      %p200 = scmp.eq.s32.totalorder %s27, 0
      %p201 = por %p199, %p200
      %s203 = sadd.s32 %s202, 1
      %p206 = scmp.eq.s32.totalorder %s21, 1
      %p207 = scmp.ne.s32.totalorder %s202, %s204
      %p208 = scmp.eq.s32.totalorder %s21, 0
      %p209 = por %p207, %p208
      %p210 = scmp.ne.s32.totalorder %s202, %s204
      %p211 = scmp.eq.s32.totalorder %s26, 1
      %p212 = por %p210, %p211
      %p213 = scmp.ne.s32.totalorder %s204, %s205
      %p214 = scmp.eq.s32.totalorder %s26, 0
      %p215 = por %p213, %p214
      %p216 = scmp.ne.s32.totalorder %s204, %s205
      %p217 = scmp.eq.s32.totalorder %s27, 1
      %p218 = por %p216, %p217
      %p220 = scmp.ne.s32.totalorder %s205, %s219
      %p221 = scmp.eq.s32.totalorder %s27, 0
      %p222 = por %p220, %p221
      %s224 = sadd.s32 %s223, 1
      %p227 = scmp.eq.s32.totalorder %s21, 1
      %p228 = scmp.ne.s32.totalorder %s223, %s225
      %p229 = scmp.eq.s32.totalorder %s21, 0
      %p230 = por %p228, %p229
      %p231 = scmp.ne.s32.totalorder %s223, %s225
      %p232 = scmp.eq.s32.totalorder %s26, 1
      %p233 = por %p231, %p232
      %p234 = scmp.ne.s32.totalorder %s225, %s226
      %p235 = scmp.eq.s32.totalorder %s26, 0
      %p236 = por %p234, %p235
      %p237 = scmp.ne.s32.totalorder %s225, %s226
      %p238 = scmp.eq.s32.totalorder %s27, 1
      %p239 = por %p237, %p238
      %p241 = scmp.ne.s32.totalorder %s226, %s240
      %p242 = scmp.eq.s32.totalorder %s27, 0
      %p243 = por %p241, %p242
      %s245 = sadd.s32 %s244, 1
      %p248 = scmp.eq.s32.totalorder %s21, 1
      %p249 = scmp.ne.s32.totalorder %s244, %s246
      %p250 = scmp.eq.s32.totalorder %s21, 0
      %p251 = por %p249, %p250
      %p252 = scmp.ne.s32.totalorder %s244, %s246
      %p253 = scmp.eq.s32.totalorder %s26, 1
      %p254 = por %p252, %p253
      %p255 = scmp.ne.s32.totalorder %s246, %s247
      %p256 = scmp.eq.s32.totalorder %s26, 0
      %p257 = por %p255, %p256
      %p258 = scmp.ne.s32.totalorder %s246, %s247
      %p259 = scmp.eq.s32.totalorder %s27, 1
      %p260 = por %p258, %p259
      %p262 = scmp.ne.s32.totalorder %s247, %s261
      %p263 = scmp.eq.s32.totalorder %s27, 0
      %p264 = por %p262, %p263
      %s266 = sadd.s32 %s265, 1
      %p269 = scmp.eq.s32.totalorder %s21, 1
      %p270 = scmp.ne.s32.totalorder %s265, %s267
      %p271 = scmp.eq.s32.totalorder %s21, 0
      %p272 = por %p270, %p271
      %p273 = scmp.ne.s32.totalorder %s265, %s267
      %p274 = scmp.eq.s32.totalorder %s26, 1
      %p275 = por %p273, %p274
      %p276 = scmp.ne.s32.totalorder %s267, %s268
      %p277 = scmp.eq.s32.totalorder %s26, 0
      %p278 = por %p276, %p277
      %p279 = scmp.ne.s32.totalorder %s267, %s268
      %p280 = scmp.eq.s32.totalorder %s27, 1
      %p281 = por %p279, %p280
      %p283 = scmp.ne.s32.totalorder %s268, %s282
      %p284 = scmp.eq.s32.totalorder %s27, 0
      %p285 = por %p283, %p284
      %s286 = ssub.s32 %s21, %s28
      %p287 = scmp.eq.s32.totalorder %s286, 0
      %s289 = sadd.s32 %s288, 1
      %s290 = scalar_select %p287, %s288, %s289
      %p293 = pneg %p287
      %p294 = scmp.eq.s32.totalorder %s21, 1
      %p295 = por %p293, %p294
      %p296 = scmp.ne.s32.totalorder %s288, %s291
      %p297 = scmp.eq.s32.totalorder %s21, 0
      %p298 = por %p296, %p297
      %p299 = scmp.ne.s32.totalorder %s288, %s291
      %p300 = scmp.eq.s32.totalorder %s26, 1
      %p301 = por %p299, %p300
      %p302 = scmp.ne.s32.totalorder %s291, %s292
      %p303 = scmp.eq.s32.totalorder %s26, 0
      %p304 = por %p302, %p303
      %p305 = scmp.ne.s32.totalorder %s291, %s292
      %p306 = scmp.eq.s32.totalorder %s27, 1
      %p307 = por %p305, %p306
      %p309 = scmp.ne.s32.totalorder %s292, %s308
      %p310 = scmp.eq.s32.totalorder %s27, 0
      %p311 = por %p309, %p310
      %p312 = scmp.le.s32.totalorder 1, %s21
      %p313 = scmp.lt.s32.totalorder %s21, 3
      %p314 = pnand %p312, %p313
      %p315 = pneg %p314
      // Predicated region
      $region9: #{_lambda_.1} parent=5 // pred_check
        _
      $region10: #{_lambda_.1} parent=5 // pred_check_branch
        %317 = sbr.rel (%p314) target = $region12
      $region11: #{_lambda_.1} parent=5 // pred_region
        %s318 = ssub.s32 %s21, 1
        // Predicated region
        $region13: #{_lambda_.1} parent=11 // pred_check
          %p319 = pneg %p68
        $region14: #{_lambda_.1} parent=11 // pred_check_branch
          %321 = sbr.rel (%p319) target = $region16
        $region15: #{_lambda_.1} parent=11 // pred_region
          %s323 = ssub.s32 9216, 9216
          %324 = vsyncadd [#allocation4], %s323
          %s325 = sshll.u32 [#allocation3], 4
          %s326 = int_to_ptr.vmem [resolvable:$true] %s325
          %331 = dma.hbm_to_vmem [thread:$0]  %s1, 9216, %s326, [#allocation4], 128, 128, 8
        $region16: #{_lambda_.1} parent=11 // pred_fallthru
          _
        // Predicated region
        $region17: #{_lambda_.1} parent=11 // pred_check
          %p332 = pneg %p89
        $region18: #{_lambda_.1} parent=11 // pred_check_branch
          %334 = sbr.rel (%p332) target = $region20
        $region19: #{_lambda_.1} parent=11 // pred_region
          _
        $region20: #{_lambda_.1} parent=11 // pred_fallthru
          _
        // Predicated region
        $region21: #{_lambda_.1} parent=11 // pred_check
          %p335 = pneg %p110
        $region22: #{_lambda_.1} parent=11 // pred_check_branch
          %337 = sbr.rel (%p335) target = $region24
        $region23: #{_lambda_.1} parent=11 // pred_region
          _
        $region24: #{_lambda_.1} parent=11 // pred_fallthru
          _
        // Predicated region
        $region25: #{_lambda_.1} parent=11 // pred_check
          %p338 = pneg %p131
        $region26: #{_lambda_.1} parent=11 // pred_check_branch
          %340 = sbr.rel (%p338) target = $region28
        $region27: #{_lambda_.1} parent=11 // pred_region
          _
        $region28: #{_lambda_.1} parent=11 // pred_fallthru
          _
        // Predicated region
        $region29: #{_lambda_.1} parent=11 // pred_check
          %p341 = pneg %p152
        $region30: #{_lambda_.1} parent=11 // pred_check_branch
          %343 = sbr.rel (%p341) target = $region32
        $region31: #{_lambda_.1} parent=11 // pred_region
          _
        $region32: #{_lambda_.1} parent=11 // pred_fallthru
          _
        // Predicated region
        $region33: #{_lambda_.1} parent=11 // pred_check
          %p344 = pneg %p173
        $region34: #{_lambda_.1} parent=11 // pred_check_branch
          %346 = sbr.rel (%p344) target = $region36
        $region35: #{_lambda_.1} parent=11 // pred_region
          _
        $region36: #{_lambda_.1} parent=11 // pred_fallthru
          _
        // Predicated region
        $region37: #{_lambda_.1} parent=11 // pred_check
          %p347 = pneg %p194
        $region38: #{_lambda_.1} parent=11 // pred_check_branch
          %349 = sbr.rel (%p347) target = $region40
        $region39: #{_lambda_.1} parent=11 // pred_region
          _
        $region40: #{_lambda_.1} parent=11 // pred_fallthru
          _
        // Predicated region
        $region41: #{_lambda_.1} parent=11 // pred_check
          %p350 = pneg %p215
        $region42: #{_lambda_.1} parent=11 // pred_check_branch
          %352 = sbr.rel (%p350) target = $region44
        $region43: #{_lambda_.1} parent=11 // pred_region
          _
        $region44: #{_lambda_.1} parent=11 // pred_fallthru
          _
        // Predicated region
        $region45: #{_lambda_.1} parent=11 // pred_check
          %p353 = pneg %p236
        $region46: #{_lambda_.1} parent=11 // pred_check_branch
          %355 = sbr.rel (%p353) target = $region48
        $region47: #{_lambda_.1} parent=11 // pred_region
          _
        $region48: #{_lambda_.1} parent=11 // pred_fallthru
          _
        // Predicated region
        $region49: #{_lambda_.1} parent=11 // pred_check
          %p356 = pneg %p257
        $region50: #{_lambda_.1} parent=11 // pred_check_branch
          %358 = sbr.rel (%p356) target = $region52
        $region51: #{_lambda_.1} parent=11 // pred_region
          _
        $region52: #{_lambda_.1} parent=11 // pred_fallthru
          _
        // Predicated region
        $region53: #{_lambda_.1} parent=11 // pred_check
          %p359 = pneg %p278
        $region54: #{_lambda_.1} parent=11 // pred_check_branch
          %361 = sbr.rel (%p359) target = $region56
        $region55: #{_lambda_.1} parent=11 // pred_region
          _
        $region56: #{_lambda_.1} parent=11 // pred_fallthru
          _
      $region12: #{_lambda_.1} parent=5 // pred_fallthru
        _
      %p362 = scmp.lt.s32.totalorder %s21, 2
      // Predicated region
      $region57: #{_lambda_.1} parent=5 // pred_check
        %p363 = pneg %p362
      $region58: #{_lambda_.1} parent=5 // pred_check_branch
        %365 = sbr.rel (%p363) target = $region60
      $region59: #{_lambda_.1} parent=5 // pred_region
        // Predicated region
        $region61: #{_lambda_.1} parent=59 // pred_check
          %p366 = pneg %p41
        $region62: #{_lambda_.1} parent=59 // pred_check_branch
          %368 = sbr.rel (%p366) target = $region64
        $region63: #{_lambda_.1} parent=59 // pred_region
          %s369 = smul.u32 32, %s21
          %p370 = scmp.lt.s32.totalorder %s369, 63
          %s371 = scalar_select %p370, %s369, 63
          %s372 = smul.addr %s371, 4
          %s373 = scalar_lea.vmem %s0, %s372
          %s374 = smul.u32 32, %s21
        $region64: #{_lambda_.1} parent=59 // pred_fallthru
          _
      $region60: #{_lambda_.1} parent=5 // pred_fallthru
        _
      %p375 = scmp.le.s32.totalorder 1, %s21
      %p376 = scmp.lt.s32.totalorder %s21, 3
      %p377 = pnand %p375, %p376
      %p378 = pneg %p377
      // Predicated region
      $region65: #{_lambda_.1} parent=5 // pred_check
        _
      $region66: #{_lambda_.1} parent=5 // pred_check_branch
        %380 = sbr.rel (%p377) target = $region68
      $region67: #{_lambda_.1} parent=5 // pred_region
        %s381 = ssub.s32 %s21, 1
        // Predicated region
        $region69: #{_lambda_.1} parent=67 // pred_check
          %p382 = pneg %p68
        $region70: #{_lambda_.1} parent=67 // pred_check_branch
          %384 = sbr.rel (%p382) target = $region72
        $region71: #{_lambda_.1} parent=67 // pred_region
          %385 = dma.done [#allocation4], 9216
        $region72: #{_lambda_.1} parent=67 // pred_fallthru
          _
        %s386 = smul.u32 32, %s26
        %p387 = scmp.lt.s32.totalorder %s386, 63
        %s388 = scalar_select %p387, %s386, 63
        %s389 = smul.addr %s388, 4
        %s390 = scalar_lea.vmem %s0, %s389
        %p391 = pneg %p47
        %p392 = pneg %p44
        %p393 = pneg %p68
        %p394 = pneg %p65
        %p395 = pneg %p89
        %p396 = pneg %p86
        %p397 = pneg %p110
        %p398 = pneg %p107
        %p399 = pneg %p131
        %p400 = pneg %p128
        %p401 = pneg %p152
        %p402 = pneg %p149
        %p403 = pneg %p173
        %p404 = pneg %p170
        %p405 = pneg %p194
        %p406 = pneg %p191
        %p407 = pneg %p215
        %p408 = pneg %p212
        %p409 = pneg %p236
        %p410 = pneg %p233
        %p411 = pneg %p257
        %p412 = pneg %p254
        %p413 = pneg %p278
        %p414 = pneg %p275
        %p415 = pneg %p304
        %p416 = pneg %p301
        %p417 = scmp.lt.s32.totalorder %s26, 1
        %s418 = scalar_select %p417, %s26, 1
        %s419 = smul.addr %s418, 4
        %s420 = scalar_lea.vmem %s12, %s419
        %s421 = smul.u32 32, %s26
        %p422 = scmp.lt.s32.totalorder %s421, 63
        %s423 = scalar_select %p422, %s421, 63
        %s424 = smul.addr %s423, 4
        %s425 = scalar_lea.vmem %s0, %s424
        %s426 = smul.u32 32, %s26
        %p427 = scmp.lt.s32.totalorder %s26, 1
        %s428 = scalar_select %p427, %s26, 1
        %s429 = smul.addr %s428, 4
        %s430 = scalar_lea.vmem %s12, %s429
        %v432 = vld [vmem:[%s425] sm:$0xf]
        %v433 = vld [vmem:[%s425 + $0x4] sm:$0xf]
        %v434 = vld [vmem:[%s425 + $0x8] sm:$0xf]
        %v435 = vld [vmem:[%s425 + $0xc] sm:$0xf]
        %v436 = vld [vmem:[%s425 + $0x10] sm:$0xf]
        %v437 = vld [vmem:[%s425 + $0x14] sm:$0xf]
        %v438 = vld [vmem:[%s425 + $0x18] sm:$0xf]
        %v439 = vld [vmem:[%s425 + $0x1c] sm:$0xf]
        %v440 = vld [vmem:[%s425 + $0x20] sm:$0xf]
        %v441 = vld [vmem:[%s425 + $0x24] sm:$0xf]
        %v442 = vld [vmem:[%s425 + $0x28] sm:$0xf]
        %v443 = vld [vmem:[%s425 + $0x2c] sm:$0xf]
        %v444 = vld [vmem:[%s425 + $0x30] sm:$0xf]
        %v445 = vld [vmem:[%s425 + $0x34] sm:$0xf]
        %v446 = vld [vmem:[%s425 + $0x38] sm:$0xf]
        %v447 = vld [vmem:[%s425 + $0x3c] sm:$0xf]
        %v448 = vld [vmem:[%s425 + $0x40] sm:$0xf]
        %v449 = vld [vmem:[%s425 + $0x44] sm:$0xf]
        %v450 = vld [vmem:[%s425 + $0x48] sm:$0xf]
        %v451 = vld [vmem:[%s425 + $0x4c] sm:$0xf]
        %v452 = vld [vmem:[%s425 + $0x50] sm:$0xf]
        %v453 = vld [vmem:[%s425 + $0x54] sm:$0xf]
        %v454 = vld [vmem:[%s425 + $0x58] sm:$0xf]
        %v455 = vld [vmem:[%s425 + $0x5c] sm:$0xf]
        %v456 = vld [vmem:[%s425 + $0x60] sm:$0xf]
        %v457 = vld [vmem:[%s425 + $0x64] sm:$0xf]
        %v458 = vld [vmem:[%s425 + $0x68] sm:$0xf]
        %v459 = vld [vmem:[%s425 + $0x6c] sm:$0xf]
        %v460 = vld [vmem:[%s425 + $0x70] sm:$0xf]
        %v461 = vld [vmem:[%s425 + $0x74] sm:$0xf]
        %v462 = vld [vmem:[%s425 + $0x78] sm:$0xf]
        %v463 = vld [vmem:[%s425 + $0x7c] sm:$0xf]
        %v464 = vld [vmem:[#allocation3] sm:$0xff]
        %v465 = vld [vmem:[#allocation3 + $0x8] sm:$0xff]
        %v466 = vld [vmem:[#allocation3 + $0x10] sm:$0xff]
        %v467 = vld [vmem:[#allocation3 + $0x18] sm:$0xff]
        %v468 = vld [vmem:[#allocation3 + $0x20] sm:$0xff]
        %v469 = vld [vmem:[#allocation3 + $0x28] sm:$0xff]
        %v470 = vld [vmem:[#allocation3 + $0x30] sm:$0xff]
        %v471 = vld [vmem:[#allocation3 + $0x38] sm:$0xff]
        %v480 = vunpack.c.l.b16 %v464
        %v481 = vunpack.c.h.b16 %v464
        %v482 = vunpack.c.l.b16 %v465
        %v483 = vunpack.c.h.b16 %v465
        %v484 = vunpack.c.l.b16 %v466
        %v485 = vunpack.c.h.b16 %v466
        %v486 = vunpack.c.l.b16 %v467
        %v487 = vunpack.c.h.b16 %v467
        %v488 = vunpack.c.l.b16 %v468
        %v489 = vunpack.c.h.b16 %v468
        %v490 = vunpack.c.l.b16 %v469
        %v491 = vunpack.c.h.b16 %v469
        %v492 = vunpack.c.l.b16 %v470
        %v493 = vunpack.c.h.b16 %v470
        %v494 = vunpack.c.l.b16 %v471
        %v495 = vunpack.c.h.b16 %v471
        %v496 = vpack.c.b16 %v482, %v480
        %v497 = vpack.c.b16 %v483, %v481
        %v498 = vpack.c.b16 %v486, %v484
        %v499 = vpack.c.b16 %v487, %v485
        %v500 = vpack.c.b16 %v490, %v488
        %v501 = vpack.c.b16 %v491, %v489
        %v502 = vpack.c.b16 %v494, %v492
        %v503 = vpack.c.b16 %v495, %v493
        %v544 = vunpack.c.l.b16 %v432
        %v545 = vunpack.c.l.b16 %v433
        %v546 = vunpack.c.l.b16 %v434
        %v547 = vunpack.c.l.b16 %v435
        %v548 = vunpack.c.l.b16 %v436
        %v549 = vunpack.c.l.b16 %v437
        %v550 = vunpack.c.l.b16 %v438
        %v551 = vunpack.c.l.b16 %v439
        %v552 = vunpack.c.l.b16 %v440
        %v553 = vunpack.c.l.b16 %v441
        %v554 = vunpack.c.l.b16 %v442
        %v555 = vunpack.c.l.b16 %v443
        %v556 = vunpack.c.l.b16 %v444
        %v557 = vunpack.c.l.b16 %v445
        %v558 = vunpack.c.l.b16 %v446
        %v559 = vunpack.c.l.b16 %v447
        %v560 = vunpack.c.l.b16 %v448
        %v561 = vunpack.c.l.b16 %v449
        %v562 = vunpack.c.l.b16 %v450
        %v563 = vunpack.c.l.b16 %v451
        %v564 = vunpack.c.l.b16 %v452
        %v565 = vunpack.c.l.b16 %v453
        %v566 = vunpack.c.l.b16 %v454
        %v567 = vunpack.c.l.b16 %v455
        %v568 = vunpack.c.l.b16 %v456
        %v569 = vunpack.c.l.b16 %v457
        %v570 = vunpack.c.l.b16 %v458
        %v571 = vunpack.c.l.b16 %v459
        %v572 = vunpack.c.l.b16 %v460
        %v573 = vunpack.c.l.b16 %v461
        %v574 = vunpack.c.l.b16 %v462
        %v575 = vunpack.c.l.b16 %v463
        %v576 = vpack.c.b16 %v545, %v544
        %v577 = vpack.c.b16 %v547, %v546
        %v578 = vpack.c.b16 %v549, %v548
        %v579 = vpack.c.b16 %v551, %v550
        %v580 = vpack.c.b16 %v553, %v552
        %v581 = vpack.c.b16 %v555, %v554
        %v582 = vpack.c.b16 %v557, %v556
        %v583 = vpack.c.b16 %v559, %v558
        %v584 = vpack.c.b16 %v561, %v560
        %v585 = vpack.c.b16 %v563, %v562
        %v586 = vpack.c.b16 %v565, %v564
        %v587 = vpack.c.b16 %v567, %v566
        %v588 = vpack.c.b16 %v569, %v568
        %v589 = vpack.c.b16 %v571, %v570
        %v590 = vpack.c.b16 %v573, %v572
        %v591 = vpack.c.b16 %v575, %v574
        %608 = vmatprep.subr.bf16.mxu0 0
        %609 = vmatpush1.bf16.msra.mxu0 %v583
        %610 = vmatprep.subr.bf16.mxu0 0
        %611 = vmatpush1.bf16.msra.mxu0 %v582
        %612 = vmatprep.subr.bf16.mxu0 0
        %613 = vmatpush1.bf16.msra.mxu0 %v581
        %614 = vmatprep.subr.bf16.mxu0 0
        %615 = vmatpush1.bf16.msra.mxu0 %v580
        %616 = vmatprep.subr.bf16.mxu0 0
        %617 = vmatpush1.bf16.msra.mxu0 %v579
        %618 = vmatprep.subr.bf16.mxu0 0
        %619 = vmatpush1.bf16.msra.mxu0 %v578
        %620 = vmatprep.subr.bf16.mxu0 0
        %621 = vmatpush1.bf16.msra.mxu0 %v577
        %622 = vmatprep.subr.bf16.mxu0 0
        %623 = vmatpush1.bf16.msra.mxu0 %v576
        %624 = vmatprep.subr.bf16.mxu0 0
        %625 = vmatpush2.bf16.msra.mxu0 %v591
        %626 = vmatprep.subr.bf16.mxu0 0
        %627 = vmatpush2.bf16.msra.mxu0 %v590
        %628 = vmatprep.subr.bf16.mxu0 0
        %629 = vmatpush2.bf16.msra.mxu0 %v589
        %630 = vmatprep.subr.bf16.mxu0 0
        %631 = vmatpush2.bf16.msra.mxu0 %v588
        %632 = vmatprep.subr.bf16.mxu0 0
        %633 = vmatpush2.bf16.msra.mxu0 %v587
        %634 = vmatprep.subr.bf16.mxu0 0
        %635 = vmatpush2.bf16.msra.mxu0 %v586
        %636 = vmatprep.subr.bf16.mxu0 0
        %637 = vmatpush2.bf16.msra.mxu0 %v585
        %638 = vmatprep.subr.bf16.mxu0 0
        %639 = vmatpush2.bf16.msra.mxu0 %v584
        %640 = vmatprep.mubr.bf16.mxu0 %v497
        %641 = vmatmul.mubr.bf16.gmra.mxu0 %v496
        %v642 = vpop.f32.mrf.mxu0
        %v643 = vadd.f32 0.0, %v642
        %v644 = vpop.f32.mrf.mxu0
        %v645 = vpop.f32.mrf.mxu0
        %v646 = vadd.f32 0.0, %v645
        %v647 = vpop.f32.mrf.mxu0
        %648 = vmatprep.mubr.bf16.mxu0 %v499
        %649 = vmatmul.mubr.bf16.gmra.mxu0 %v498
        %v650 = vpop.f32.mrf.mxu0
        %v651 = vadd.f32 0.0, %v650
        %v652 = vpop.f32.mrf.mxu0
        %v653 = vpop.f32.mrf.mxu0
        %v654 = vadd.f32 0.0, %v653
        %v655 = vpop.f32.mrf.mxu0
        %656 = vmatprep.mubr.bf16.mxu0 %v501
        %657 = vmatmul.mubr.bf16.gmra.mxu0 %v500
        %v658 = vpop.f32.mrf.mxu0
        %v659 = vadd.f32 0.0, %v658
        %v660 = vpop.f32.mrf.mxu0
        %v661 = vpop.f32.mrf.mxu0
        %v662 = vadd.f32 0.0, %v661
        %v663 = vpop.f32.mrf.mxu0
        %664 = vmatprep.mubr.bf16.mxu0 %v503
        %665 = vmatmul.mubr.bf16.gmra.mxu0 %v502
        %v666 = vpop.f32.mrf.mxu0
        %v667 = vadd.f32 0.0, %v666
        %v668 = vpop.f32.mrf.mxu0
        %v669 = vpop.f32.mrf.mxu0
        %v670 = vadd.f32 0.0, %v669
        %v671 = vpop.f32.mrf.mxu0
        %672 = vdwg.mxu0
        %v673 = vpack.c.bf16 %v646, %v643
        %v674 = vpack.c.bf16 %v654, %v651
        %v675 = vpack.c.bf16 %v662, %v659
        %v676 = vpack.c.bf16 %v670, %v667
        %v677 = vld [vmem:[%s2] sm:$0x3]
        %s678 = scalar_lea.vmem [#allocation3], 64
        %v679 = vld [vmem:[%s678] sm:$0xff]
        %v680 = vld [vmem:[%s678 + $0x8] sm:$0xff]
        %v681 = vld [vmem:[%s678 + $0x10] sm:$0xff]
        %v682 = vld [vmem:[%s678 + $0x18] sm:$0xff]
        %v683 = vld [vmem:[%s678 + $0x20] sm:$0xff]
        %v684 = vld [vmem:[%s678 + $0x28] sm:$0xff]
        %v685 = vld [vmem:[%s678 + $0x30] sm:$0xff]
        %v686 = vld [vmem:[%s678 + $0x38] sm:$0xff]
        %v695 = vunpack.c.l.b16 %v679
        %v696 = vunpack.c.h.b16 %v679
        %v697 = vunpack.c.l.b16 %v680
        %v698 = vunpack.c.h.b16 %v680
        %v699 = vunpack.c.l.b16 %v681
        %v700 = vunpack.c.h.b16 %v681
        %v701 = vunpack.c.l.b16 %v682
        %v702 = vunpack.c.h.b16 %v682
        %v703 = vunpack.c.l.b16 %v683
        %v704 = vunpack.c.h.b16 %v683
        %v705 = vunpack.c.l.b16 %v684
        %v706 = vunpack.c.h.b16 %v684
        %v707 = vunpack.c.l.b16 %v685
        %v708 = vunpack.c.h.b16 %v685
        %v709 = vunpack.c.l.b16 %v686
        %v710 = vunpack.c.h.b16 %v686
        %v711 = vpack.c.b16 %v697, %v695
        %v712 = vpack.c.b16 %v698, %v696
        %v713 = vpack.c.b16 %v701, %v699
        %v714 = vpack.c.b16 %v702, %v700
        %v715 = vpack.c.b16 %v705, %v703
        %v716 = vpack.c.b16 %v706, %v704
        %v717 = vpack.c.b16 %v709, %v707
        %v718 = vpack.c.b16 %v710, %v708
        %727 = vmatprep.subr.bf16.mxu0 0
        %728 = vmatpush1.bf16.msra.mxu0 %v583
        %729 = vmatprep.subr.bf16.mxu0 0
        %730 = vmatpush1.bf16.msra.mxu0 %v582
        %731 = vmatprep.subr.bf16.mxu0 0
        %732 = vmatpush1.bf16.msra.mxu0 %v581
        %733 = vmatprep.subr.bf16.mxu0 0
        %734 = vmatpush1.bf16.msra.mxu0 %v580
        %735 = vmatprep.subr.bf16.mxu0 0
        %736 = vmatpush1.bf16.msra.mxu0 %v579
        %737 = vmatprep.subr.bf16.mxu0 0
        %738 = vmatpush1.bf16.msra.mxu0 %v578
        %739 = vmatprep.subr.bf16.mxu0 0
        %740 = vmatpush1.bf16.msra.mxu0 %v577
        %741 = vmatprep.subr.bf16.mxu0 0
        %742 = vmatpush1.bf16.msra.mxu0 %v576
        %743 = vmatprep.subr.bf16.mxu0 0
        %744 = vmatpush2.bf16.msra.mxu0 %v591
        %745 = vmatprep.subr.bf16.mxu0 0
        %746 = vmatpush2.bf16.msra.mxu0 %v590
        %747 = vmatprep.subr.bf16.mxu0 0
        %748 = vmatpush2.bf16.msra.mxu0 %v589
        %749 = vmatprep.subr.bf16.mxu0 0
        %750 = vmatpush2.bf16.msra.mxu0 %v588
        %751 = vmatprep.subr.bf16.mxu0 0
        %752 = vmatpush2.bf16.msra.mxu0 %v587
        %753 = vmatprep.subr.bf16.mxu0 0
        %754 = vmatpush2.bf16.msra.mxu0 %v586
        %755 = vmatprep.subr.bf16.mxu0 0
        %756 = vmatpush2.bf16.msra.mxu0 %v585
        %757 = vmatprep.subr.bf16.mxu0 0
        %758 = vmatpush2.bf16.msra.mxu0 %v584
        %759 = vmatprep.mubr.bf16.mxu0 %v712
        %760 = vmatmul.mubr.bf16.gmra.mxu0 %v711
        %v761 = vpop.f32.mrf.mxu0
        %v762 = vadd.f32 0.0, %v761
        %v763 = vpop.f32.mrf.mxu0
        %v764 = vpop.f32.mrf.mxu0
        %v765 = vadd.f32 0.0, %v764
        %v766 = vpop.f32.mrf.mxu0
        %767 = vmatprep.mubr.bf16.mxu0 %v714
        %768 = vmatmul.mubr.bf16.gmra.mxu0 %v713
        %v769 = vpop.f32.mrf.mxu0
        %v770 = vadd.f32 0.0, %v769
        %v771 = vpop.f32.mrf.mxu0
        %v772 = vpop.f32.mrf.mxu0
        %v773 = vadd.f32 0.0, %v772
        %v774 = vpop.f32.mrf.mxu0
        %775 = vmatprep.mubr.bf16.mxu0 %v716
        %776 = vmatmul.mubr.bf16.gmra.mxu0 %v715
        %v777 = vpop.f32.mrf.mxu0
        %v778 = vadd.f32 0.0, %v777
        %v779 = vpop.f32.mrf.mxu0
        %v780 = vpop.f32.mrf.mxu0
        %v781 = vadd.f32 0.0, %v780
        %v782 = vpop.f32.mrf.mxu0
        %783 = vmatprep.mubr.bf16.mxu0 %v718
        %784 = vmatmul.mubr.bf16.gmra.mxu0 %v717
        %v785 = vpop.f32.mrf.mxu0
        %v786 = vadd.f32 0.0, %v785
        %v787 = vpop.f32.mrf.mxu0
        %v788 = vpop.f32.mrf.mxu0
        %v789 = vadd.f32 0.0, %v788
        %v790 = vpop.f32.mrf.mxu0
        %791 = vdwg.mxu0
        %v792 = vpack.c.bf16 %v765, %v762
        %v793 = vpack.c.bf16 %v773, %v770
        %v794 = vpack.c.bf16 %v781, %v778
        %v795 = vpack.c.bf16 %v789, %v786
        %s796 = scalar_lea.vmem %s2, 2
        %v797 = vld [vmem:[%s796] sm:$0x3]
        %vm798 = vcmask 31744
        %v800 = vsel %vm798, %v792, 0
        %v803 = vsel %vm798, %v793, 0
        %v806 = vsel %vm798, %v794, 0
        %v809 = vsel %vm798, %v795, 0
        %vm811 = vcmask 1041408
        %v813 = vsel %vm811, %v797, 0
        %815 = vmatprep.subr.bf16.mxu0 0
        %816 = vmatpush1.bf16.msra.mxu0 0
        %817 = vmatprep.subr.bf16.mxu0 0
        %818 = vmatpush1.bf16.msra.mxu0 0
        %819 = vmatprep.subr.bf16.mxu0 0
        %820 = vmatpush1.bf16.msra.mxu0 0
        %821 = vmatprep.subr.bf16.mxu0 0
        %822 = vmatpush1.bf16.msra.mxu0 0
        %823 = vmatprep.subr.bf16.mxu0 0
        %824 = vmatpush1.bf16.msra.mxu0 0
        %825 = vmatprep.subr.bf16.mxu0 0
        %826 = vmatpush1.bf16.msra.mxu0 0
        %827 = vmatprep.subr.bf16.mxu0 0
        %828 = vmatpush1.bf16.msra.mxu0 0
        %829 = vmatprep.subr.bf16.mxu0 0
        %830 = vmatpush1.bf16.msra.mxu0 %v813
        %831 = vmatprep.subr.bf16.mxu0 0
        %832 = vmatpush2.bf16.msra.mxu0 0
        %833 = vmatprep.subr.bf16.mxu0 0
        %834 = vmatpush2.bf16.msra.mxu0 0
        %835 = vmatprep.subr.bf16.mxu0 0
        %836 = vmatpush2.bf16.msra.mxu0 0
        %837 = vmatprep.subr.bf16.mxu0 0
        %838 = vmatpush2.bf16.msra.mxu0 0
        %839 = vmatprep.subr.bf16.mxu0 0
        %840 = vmatpush2.bf16.msra.mxu0 0
        %841 = vmatprep.subr.bf16.mxu0 0
        %842 = vmatpush2.bf16.msra.mxu0 0
        %843 = vmatprep.subr.bf16.mxu0 0
        %844 = vmatpush2.bf16.msra.mxu0 0
        %845 = vmatprep.subr.bf16.mxu0 0
        %846 = vmatpush2.bf16.msra.mxu0 0
        %847 = vmatprep.mubr.bf16.mxu0 0
        %848 = vmatmul.mubr.bf16.gmra.mxu0 %v800
        %v849 = vpop.f32.mrf.mxu0
        %v850 = vadd.f32 0.0, %v849
        %v851 = vpop.f32.mrf.mxu0
        %v852 = vpop.f32.mrf.mxu0
        %v853 = vadd.f32 0.0, %v852
        %v854 = vpop.f32.mrf.mxu0
        %855 = vmatprep.mubr.bf16.mxu0 0
        %856 = vmatmul.mubr.bf16.gmra.mxu0 %v803
        %v857 = vpop.f32.mrf.mxu0
        %v858 = vadd.f32 0.0, %v857
        %v859 = vpop.f32.mrf.mxu0
        %v860 = vpop.f32.mrf.mxu0
        %v861 = vadd.f32 0.0, %v860
        %v862 = vpop.f32.mrf.mxu0
        %863 = vmatprep.mubr.bf16.mxu0 0
        %864 = vmatmul.mubr.bf16.gmra.mxu0 %v806
        %v865 = vpop.f32.mrf.mxu0
        %v866 = vadd.f32 0.0, %v865
        %v867 = vpop.f32.mrf.mxu0
        %v868 = vpop.f32.mrf.mxu0
        %v869 = vadd.f32 0.0, %v868
        %v870 = vpop.f32.mrf.mxu0
        %871 = vmatprep.mubr.bf16.mxu0 0
        %872 = vmatmul.mubr.bf16.gmra.mxu0 %v809
        %v873 = vpop.f32.mrf.mxu0
        %v874 = vadd.f32 0.0, %v873
        %v875 = vpop.f32.mrf.mxu0
        %v876 = vpop.f32.mrf.mxu0
        %v877 = vadd.f32 0.0, %v876
        %v878 = vpop.f32.mrf.mxu0
        %879 = vdwg.mxu0
        %v881 = vsel %vm798, %v673, 0
        %v884 = vsel %vm798, %v674, 0
        %v887 = vsel %vm798, %v675, 0
        %v890 = vsel %vm798, %v676, 0
        %v893 = vsel %vm811, %v677, 0
        %895 = vmatprep.subr.bf16.mxu0 0
        %896 = vmatpush1.bf16.msra.mxu0 0
        %897 = vmatprep.subr.bf16.mxu0 0
        %898 = vmatpush1.bf16.msra.mxu0 0
        %899 = vmatprep.subr.bf16.mxu0 0
        %900 = vmatpush1.bf16.msra.mxu0 0
        %901 = vmatprep.subr.bf16.mxu0 0
        %902 = vmatpush1.bf16.msra.mxu0 0
        %903 = vmatprep.subr.bf16.mxu0 0
        %904 = vmatpush1.bf16.msra.mxu0 0
        %905 = vmatprep.subr.bf16.mxu0 0
        %906 = vmatpush1.bf16.msra.mxu0 0
        %907 = vmatprep.subr.bf16.mxu0 0
        %908 = vmatpush1.bf16.msra.mxu0 0
        %909 = vmatprep.subr.bf16.mxu0 0
        %910 = vmatpush1.bf16.msra.mxu0 %v893
        %911 = vmatprep.subr.bf16.mxu0 0
        %912 = vmatpush2.bf16.msra.mxu0 0
        %913 = vmatprep.subr.bf16.mxu0 0
        %914 = vmatpush2.bf16.msra.mxu0 0
        %915 = vmatprep.subr.bf16.mxu0 0
        %916 = vmatpush2.bf16.msra.mxu0 0
        %917 = vmatprep.subr.bf16.mxu0 0
        %918 = vmatpush2.bf16.msra.mxu0 0
        %919 = vmatprep.subr.bf16.mxu0 0
        %920 = vmatpush2.bf16.msra.mxu0 0
        %921 = vmatprep.subr.bf16.mxu0 0
        %922 = vmatpush2.bf16.msra.mxu0 0
        %923 = vmatprep.subr.bf16.mxu0 0
        %924 = vmatpush2.bf16.msra.mxu0 0
        %925 = vmatprep.subr.bf16.mxu0 0
        %926 = vmatpush2.bf16.msra.mxu0 0
        %927 = vmatprep.mubr.bf16.mxu0 0
        %928 = vmatmul.mubr.bf16.gmra.mxu0 %v881
        %v929 = vpop.f32.mrf.mxu0
        %v930 = vadd.f32 %v850, %v929
        %v931 = vpop.f32.mrf.mxu0
        %v932 = vpop.f32.mrf.mxu0
        %v933 = vadd.f32 %v853, %v932
        %v934 = vpop.f32.mrf.mxu0
        %935 = vmatprep.mubr.bf16.mxu0 0
        %936 = vmatmul.mubr.bf16.gmra.mxu0 %v884
        %v937 = vpop.f32.mrf.mxu0
        %v938 = vadd.f32 %v858, %v937
        %v939 = vpop.f32.mrf.mxu0
        %v940 = vpop.f32.mrf.mxu0
        %v941 = vadd.f32 %v861, %v940
        %v942 = vpop.f32.mrf.mxu0
        %943 = vmatprep.mubr.bf16.mxu0 0
        %944 = vmatmul.mubr.bf16.gmra.mxu0 %v887
        %v945 = vpop.f32.mrf.mxu0
        %v946 = vadd.f32 %v866, %v945
        %v947 = vpop.f32.mrf.mxu0
        %v948 = vpop.f32.mrf.mxu0
        %v949 = vadd.f32 %v869, %v948
        %v950 = vpop.f32.mrf.mxu0
        %951 = vmatprep.mubr.bf16.mxu0 0
        %952 = vmatmul.mubr.bf16.gmra.mxu0 %v890
        %v953 = vpop.f32.mrf.mxu0
        %v954 = vadd.f32 %v874, %v953
        %v955 = vpop.f32.mrf.mxu0
        %v956 = vpop.f32.mrf.mxu0
        %v957 = vadd.f32 %v877, %v956
        %v958 = vpop.f32.mrf.mxu0
        %959 = vdwg.mxu0
        %s960 = scalar_lea.vmem [#allocation3], 128
        %v961 = vld [vmem:[%s960] sm:$0xff]
        %v962 = vld [vmem:[%s960 + $0x8] sm:$0xff]
        %v963 = vld [vmem:[%s960 + $0x10] sm:$0xff]
        %v964 = vld [vmem:[%s960 + $0x18] sm:$0xff]
        %v965 = vld [vmem:[%s960 + $0x20] sm:$0xff]
        %v966 = vld [vmem:[%s960 + $0x28] sm:$0xff]
        %v967 = vld [vmem:[%s960 + $0x30] sm:$0xff]
        %v968 = vld [vmem:[%s960 + $0x38] sm:$0xff]
        %v977 = vunpack.c.l.b16 %v961
        %v978 = vunpack.c.h.b16 %v961
        %v979 = vunpack.c.l.b16 %v962
        %v980 = vunpack.c.h.b16 %v962
        %v981 = vunpack.c.l.b16 %v963
        %v982 = vunpack.c.h.b16 %v963
        %v983 = vunpack.c.l.b16 %v964
        %v984 = vunpack.c.h.b16 %v964
        %v985 = vunpack.c.l.b16 %v965
        %v986 = vunpack.c.h.b16 %v965
        %v987 = vunpack.c.l.b16 %v966
        %v988 = vunpack.c.h.b16 %v966
        %v989 = vunpack.c.l.b16 %v967
        %v990 = vunpack.c.h.b16 %v967
        %v991 = vunpack.c.l.b16 %v968
        %v992 = vunpack.c.h.b16 %v968
        %v993 = vpack.c.b16 %v979, %v977
        %v994 = vpack.c.b16 %v980, %v978
        %v995 = vpack.c.b16 %v983, %v981
        %v996 = vpack.c.b16 %v984, %v982
        %v997 = vpack.c.b16 %v987, %v985
        %v998 = vpack.c.b16 %v988, %v986
        %v999 = vpack.c.b16 %v991, %v989
        %v1000 = vpack.c.b16 %v992, %v990
        %1009 = vmatprep.subr.bf16.mxu0 0
        %1010 = vmatpush1.bf16.msra.mxu0 %v583
        %1011 = vmatprep.subr.bf16.mxu0 0
        %1012 = vmatpush1.bf16.msra.mxu0 %v582
        %1013 = vmatprep.subr.bf16.mxu0 0
        %1014 = vmatpush1.bf16.msra.mxu0 %v581
        %1015 = vmatprep.subr.bf16.mxu0 0
        %1016 = vmatpush1.bf16.msra.mxu0 %v580
        %1017 = vmatprep.subr.bf16.mxu0 0
        %1018 = vmatpush1.bf16.msra.mxu0 %v579
        %1019 = vmatprep.subr.bf16.mxu0 0
        %1020 = vmatpush1.bf16.msra.mxu0 %v578
        %1021 = vmatprep.subr.bf16.mxu0 0
        %1022 = vmatpush1.bf16.msra.mxu0 %v577
        %1023 = vmatprep.subr.bf16.mxu0 0
        %1024 = vmatpush1.bf16.msra.mxu0 %v576
        %1025 = vmatprep.subr.bf16.mxu0 0
        %1026 = vmatpush2.bf16.msra.mxu0 %v591
        %1027 = vmatprep.subr.bf16.mxu0 0
        %1028 = vmatpush2.bf16.msra.mxu0 %v590
        %1029 = vmatprep.subr.bf16.mxu0 0
        %1030 = vmatpush2.bf16.msra.mxu0 %v589
        %1031 = vmatprep.subr.bf16.mxu0 0
        %1032 = vmatpush2.bf16.msra.mxu0 %v588
        %1033 = vmatprep.subr.bf16.mxu0 0
        %1034 = vmatpush2.bf16.msra.mxu0 %v587
        %1035 = vmatprep.subr.bf16.mxu0 0
        %1036 = vmatpush2.bf16.msra.mxu0 %v586
        %1037 = vmatprep.subr.bf16.mxu0 0
        %1038 = vmatpush2.bf16.msra.mxu0 %v585
        %1039 = vmatprep.subr.bf16.mxu0 0
        %1040 = vmatpush2.bf16.msra.mxu0 %v584
        %1041 = vmatprep.mubr.bf16.mxu0 %v994
        %1042 = vmatmul.mubr.bf16.gmra.mxu0 %v993
        %v1043 = vpop.f32.mrf.mxu0
        %v1044 = vadd.f32 0.0, %v1043
        %v1045 = vpop.f32.mrf.mxu0
        %v1046 = vpop.f32.mrf.mxu0
        %v1047 = vadd.f32 0.0, %v1046
        %v1048 = vpop.f32.mrf.mxu0
        %1049 = vmatprep.mubr.bf16.mxu0 %v996
        %1050 = vmatmul.mubr.bf16.gmra.mxu0 %v995
        %v1051 = vpop.f32.mrf.mxu0
        %v1052 = vadd.f32 0.0, %v1051
        %v1053 = vpop.f32.mrf.mxu0
        %v1054 = vpop.f32.mrf.mxu0
        %v1055 = vadd.f32 0.0, %v1054
        %v1056 = vpop.f32.mrf.mxu0
        %1057 = vmatprep.mubr.bf16.mxu0 %v998
        %1058 = vmatmul.mubr.bf16.gmra.mxu0 %v997
        %v1059 = vpop.f32.mrf.mxu0
        %v1060 = vadd.f32 0.0, %v1059
        %v1061 = vpop.f32.mrf.mxu0
        %v1062 = vpop.f32.mrf.mxu0
        %v1063 = vadd.f32 0.0, %v1062
        %v1064 = vpop.f32.mrf.mxu0
        %1065 = vmatprep.mubr.bf16.mxu0 %v1000
        %1066 = vmatmul.mubr.bf16.gmra.mxu0 %v999
        %v1067 = vpop.f32.mrf.mxu0
        %v1068 = vadd.f32 0.0, %v1067
        %v1069 = vpop.f32.mrf.mxu0
        %v1070 = vpop.f32.mrf.mxu0
        %v1071 = vadd.f32 0.0, %v1070
        %v1072 = vpop.f32.mrf.mxu0
        %1073 = vdwg.mxu0
        %v1074 = vpack.c.bf16 %v1047, %v1044
        %v1075 = vpack.c.bf16 %v1055, %v1052
        %v1076 = vpack.c.bf16 %v1063, %v1060
        %v1077 = vpack.c.bf16 %v1071, %v1068
        %s1078 = scalar_lea.vmem %s2, 4
        %v1079 = vld [vmem:[%s1078] sm:$0x3]
        %v1081 = vsel %vm798, %v1074, 0
        %v1084 = vsel %vm798, %v1075, 0
        %v1087 = vsel %vm798, %v1076, 0
        %v1090 = vsel %vm798, %v1077, 0
        %v1093 = vsel %vm811, %v1079, 0
        %1095 = vmatprep.subr.bf16.mxu0 0
        %1096 = vmatpush1.bf16.msra.mxu0 0
        %1097 = vmatprep.subr.bf16.mxu0 0
        %1098 = vmatpush1.bf16.msra.mxu0 0
        %1099 = vmatprep.subr.bf16.mxu0 0
        %1100 = vmatpush1.bf16.msra.mxu0 0
        %1101 = vmatprep.subr.bf16.mxu0 0
        %1102 = vmatpush1.bf16.msra.mxu0 0
        %1103 = vmatprep.subr.bf16.mxu0 0
        %1104 = vmatpush1.bf16.msra.mxu0 0
        %1105 = vmatprep.subr.bf16.mxu0 0
        %1106 = vmatpush1.bf16.msra.mxu0 0
        %1107 = vmatprep.subr.bf16.mxu0 0
        %1108 = vmatpush1.bf16.msra.mxu0 0
        %1109 = vmatprep.subr.bf16.mxu0 0
        %1110 = vmatpush1.bf16.msra.mxu0 %v1093
        %1111 = vmatprep.subr.bf16.mxu0 0
        %1112 = vmatpush2.bf16.msra.mxu0 0
        %1113 = vmatprep.subr.bf16.mxu0 0
        %1114 = vmatpush2.bf16.msra.mxu0 0
        %1115 = vmatprep.subr.bf16.mxu0 0
        %1116 = vmatpush2.bf16.msra.mxu0 0
        %1117 = vmatprep.subr.bf16.mxu0 0
        %1118 = vmatpush2.bf16.msra.mxu0 0
        %1119 = vmatprep.subr.bf16.mxu0 0
        %1120 = vmatpush2.bf16.msra.mxu0 0
        %1121 = vmatprep.subr.bf16.mxu0 0
        %1122 = vmatpush2.bf16.msra.mxu0 0
        %1123 = vmatprep.subr.bf16.mxu0 0
        %1124 = vmatpush2.bf16.msra.mxu0 0
        %1125 = vmatprep.subr.bf16.mxu0 0
        %1126 = vmatpush2.bf16.msra.mxu0 0
        %1127 = vmatprep.mubr.bf16.mxu0 0
        %1128 = vmatmul.mubr.bf16.gmra.mxu0 %v1081
        %v1129 = vpop.f32.mrf.mxu0
        %v1130 = vadd.f32 0.0, %v1129
        %v1131 = vpop.f32.mrf.mxu0
        %v1132 = vpop.f32.mrf.mxu0
        %v1133 = vadd.f32 0.0, %v1132
        %v1134 = vpop.f32.mrf.mxu0
        %1135 = vmatprep.mubr.bf16.mxu0 0
        %1136 = vmatmul.mubr.bf16.gmra.mxu0 %v1084
        %v1137 = vpop.f32.mrf.mxu0
        %v1138 = vadd.f32 0.0, %v1137
        %v1139 = vpop.f32.mrf.mxu0
        %v1140 = vpop.f32.mrf.mxu0
        %v1141 = vadd.f32 0.0, %v1140
        %v1142 = vpop.f32.mrf.mxu0
        %1143 = vmatprep.mubr.bf16.mxu0 0
        %1144 = vmatmul.mubr.bf16.gmra.mxu0 %v1087
        %v1145 = vpop.f32.mrf.mxu0
        %v1146 = vadd.f32 0.0, %v1145
        %v1147 = vpop.f32.mrf.mxu0
        %v1148 = vpop.f32.mrf.mxu0
        %v1149 = vadd.f32 0.0, %v1148
        %v1150 = vpop.f32.mrf.mxu0
        %1151 = vmatprep.mubr.bf16.mxu0 0
        %1152 = vmatmul.mubr.bf16.gmra.mxu0 %v1090
        %v1153 = vpop.f32.mrf.mxu0
        %v1154 = vadd.f32 0.0, %v1153
        %v1155 = vpop.f32.mrf.mxu0
        %v1156 = vpop.f32.mrf.mxu0
        %v1157 = vadd.f32 0.0, %v1156
        %v1158 = vpop.f32.mrf.mxu0
        %1159 = vdwg.mxu0
        %v1160 = vadd.f32 %v930, %v1130
        %v1161 = vadd.f32 %v933, %v1133
        %v1162 = vadd.f32 %v938, %v1138
        %v1163 = vadd.f32 %v941, %v1141
        %v1164 = vadd.f32 %v946, %v1146
        %v1165 = vadd.f32 %v949, %v1149
        %v1166 = vadd.f32 %v954, %v1154
        %v1167 = vadd.f32 %v957, %v1157
        %s1168 = scalar_lea.vmem [#allocation3], 192
        %v1169 = vld [vmem:[%s1168] sm:$0xff]
        %v1170 = vld [vmem:[%s1168 + $0x8] sm:$0xff]
        %v1171 = vld [vmem:[%s1168 + $0x10] sm:$0xff]
        %v1172 = vld [vmem:[%s1168 + $0x18] sm:$0xff]
        %v1173 = vld [vmem:[%s1168 + $0x20] sm:$0xff]
        %v1174 = vld [vmem:[%s1168 + $0x28] sm:$0xff]
        %v1175 = vld [vmem:[%s1168 + $0x30] sm:$0xff]
        %v1176 = vld [vmem:[%s1168 + $0x38] sm:$0xff]
        %v1185 = vunpack.c.l.b16 %v1169
        %v1186 = vunpack.c.h.b16 %v1169
        %v1187 = vunpack.c.l.b16 %v1170
        %v1188 = vunpack.c.h.b16 %v1170
        %v1189 = vunpack.c.l.b16 %v1171
        %v1190 = vunpack.c.h.b16 %v1171
        %v1191 = vunpack.c.l.b16 %v1172
        %v1192 = vunpack.c.h.b16 %v1172
        %v1193 = vunpack.c.l.b16 %v1173
        %v1194 = vunpack.c.h.b16 %v1173
        %v1195 = vunpack.c.l.b16 %v1174
        %v1196 = vunpack.c.h.b16 %v1174
        %v1197 = vunpack.c.l.b16 %v1175
        %v1198 = vunpack.c.h.b16 %v1175
        %v1199 = vunpack.c.l.b16 %v1176
        %v1200 = vunpack.c.h.b16 %v1176
        %v1201 = vpack.c.b16 %v1187, %v1185
        %v1202 = vpack.c.b16 %v1188, %v1186
        %v1203 = vpack.c.b16 %v1191, %v1189
        %v1204 = vpack.c.b16 %v1192, %v1190
        %v1205 = vpack.c.b16 %v1195, %v1193
        %v1206 = vpack.c.b16 %v1196, %v1194
        %v1207 = vpack.c.b16 %v1199, %v1197
        %v1208 = vpack.c.b16 %v1200, %v1198
        %1217 = vmatprep.subr.bf16.mxu0 0
        %1218 = vmatpush1.bf16.msra.mxu0 %v583
        %1219 = vmatprep.subr.bf16.mxu0 0
        %1220 = vmatpush1.bf16.msra.mxu0 %v582
        %1221 = vmatprep.subr.bf16.mxu0 0
        %1222 = vmatpush1.bf16.msra.mxu0 %v581
        %1223 = vmatprep.subr.bf16.mxu0 0
        %1224 = vmatpush1.bf16.msra.mxu0 %v580
        %1225 = vmatprep.subr.bf16.mxu0 0
        %1226 = vmatpush1.bf16.msra.mxu0 %v579
        %1227 = vmatprep.subr.bf16.mxu0 0
        %1228 = vmatpush1.bf16.msra.mxu0 %v578
        %1229 = vmatprep.subr.bf16.mxu0 0
        %1230 = vmatpush1.bf16.msra.mxu0 %v577
        %1231 = vmatprep.subr.bf16.mxu0 0
        %1232 = vmatpush1.bf16.msra.mxu0 %v576
        %1233 = vmatprep.subr.bf16.mxu0 0
        %1234 = vmatpush2.bf16.msra.mxu0 %v591
        %1235 = vmatprep.subr.bf16.mxu0 0
        %1236 = vmatpush2.bf16.msra.mxu0 %v590
        %1237 = vmatprep.subr.bf16.mxu0 0
        %1238 = vmatpush2.bf16.msra.mxu0 %v589
        %1239 = vmatprep.subr.bf16.mxu0 0
        %1240 = vmatpush2.bf16.msra.mxu0 %v588
        %1241 = vmatprep.subr.bf16.mxu0 0
        %1242 = vmatpush2.bf16.msra.mxu0 %v587
        %1243 = vmatprep.subr.bf16.mxu0 0
        %1244 = vmatpush2.bf16.msra.mxu0 %v586
        %1245 = vmatprep.subr.bf16.mxu0 0
        %1246 = vmatpush2.bf16.msra.mxu0 %v585
        %1247 = vmatprep.subr.bf16.mxu0 0
        %1248 = vmatpush2.bf16.msra.mxu0 %v584
        %1249 = vmatprep.mubr.bf16.mxu0 %v1202
        %1250 = vmatmul.mubr.bf16.gmra.mxu0 %v1201
        %v1251 = vpop.f32.mrf.mxu0
        %v1252 = vadd.f32 0.0, %v1251
        %v1253 = vpop.f32.mrf.mxu0
        %v1254 = vpop.f32.mrf.mxu0
        %v1255 = vadd.f32 0.0, %v1254
        %v1256 = vpop.f32.mrf.mxu0
        %1257 = vmatprep.mubr.bf16.mxu0 %v1204
        %1258 = vmatmul.mubr.bf16.gmra.mxu0 %v1203
        %v1259 = vpop.f32.mrf.mxu0
        %v1260 = vadd.f32 0.0, %v1259
        %v1261 = vpop.f32.mrf.mxu0
        %v1262 = vpop.f32.mrf.mxu0
        %v1263 = vadd.f32 0.0, %v1262
        %v1264 = vpop.f32.mrf.mxu0
        %1265 = vmatprep.mubr.bf16.mxu0 %v1206
        %1266 = vmatmul.mubr.bf16.gmra.mxu0 %v1205
        %v1267 = vpop.f32.mrf.mxu0
        %v1268 = vadd.f32 0.0, %v1267
        %v1269 = vpop.f32.mrf.mxu0
        %v1270 = vpop.f32.mrf.mxu0
        %v1271 = vadd.f32 0.0, %v1270
        %v1272 = vpop.f32.mrf.mxu0
        %1273 = vmatprep.mubr.bf16.mxu0 %v1208
        %1274 = vmatmul.mubr.bf16.gmra.mxu0 %v1207
        %v1275 = vpop.f32.mrf.mxu0
        %v1276 = vadd.f32 0.0, %v1275
        %v1277 = vpop.f32.mrf.mxu0
        %v1278 = vpop.f32.mrf.mxu0
        %v1279 = vadd.f32 0.0, %v1278
        %v1280 = vpop.f32.mrf.mxu0
        %1281 = vdwg.mxu0
        %v1282 = vpack.c.bf16 %v1255, %v1252
        %v1283 = vpack.c.bf16 %v1263, %v1260
        %v1284 = vpack.c.bf16 %v1271, %v1268
        %v1285 = vpack.c.bf16 %v1279, %v1276
        %s1286 = scalar_lea.vmem %s2, 6
        %v1287 = vld [vmem:[%s1286] sm:$0x3]
        %v1289 = vsel %vm798, %v1282, 0
        %v1292 = vsel %vm798, %v1283, 0
        %v1295 = vsel %vm798, %v1284, 0
        %v1298 = vsel %vm798, %v1285, 0
        %v1301 = vsel %vm811, %v1287, 0
        %1303 = vmatprep.subr.bf16.mxu0 0
        %1304 = vmatpush1.bf16.msra.mxu0 0
        %1305 = vmatprep.subr.bf16.mxu0 0
        %1306 = vmatpush1.bf16.msra.mxu0 0
        %1307 = vmatprep.subr.bf16.mxu0 0
        %1308 = vmatpush1.bf16.msra.mxu0 0
        %1309 = vmatprep.subr.bf16.mxu0 0
        %1310 = vmatpush1.bf16.msra.mxu0 0
        %1311 = vmatprep.subr.bf16.mxu0 0
        %1312 = vmatpush1.bf16.msra.mxu0 0
        %1313 = vmatprep.subr.bf16.mxu0 0
        %1314 = vmatpush1.bf16.msra.mxu0 0
        %1315 = vmatprep.subr.bf16.mxu0 0
        %1316 = vmatpush1.bf16.msra.mxu0 0
        %1317 = vmatprep.subr.bf16.mxu0 0
        %1318 = vmatpush1.bf16.msra.mxu0 %v1301
        %1319 = vmatprep.subr.bf16.mxu0 0
        %1320 = vmatpush2.bf16.msra.mxu0 0
        %1321 = vmatprep.subr.bf16.mxu0 0
        %1322 = vmatpush2.bf16.msra.mxu0 0
        %1323 = vmatprep.subr.bf16.mxu0 0
        %1324 = vmatpush2.bf16.msra.mxu0 0
        %1325 = vmatprep.subr.bf16.mxu0 0
        %1326 = vmatpush2.bf16.msra.mxu0 0
        %1327 = vmatprep.subr.bf16.mxu0 0
        %1328 = vmatpush2.bf16.msra.mxu0 0
        %1329 = vmatprep.subr.bf16.mxu0 0
        %1330 = vmatpush2.bf16.msra.mxu0 0
        %1331 = vmatprep.subr.bf16.mxu0 0
        %1332 = vmatpush2.bf16.msra.mxu0 0
        %1333 = vmatprep.subr.bf16.mxu0 0
        %1334 = vmatpush2.bf16.msra.mxu0 0
        %1335 = vmatprep.mubr.bf16.mxu0 0
        %1336 = vmatmul.mubr.bf16.gmra.mxu0 %v1289
        %v1337 = vpop.f32.mrf.mxu0
        %v1338 = vadd.f32 0.0, %v1337
        %v1339 = vpop.f32.mrf.mxu0
        %v1340 = vpop.f32.mrf.mxu0
        %v1341 = vadd.f32 0.0, %v1340
        %v1342 = vpop.f32.mrf.mxu0
        %1343 = vmatprep.mubr.bf16.mxu0 0
        %1344 = vmatmul.mubr.bf16.gmra.mxu0 %v1292
        %v1345 = vpop.f32.mrf.mxu0
        %v1346 = vadd.f32 0.0, %v1345
        %v1347 = vpop.f32.mrf.mxu0
        %v1348 = vpop.f32.mrf.mxu0
        %v1349 = vadd.f32 0.0, %v1348
        %v1350 = vpop.f32.mrf.mxu0
        %1351 = vmatprep.mubr.bf16.mxu0 0
        %1352 = vmatmul.mubr.bf16.gmra.mxu0 %v1295
        %v1353 = vpop.f32.mrf.mxu0
        %v1354 = vadd.f32 0.0, %v1353
        %v1355 = vpop.f32.mrf.mxu0
        %v1356 = vpop.f32.mrf.mxu0
        %v1357 = vadd.f32 0.0, %v1356
        %v1358 = vpop.f32.mrf.mxu0
        %1359 = vmatprep.mubr.bf16.mxu0 0
        %1360 = vmatmul.mubr.bf16.gmra.mxu0 %v1298
        %v1361 = vpop.f32.mrf.mxu0
        %v1362 = vadd.f32 0.0, %v1361
        %v1363 = vpop.f32.mrf.mxu0
        %v1364 = vpop.f32.mrf.mxu0
        %v1365 = vadd.f32 0.0, %v1364
        %v1366 = vpop.f32.mrf.mxu0
        %1367 = vdwg.mxu0
        %v1368 = vadd.f32 %v1160, %v1338
        %v1369 = vadd.f32 %v1161, %v1341
        %v1370 = vadd.f32 %v1162, %v1346
        %v1371 = vadd.f32 %v1163, %v1349
        %v1372 = vadd.f32 %v1164, %v1354
        %v1373 = vadd.f32 %v1165, %v1357
        %v1374 = vadd.f32 %v1166, %v1362
        %v1375 = vadd.f32 %v1167, %v1365
        %s1376 = scalar_lea.vmem [#allocation3], 256
        %v1377 = vld [vmem:[%s1376] sm:$0xff]
        %v1378 = vld [vmem:[%s1376 + $0x8] sm:$0xff]
        %v1379 = vld [vmem:[%s1376 + $0x10] sm:$0xff]
        %v1380 = vld [vmem:[%s1376 + $0x18] sm:$0xff]
        %v1381 = vld [vmem:[%s1376 + $0x20] sm:$0xff]
        %v1382 = vld [vmem:[%s1376 + $0x28] sm:$0xff]
        %v1383 = vld [vmem:[%s1376 + $0x30] sm:$0xff]
        %v1384 = vld [vmem:[%s1376 + $0x38] sm:$0xff]
        %v1393 = vunpack.c.l.b16 %v1377
        %v1394 = vunpack.c.h.b16 %v1377
        %v1395 = vunpack.c.l.b16 %v1378
        %v1396 = vunpack.c.h.b16 %v1378
        %v1397 = vunpack.c.l.b16 %v1379
        %v1398 = vunpack.c.h.b16 %v1379
        %v1399 = vunpack.c.l.b16 %v1380
        %v1400 = vunpack.c.h.b16 %v1380
        %v1401 = vunpack.c.l.b16 %v1381
        %v1402 = vunpack.c.h.b16 %v1381
        %v1403 = vunpack.c.l.b16 %v1382
        %v1404 = vunpack.c.h.b16 %v1382
        %v1405 = vunpack.c.l.b16 %v1383
        %v1406 = vunpack.c.h.b16 %v1383
        %v1407 = vunpack.c.l.b16 %v1384
        %v1408 = vunpack.c.h.b16 %v1384
        %v1409 = vpack.c.b16 %v1395, %v1393
        %v1410 = vpack.c.b16 %v1396, %v1394
        %v1411 = vpack.c.b16 %v1399, %v1397
        %v1412 = vpack.c.b16 %v1400, %v1398
        %v1413 = vpack.c.b16 %v1403, %v1401
        %v1414 = vpack.c.b16 %v1404, %v1402
        %v1415 = vpack.c.b16 %v1407, %v1405
        %v1416 = vpack.c.b16 %v1408, %v1406
        %1425 = vmatprep.subr.bf16.mxu0 0
        %1426 = vmatpush1.bf16.msra.mxu0 %v583
        %1427 = vmatprep.subr.bf16.mxu0 0
        %1428 = vmatpush1.bf16.msra.mxu0 %v582
        %1429 = vmatprep.subr.bf16.mxu0 0
        %1430 = vmatpush1.bf16.msra.mxu0 %v581
        %1431 = vmatprep.subr.bf16.mxu0 0
        %1432 = vmatpush1.bf16.msra.mxu0 %v580
        %1433 = vmatprep.subr.bf16.mxu0 0
        %1434 = vmatpush1.bf16.msra.mxu0 %v579
        %1435 = vmatprep.subr.bf16.mxu0 0
        %1436 = vmatpush1.bf16.msra.mxu0 %v578
        %1437 = vmatprep.subr.bf16.mxu0 0
        %1438 = vmatpush1.bf16.msra.mxu0 %v577
        %1439 = vmatprep.subr.bf16.mxu0 0
        %1440 = vmatpush1.bf16.msra.mxu0 %v576
        %1441 = vmatprep.subr.bf16.mxu0 0
        %1442 = vmatpush2.bf16.msra.mxu0 %v591
        %1443 = vmatprep.subr.bf16.mxu0 0
        %1444 = vmatpush2.bf16.msra.mxu0 %v590
        %1445 = vmatprep.subr.bf16.mxu0 0
        %1446 = vmatpush2.bf16.msra.mxu0 %v589
        %1447 = vmatprep.subr.bf16.mxu0 0
        %1448 = vmatpush2.bf16.msra.mxu0 %v588
        %1449 = vmatprep.subr.bf16.mxu0 0
        %1450 = vmatpush2.bf16.msra.mxu0 %v587
        %1451 = vmatprep.subr.bf16.mxu0 0
        %1452 = vmatpush2.bf16.msra.mxu0 %v586
        %1453 = vmatprep.subr.bf16.mxu0 0
        %1454 = vmatpush2.bf16.msra.mxu0 %v585
        %1455 = vmatprep.subr.bf16.mxu0 0
        %1456 = vmatpush2.bf16.msra.mxu0 %v584
        %1457 = vmatprep.mubr.bf16.mxu0 %v1410
        %1458 = vmatmul.mubr.bf16.gmra.mxu0 %v1409
        %v1459 = vpop.f32.mrf.mxu0
        %v1460 = vadd.f32 0.0, %v1459
        %v1461 = vpop.f32.mrf.mxu0
        %v1462 = vpop.f32.mrf.mxu0
        %v1463 = vadd.f32 0.0, %v1462
        %v1464 = vpop.f32.mrf.mxu0
        %1465 = vmatprep.mubr.bf16.mxu0 %v1412
        %1466 = vmatmul.mubr.bf16.gmra.mxu0 %v1411
        %v1467 = vpop.f32.mrf.mxu0
        %v1468 = vadd.f32 0.0, %v1467
        %v1469 = vpop.f32.mrf.mxu0
        %v1470 = vpop.f32.mrf.mxu0
        %v1471 = vadd.f32 0.0, %v1470
        %v1472 = vpop.f32.mrf.mxu0
        %1473 = vmatprep.mubr.bf16.mxu0 %v1414
        %1474 = vmatmul.mubr.bf16.gmra.mxu0 %v1413
        %v1475 = vpop.f32.mrf.mxu0
        %v1476 = vadd.f32 0.0, %v1475
        %v1477 = vpop.f32.mrf.mxu0
        %v1478 = vpop.f32.mrf.mxu0
        %v1479 = vadd.f32 0.0, %v1478
        %v1480 = vpop.f32.mrf.mxu0
        %1481 = vmatprep.mubr.bf16.mxu0 %v1416
        %1482 = vmatmul.mubr.bf16.gmra.mxu0 %v1415
        %v1483 = vpop.f32.mrf.mxu0
        %v1484 = vadd.f32 0.0, %v1483
        %v1485 = vpop.f32.mrf.mxu0
        %v1486 = vpop.f32.mrf.mxu0
        %v1487 = vadd.f32 0.0, %v1486
        %v1488 = vpop.f32.mrf.mxu0
        %1489 = vdwg.mxu0
        %v1490 = vpack.c.bf16 %v1463, %v1460
        %v1491 = vpack.c.bf16 %v1471, %v1468
        %v1492 = vpack.c.bf16 %v1479, %v1476
        %v1493 = vpack.c.bf16 %v1487, %v1484
        %s1494 = scalar_lea.vmem %s2, 8
        %v1495 = vld [vmem:[%s1494] sm:$0x3]
        %v1497 = vsel %vm798, %v1490, 0
        %v1500 = vsel %vm798, %v1491, 0
        %v1503 = vsel %vm798, %v1492, 0
        %v1506 = vsel %vm798, %v1493, 0
        %v1509 = vsel %vm811, %v1495, 0
        %1511 = vmatprep.subr.bf16.mxu0 0
        %1512 = vmatpush1.bf16.msra.mxu0 0
        %1513 = vmatprep.subr.bf16.mxu0 0
        %1514 = vmatpush1.bf16.msra.mxu0 0
        %1515 = vmatprep.subr.bf16.mxu0 0
        %1516 = vmatpush1.bf16.msra.mxu0 0
        %1517 = vmatprep.subr.bf16.mxu0 0
        %1518 = vmatpush1.bf16.msra.mxu0 0
        %1519 = vmatprep.subr.bf16.mxu0 0
        %1520 = vmatpush1.bf16.msra.mxu0 0
        %1521 = vmatprep.subr.bf16.mxu0 0
        %1522 = vmatpush1.bf16.msra.mxu0 0
        %1523 = vmatprep.subr.bf16.mxu0 0
        %1524 = vmatpush1.bf16.msra.mxu0 0
        %1525 = vmatprep.subr.bf16.mxu0 0
        %1526 = vmatpush1.bf16.msra.mxu0 %v1509
        %1527 = vmatprep.subr.bf16.mxu0 0
        %1528 = vmatpush2.bf16.msra.mxu0 0
        %1529 = vmatprep.subr.bf16.mxu0 0
        %1530 = vmatpush2.bf16.msra.mxu0 0
        %1531 = vmatprep.subr.bf16.mxu0 0
        %1532 = vmatpush2.bf16.msra.mxu0 0
        %1533 = vmatprep.subr.bf16.mxu0 0
        %1534 = vmatpush2.bf16.msra.mxu0 0
        %1535 = vmatprep.subr.bf16.mxu0 0
        %1536 = vmatpush2.bf16.msra.mxu0 0
        %1537 = vmatprep.subr.bf16.mxu0 0
        %1538 = vmatpush2.bf16.msra.mxu0 0
        %1539 = vmatprep.subr.bf16.mxu0 0
        %1540 = vmatpush2.bf16.msra.mxu0 0
        %1541 = vmatprep.subr.bf16.mxu0 0
        %1542 = vmatpush2.bf16.msra.mxu0 0
        %1543 = vmatprep.mubr.bf16.mxu0 0
        %1544 = vmatmul.mubr.bf16.gmra.mxu0 %v1497
        %v1545 = vpop.f32.mrf.mxu0
        %v1546 = vadd.f32 0.0, %v1545
        %v1547 = vpop.f32.mrf.mxu0
        %v1548 = vpop.f32.mrf.mxu0
        %v1549 = vadd.f32 0.0, %v1548
        %v1550 = vpop.f32.mrf.mxu0
        %1551 = vmatprep.mubr.bf16.mxu0 0
        %1552 = vmatmul.mubr.bf16.gmra.mxu0 %v1500
        %v1553 = vpop.f32.mrf.mxu0
        %v1554 = vadd.f32 0.0, %v1553
        %v1555 = vpop.f32.mrf.mxu0
        %v1556 = vpop.f32.mrf.mxu0
        %v1557 = vadd.f32 0.0, %v1556
        %v1558 = vpop.f32.mrf.mxu0
        %1559 = vmatprep.mubr.bf16.mxu0 0
        %1560 = vmatmul.mubr.bf16.gmra.mxu0 %v1503
        %v1561 = vpop.f32.mrf.mxu0
        %v1562 = vadd.f32 0.0, %v1561
        %v1563 = vpop.f32.mrf.mxu0
        %v1564 = vpop.f32.mrf.mxu0
        %v1565 = vadd.f32 0.0, %v1564
        %v1566 = vpop.f32.mrf.mxu0
        %1567 = vmatprep.mubr.bf16.mxu0 0
        %1568 = vmatmul.mubr.bf16.gmra.mxu0 %v1506
        %v1569 = vpop.f32.mrf.mxu0
        %v1570 = vadd.f32 0.0, %v1569
        %v1571 = vpop.f32.mrf.mxu0
        %v1572 = vpop.f32.mrf.mxu0
        %v1573 = vadd.f32 0.0, %v1572
        %v1574 = vpop.f32.mrf.mxu0
        %1575 = vdwg.mxu0
        %v1576 = vadd.f32 %v1368, %v1546
        %v1577 = vadd.f32 %v1369, %v1549
        %v1578 = vadd.f32 %v1370, %v1554
        %v1579 = vadd.f32 %v1371, %v1557
        %v1580 = vadd.f32 %v1372, %v1562
        %v1581 = vadd.f32 %v1373, %v1565
        %v1582 = vadd.f32 %v1374, %v1570
        %v1583 = vadd.f32 %v1375, %v1573
        %s1584 = scalar_lea.vmem [#allocation3], 320
        %v1585 = vld [vmem:[%s1584] sm:$0xff]
        %v1586 = vld [vmem:[%s1584 + $0x8] sm:$0xff]
        %v1587 = vld [vmem:[%s1584 + $0x10] sm:$0xff]
        %v1588 = vld [vmem:[%s1584 + $0x18] sm:$0xff]
        %v1589 = vld [vmem:[%s1584 + $0x20] sm:$0xff]
        %v1590 = vld [vmem:[%s1584 + $0x28] sm:$0xff]
        %v1591 = vld [vmem:[%s1584 + $0x30] sm:$0xff]
        %v1592 = vld [vmem:[%s1584 + $0x38] sm:$0xff]
        %v1601 = vunpack.c.l.b16 %v1585
        %v1602 = vunpack.c.h.b16 %v1585
        %v1603 = vunpack.c.l.b16 %v1586
        %v1604 = vunpack.c.h.b16 %v1586
        %v1605 = vunpack.c.l.b16 %v1587
        %v1606 = vunpack.c.h.b16 %v1587
        %v1607 = vunpack.c.l.b16 %v1588
        %v1608 = vunpack.c.h.b16 %v1588
        %v1609 = vunpack.c.l.b16 %v1589
        %v1610 = vunpack.c.h.b16 %v1589
        %v1611 = vunpack.c.l.b16 %v1590
        %v1612 = vunpack.c.h.b16 %v1590
        %v1613 = vunpack.c.l.b16 %v1591
        %v1614 = vunpack.c.h.b16 %v1591
        %v1615 = vunpack.c.l.b16 %v1592
        %v1616 = vunpack.c.h.b16 %v1592
        %v1617 = vpack.c.b16 %v1603, %v1601
        %v1618 = vpack.c.b16 %v1604, %v1602
        %v1619 = vpack.c.b16 %v1607, %v1605
        %v1620 = vpack.c.b16 %v1608, %v1606
        %v1621 = vpack.c.b16 %v1611, %v1609
        %v1622 = vpack.c.b16 %v1612, %v1610
        %v1623 = vpack.c.b16 %v1615, %v1613
        %v1624 = vpack.c.b16 %v1616, %v1614
        %1633 = vmatprep.subr.bf16.mxu0 0
        %1634 = vmatpush1.bf16.msra.mxu0 %v583
        %1635 = vmatprep.subr.bf16.mxu0 0
        %1636 = vmatpush1.bf16.msra.mxu0 %v582
        %1637 = vmatprep.subr.bf16.mxu0 0
        %1638 = vmatpush1.bf16.msra.mxu0 %v581
        %1639 = vmatprep.subr.bf16.mxu0 0
        %1640 = vmatpush1.bf16.msra.mxu0 %v580
        %1641 = vmatprep.subr.bf16.mxu0 0
        %1642 = vmatpush1.bf16.msra.mxu0 %v579
        %1643 = vmatprep.subr.bf16.mxu0 0
        %1644 = vmatpush1.bf16.msra.mxu0 %v578
        %1645 = vmatprep.subr.bf16.mxu0 0
        %1646 = vmatpush1.bf16.msra.mxu0 %v577
        %1647 = vmatprep.subr.bf16.mxu0 0
        %1648 = vmatpush1.bf16.msra.mxu0 %v576
        %1649 = vmatprep.subr.bf16.mxu0 0
        %1650 = vmatpush2.bf16.msra.mxu0 %v591
        %1651 = vmatprep.subr.bf16.mxu0 0
        %1652 = vmatpush2.bf16.msra.mxu0 %v590
        %1653 = vmatprep.subr.bf16.mxu0 0
        %1654 = vmatpush2.bf16.msra.mxu0 %v589
        %1655 = vmatprep.subr.bf16.mxu0 0
        %1656 = vmatpush2.bf16.msra.mxu0 %v588
        %1657 = vmatprep.subr.bf16.mxu0 0
        %1658 = vmatpush2.bf16.msra.mxu0 %v587
        %1659 = vmatprep.subr.bf16.mxu0 0
        %1660 = vmatpush2.bf16.msra.mxu0 %v586
        %1661 = vmatprep.subr.bf16.mxu0 0
        %1662 = vmatpush2.bf16.msra.mxu0 %v585
        %1663 = vmatprep.subr.bf16.mxu0 0
        %1664 = vmatpush2.bf16.msra.mxu0 %v584
        %1665 = vmatprep.mubr.bf16.mxu0 %v1618
        %1666 = vmatmul.mubr.bf16.gmra.mxu0 %v1617
        %v1667 = vpop.f32.mrf.mxu0
        %v1668 = vadd.f32 0.0, %v1667
        %v1669 = vpop.f32.mrf.mxu0
        %v1670 = vpop.f32.mrf.mxu0
        %v1671 = vadd.f32 0.0, %v1670
        %v1672 = vpop.f32.mrf.mxu0
        %1673 = vmatprep.mubr.bf16.mxu0 %v1620
        %1674 = vmatmul.mubr.bf16.gmra.mxu0 %v1619
        %v1675 = vpop.f32.mrf.mxu0
        %v1676 = vadd.f32 0.0, %v1675
        %v1677 = vpop.f32.mrf.mxu0
        %v1678 = vpop.f32.mrf.mxu0
        %v1679 = vadd.f32 0.0, %v1678
        %v1680 = vpop.f32.mrf.mxu0
        %1681 = vmatprep.mubr.bf16.mxu0 %v1622
        %1682 = vmatmul.mubr.bf16.gmra.mxu0 %v1621
        %v1683 = vpop.f32.mrf.mxu0
        %v1684 = vadd.f32 0.0, %v1683
        %v1685 = vpop.f32.mrf.mxu0
        %v1686 = vpop.f32.mrf.mxu0
        %v1687 = vadd.f32 0.0, %v1686
        %v1688 = vpop.f32.mrf.mxu0
        %1689 = vmatprep.mubr.bf16.mxu0 %v1624
        %1690 = vmatmul.mubr.bf16.gmra.mxu0 %v1623
        %v1691 = vpop.f32.mrf.mxu0
        %v1692 = vadd.f32 0.0, %v1691
        %v1693 = vpop.f32.mrf.mxu0
        %v1694 = vpop.f32.mrf.mxu0
        %v1695 = vadd.f32 0.0, %v1694
        %v1696 = vpop.f32.mrf.mxu0
        %1697 = vdwg.mxu0
        %v1698 = vpack.c.bf16 %v1671, %v1668
        %v1699 = vpack.c.bf16 %v1679, %v1676
        %v1700 = vpack.c.bf16 %v1687, %v1684
        %v1701 = vpack.c.bf16 %v1695, %v1692
        %s1702 = scalar_lea.vmem %s2, 10
        %v1703 = vld [vmem:[%s1702] sm:$0x3]
        %v1705 = vsel %vm798, %v1698, 0
        %v1708 = vsel %vm798, %v1699, 0
        %v1711 = vsel %vm798, %v1700, 0
        %v1714 = vsel %vm798, %v1701, 0
        %v1717 = vsel %vm811, %v1703, 0
        %1719 = vmatprep.subr.bf16.mxu0 0
        %1720 = vmatpush1.bf16.msra.mxu0 0
        %1721 = vmatprep.subr.bf16.mxu0 0
        %1722 = vmatpush1.bf16.msra.mxu0 0
        %1723 = vmatprep.subr.bf16.mxu0 0
        %1724 = vmatpush1.bf16.msra.mxu0 0
        %1725 = vmatprep.subr.bf16.mxu0 0
        %1726 = vmatpush1.bf16.msra.mxu0 0
        %1727 = vmatprep.subr.bf16.mxu0 0
        %1728 = vmatpush1.bf16.msra.mxu0 0
        %1729 = vmatprep.subr.bf16.mxu0 0
        %1730 = vmatpush1.bf16.msra.mxu0 0
        %1731 = vmatprep.subr.bf16.mxu0 0
        %1732 = vmatpush1.bf16.msra.mxu0 0
        %1733 = vmatprep.subr.bf16.mxu0 0
        %1734 = vmatpush1.bf16.msra.mxu0 %v1717
        %1735 = vmatprep.subr.bf16.mxu0 0
        %1736 = vmatpush2.bf16.msra.mxu0 0
        %1737 = vmatprep.subr.bf16.mxu0 0
        %1738 = vmatpush2.bf16.msra.mxu0 0
        %1739 = vmatprep.subr.bf16.mxu0 0
        %1740 = vmatpush2.bf16.msra.mxu0 0
        %1741 = vmatprep.subr.bf16.mxu0 0
        %1742 = vmatpush2.bf16.msra.mxu0 0
        %1743 = vmatprep.subr.bf16.mxu0 0
        %1744 = vmatpush2.bf16.msra.mxu0 0
        %1745 = vmatprep.subr.bf16.mxu0 0
        %1746 = vmatpush2.bf16.msra.mxu0 0
        %1747 = vmatprep.subr.bf16.mxu0 0
        %1748 = vmatpush2.bf16.msra.mxu0 0
        %1749 = vmatprep.subr.bf16.mxu0 0
        %1750 = vmatpush2.bf16.msra.mxu0 0
        %1751 = vmatprep.mubr.bf16.mxu0 0
        %1752 = vmatmul.mubr.bf16.gmra.mxu0 %v1705
        %v1753 = vpop.f32.mrf.mxu0
        %v1754 = vadd.f32 0.0, %v1753
        %v1755 = vpop.f32.mrf.mxu0
        %v1756 = vpop.f32.mrf.mxu0
        %v1757 = vadd.f32 0.0, %v1756
        %v1758 = vpop.f32.mrf.mxu0
        %1759 = vmatprep.mubr.bf16.mxu0 0
        %1760 = vmatmul.mubr.bf16.gmra.mxu0 %v1708
        %v1761 = vpop.f32.mrf.mxu0
        %v1762 = vadd.f32 0.0, %v1761
        %v1763 = vpop.f32.mrf.mxu0
        %v1764 = vpop.f32.mrf.mxu0
        %v1765 = vadd.f32 0.0, %v1764
        %v1766 = vpop.f32.mrf.mxu0
        %1767 = vmatprep.mubr.bf16.mxu0 0
        %1768 = vmatmul.mubr.bf16.gmra.mxu0 %v1711
        %v1769 = vpop.f32.mrf.mxu0
        %v1770 = vadd.f32 0.0, %v1769
        %v1771 = vpop.f32.mrf.mxu0
        %v1772 = vpop.f32.mrf.mxu0
        %v1773 = vadd.f32 0.0, %v1772
        %v1774 = vpop.f32.mrf.mxu0
        %1775 = vmatprep.mubr.bf16.mxu0 0
        %1776 = vmatmul.mubr.bf16.gmra.mxu0 %v1714
        %v1777 = vpop.f32.mrf.mxu0
        %v1778 = vadd.f32 0.0, %v1777
        %v1779 = vpop.f32.mrf.mxu0
        %v1780 = vpop.f32.mrf.mxu0
        %v1781 = vadd.f32 0.0, %v1780
        %v1782 = vpop.f32.mrf.mxu0
        %1783 = vdwg.mxu0
        %v1784 = vadd.f32 %v1576, %v1754
        %v1785 = vadd.f32 %v1577, %v1757
        %v1786 = vadd.f32 %v1578, %v1762
        %v1787 = vadd.f32 %v1579, %v1765
        %v1788 = vadd.f32 %v1580, %v1770
        %v1789 = vadd.f32 %v1581, %v1773
        %v1790 = vadd.f32 %v1582, %v1778
        %v1791 = vadd.f32 %v1583, %v1781
        %s1792 = scalar_lea.vmem [#allocation3], 384
        %v1793 = vld [vmem:[%s1792] sm:$0xff]
        %v1794 = vld [vmem:[%s1792 + $0x8] sm:$0xff]
        %v1795 = vld [vmem:[%s1792 + $0x10] sm:$0xff]
        %v1796 = vld [vmem:[%s1792 + $0x18] sm:$0xff]
        %v1797 = vld [vmem:[%s1792 + $0x20] sm:$0xff]
        %v1798 = vld [vmem:[%s1792 + $0x28] sm:$0xff]
        %v1799 = vld [vmem:[%s1792 + $0x30] sm:$0xff]
        %v1800 = vld [vmem:[%s1792 + $0x38] sm:$0xff]
        %v1809 = vunpack.c.l.b16 %v1793
        %v1810 = vunpack.c.h.b16 %v1793
        %v1811 = vunpack.c.l.b16 %v1794
        %v1812 = vunpack.c.h.b16 %v1794
        %v1813 = vunpack.c.l.b16 %v1795
        %v1814 = vunpack.c.h.b16 %v1795
        %v1815 = vunpack.c.l.b16 %v1796
        %v1816 = vunpack.c.h.b16 %v1796
        %v1817 = vunpack.c.l.b16 %v1797
        %v1818 = vunpack.c.h.b16 %v1797
        %v1819 = vunpack.c.l.b16 %v1798
        %v1820 = vunpack.c.h.b16 %v1798
        %v1821 = vunpack.c.l.b16 %v1799
        %v1822 = vunpack.c.h.b16 %v1799
        %v1823 = vunpack.c.l.b16 %v1800
        %v1824 = vunpack.c.h.b16 %v1800
        %v1825 = vpack.c.b16 %v1811, %v1809
        %v1826 = vpack.c.b16 %v1812, %v1810
        %v1827 = vpack.c.b16 %v1815, %v1813
        %v1828 = vpack.c.b16 %v1816, %v1814
        %v1829 = vpack.c.b16 %v1819, %v1817
        %v1830 = vpack.c.b16 %v1820, %v1818
        %v1831 = vpack.c.b16 %v1823, %v1821
        %v1832 = vpack.c.b16 %v1824, %v1822
        %1841 = vmatprep.subr.bf16.mxu0 0
        %1842 = vmatpush1.bf16.msra.mxu0 %v583
        %1843 = vmatprep.subr.bf16.mxu0 0
        %1844 = vmatpush1.bf16.msra.mxu0 %v582
        %1845 = vmatprep.subr.bf16.mxu0 0
        %1846 = vmatpush1.bf16.msra.mxu0 %v581
        %1847 = vmatprep.subr.bf16.mxu0 0
        %1848 = vmatpush1.bf16.msra.mxu0 %v580
        %1849 = vmatprep.subr.bf16.mxu0 0
        %1850 = vmatpush1.bf16.msra.mxu0 %v579
        %1851 = vmatprep.subr.bf16.mxu0 0
        %1852 = vmatpush1.bf16.msra.mxu0 %v578
        %1853 = vmatprep.subr.bf16.mxu0 0
        %1854 = vmatpush1.bf16.msra.mxu0 %v577
        %1855 = vmatprep.subr.bf16.mxu0 0
        %1856 = vmatpush1.bf16.msra.mxu0 %v576
        %1857 = vmatprep.subr.bf16.mxu0 0
        %1858 = vmatpush2.bf16.msra.mxu0 %v591
        %1859 = vmatprep.subr.bf16.mxu0 0
        %1860 = vmatpush2.bf16.msra.mxu0 %v590
        %1861 = vmatprep.subr.bf16.mxu0 0
        %1862 = vmatpush2.bf16.msra.mxu0 %v589
        %1863 = vmatprep.subr.bf16.mxu0 0
        %1864 = vmatpush2.bf16.msra.mxu0 %v588
        %1865 = vmatprep.subr.bf16.mxu0 0
        %1866 = vmatpush2.bf16.msra.mxu0 %v587
        %1867 = vmatprep.subr.bf16.mxu0 0
        %1868 = vmatpush2.bf16.msra.mxu0 %v586
        %1869 = vmatprep.subr.bf16.mxu0 0
        %1870 = vmatpush2.bf16.msra.mxu0 %v585
        %1871 = vmatprep.subr.bf16.mxu0 0
        %1872 = vmatpush2.bf16.msra.mxu0 %v584
        %1873 = vmatprep.mubr.bf16.mxu0 %v1826
        %1874 = vmatmul.mubr.bf16.gmra.mxu0 %v1825
        %v1875 = vpop.f32.mrf.mxu0
        %v1876 = vadd.f32 0.0, %v1875
        %v1877 = vpop.f32.mrf.mxu0
        %v1878 = vpop.f32.mrf.mxu0
        %v1879 = vadd.f32 0.0, %v1878
        %v1880 = vpop.f32.mrf.mxu0
        %1881 = vmatprep.mubr.bf16.mxu0 %v1828
        %1882 = vmatmul.mubr.bf16.gmra.mxu0 %v1827
        %v1883 = vpop.f32.mrf.mxu0
        %v1884 = vadd.f32 0.0, %v1883
        %v1885 = vpop.f32.mrf.mxu0
        %v1886 = vpop.f32.mrf.mxu0
        %v1887 = vadd.f32 0.0, %v1886
        %v1888 = vpop.f32.mrf.mxu0
        %1889 = vmatprep.mubr.bf16.mxu0 %v1830
        %1890 = vmatmul.mubr.bf16.gmra.mxu0 %v1829
        %v1891 = vpop.f32.mrf.mxu0
        %v1892 = vadd.f32 0.0, %v1891
        %v1893 = vpop.f32.mrf.mxu0
        %v1894 = vpop.f32.mrf.mxu0
        %v1895 = vadd.f32 0.0, %v1894
        %v1896 = vpop.f32.mrf.mxu0
        %1897 = vmatprep.mubr.bf16.mxu0 %v1832
        %1898 = vmatmul.mubr.bf16.gmra.mxu0 %v1831
        %v1899 = vpop.f32.mrf.mxu0
        %v1900 = vadd.f32 0.0, %v1899
        %v1901 = vpop.f32.mrf.mxu0
        %v1902 = vpop.f32.mrf.mxu0
        %v1903 = vadd.f32 0.0, %v1902
        %v1904 = vpop.f32.mrf.mxu0
        %1905 = vdwg.mxu0
        %v1906 = vpack.c.bf16 %v1879, %v1876
        %v1907 = vpack.c.bf16 %v1887, %v1884
        %v1908 = vpack.c.bf16 %v1895, %v1892
        %v1909 = vpack.c.bf16 %v1903, %v1900
        %s1910 = scalar_lea.vmem %s2, 12
        %v1911 = vld [vmem:[%s1910] sm:$0x3]
        %v1913 = vsel %vm798, %v1906, 0
        %v1916 = vsel %vm798, %v1907, 0
        %v1919 = vsel %vm798, %v1908, 0
        %v1922 = vsel %vm798, %v1909, 0
        %v1925 = vsel %vm811, %v1911, 0
        %1927 = vmatprep.subr.bf16.mxu0 0
        %1928 = vmatpush1.bf16.msra.mxu0 0
        %1929 = vmatprep.subr.bf16.mxu0 0
        %1930 = vmatpush1.bf16.msra.mxu0 0
        %1931 = vmatprep.subr.bf16.mxu0 0
        %1932 = vmatpush1.bf16.msra.mxu0 0
        %1933 = vmatprep.subr.bf16.mxu0 0
        %1934 = vmatpush1.bf16.msra.mxu0 0
        %1935 = vmatprep.subr.bf16.mxu0 0
        %1936 = vmatpush1.bf16.msra.mxu0 0
        %1937 = vmatprep.subr.bf16.mxu0 0
        %1938 = vmatpush1.bf16.msra.mxu0 0
        %1939 = vmatprep.subr.bf16.mxu0 0
        %1940 = vmatpush1.bf16.msra.mxu0 0
        %1941 = vmatprep.subr.bf16.mxu0 0
        %1942 = vmatpush1.bf16.msra.mxu0 %v1925
        %1943 = vmatprep.subr.bf16.mxu0 0
        %1944 = vmatpush2.bf16.msra.mxu0 0
        %1945 = vmatprep.subr.bf16.mxu0 0
        %1946 = vmatpush2.bf16.msra.mxu0 0
        %1947 = vmatprep.subr.bf16.mxu0 0
        %1948 = vmatpush2.bf16.msra.mxu0 0
        %1949 = vmatprep.subr.bf16.mxu0 0
        %1950 = vmatpush2.bf16.msra.mxu0 0
        %1951 = vmatprep.subr.bf16.mxu0 0
        %1952 = vmatpush2.bf16.msra.mxu0 0
        %1953 = vmatprep.subr.bf16.mxu0 0
        %1954 = vmatpush2.bf16.msra.mxu0 0
        %1955 = vmatprep.subr.bf16.mxu0 0
        %1956 = vmatpush2.bf16.msra.mxu0 0
        %1957 = vmatprep.subr.bf16.mxu0 0
        %1958 = vmatpush2.bf16.msra.mxu0 0
        %1959 = vmatprep.mubr.bf16.mxu0 0
        %1960 = vmatmul.mubr.bf16.gmra.mxu0 %v1913
        %v1961 = vpop.f32.mrf.mxu0
        %v1962 = vadd.f32 0.0, %v1961
        %v1963 = vpop.f32.mrf.mxu0
        %v1964 = vpop.f32.mrf.mxu0
        %v1965 = vadd.f32 0.0, %v1964
        %v1966 = vpop.f32.mrf.mxu0
        %1967 = vmatprep.mubr.bf16.mxu0 0
        %1968 = vmatmul.mubr.bf16.gmra.mxu0 %v1916
        %v1969 = vpop.f32.mrf.mxu0
        %v1970 = vadd.f32 0.0, %v1969
        %v1971 = vpop.f32.mrf.mxu0
        %v1972 = vpop.f32.mrf.mxu0
        %v1973 = vadd.f32 0.0, %v1972
        %v1974 = vpop.f32.mrf.mxu0
        %1975 = vmatprep.mubr.bf16.mxu0 0
        %1976 = vmatmul.mubr.bf16.gmra.mxu0 %v1919
        %v1977 = vpop.f32.mrf.mxu0
        %v1978 = vadd.f32 0.0, %v1977
        %v1979 = vpop.f32.mrf.mxu0
        %v1980 = vpop.f32.mrf.mxu0
        %v1981 = vadd.f32 0.0, %v1980
        %v1982 = vpop.f32.mrf.mxu0
        %1983 = vmatprep.mubr.bf16.mxu0 0
        %1984 = vmatmul.mubr.bf16.gmra.mxu0 %v1922
        %v1985 = vpop.f32.mrf.mxu0
        %v1986 = vadd.f32 0.0, %v1985
        %v1987 = vpop.f32.mrf.mxu0
        %v1988 = vpop.f32.mrf.mxu0
        %v1989 = vadd.f32 0.0, %v1988
        %v1990 = vpop.f32.mrf.mxu0
        %1991 = vdwg.mxu0
        %v1992 = vadd.f32 %v1784, %v1962
        %v1993 = vadd.f32 %v1785, %v1965
        %v1994 = vadd.f32 %v1786, %v1970
        %v1995 = vadd.f32 %v1787, %v1973
        %v1996 = vadd.f32 %v1788, %v1978
        %v1997 = vadd.f32 %v1789, %v1981
        %v1998 = vadd.f32 %v1790, %v1986
        %v1999 = vadd.f32 %v1791, %v1989
        %s2000 = scalar_lea.vmem [#allocation3], 448
        %v2001 = vld [vmem:[%s2000] sm:$0xff]
        %v2002 = vld [vmem:[%s2000 + $0x8] sm:$0xff]
        %v2003 = vld [vmem:[%s2000 + $0x10] sm:$0xff]
        %v2004 = vld [vmem:[%s2000 + $0x18] sm:$0xff]
        %v2005 = vld [vmem:[%s2000 + $0x20] sm:$0xff]
        %v2006 = vld [vmem:[%s2000 + $0x28] sm:$0xff]
        %v2007 = vld [vmem:[%s2000 + $0x30] sm:$0xff]
        %v2008 = vld [vmem:[%s2000 + $0x38] sm:$0xff]
        %v2017 = vunpack.c.l.b16 %v2001
        %v2018 = vunpack.c.h.b16 %v2001
        %v2019 = vunpack.c.l.b16 %v2002
        %v2020 = vunpack.c.h.b16 %v2002
        %v2021 = vunpack.c.l.b16 %v2003
        %v2022 = vunpack.c.h.b16 %v2003
        %v2023 = vunpack.c.l.b16 %v2004
        %v2024 = vunpack.c.h.b16 %v2004
        %v2025 = vunpack.c.l.b16 %v2005
        %v2026 = vunpack.c.h.b16 %v2005
        %v2027 = vunpack.c.l.b16 %v2006
        %v2028 = vunpack.c.h.b16 %v2006
        %v2029 = vunpack.c.l.b16 %v2007
        %v2030 = vunpack.c.h.b16 %v2007
        %v2031 = vunpack.c.l.b16 %v2008
        %v2032 = vunpack.c.h.b16 %v2008
        %v2033 = vpack.c.b16 %v2019, %v2017
        %v2034 = vpack.c.b16 %v2020, %v2018
        %v2035 = vpack.c.b16 %v2023, %v2021
        %v2036 = vpack.c.b16 %v2024, %v2022
        %v2037 = vpack.c.b16 %v2027, %v2025
        %v2038 = vpack.c.b16 %v2028, %v2026
        %v2039 = vpack.c.b16 %v2031, %v2029
        %v2040 = vpack.c.b16 %v2032, %v2030
        %2049 = vmatprep.subr.bf16.mxu0 0
        %2050 = vmatpush1.bf16.msra.mxu0 %v583
        %2051 = vmatprep.subr.bf16.mxu0 0
        %2052 = vmatpush1.bf16.msra.mxu0 %v582
        %2053 = vmatprep.subr.bf16.mxu0 0
        %2054 = vmatpush1.bf16.msra.mxu0 %v581
        %2055 = vmatprep.subr.bf16.mxu0 0
        %2056 = vmatpush1.bf16.msra.mxu0 %v580
        %2057 = vmatprep.subr.bf16.mxu0 0
        %2058 = vmatpush1.bf16.msra.mxu0 %v579
        %2059 = vmatprep.subr.bf16.mxu0 0
        %2060 = vmatpush1.bf16.msra.mxu0 %v578
        %2061 = vmatprep.subr.bf16.mxu0 0
        %2062 = vmatpush1.bf16.msra.mxu0 %v577
        %2063 = vmatprep.subr.bf16.mxu0 0
        %2064 = vmatpush1.bf16.msra.mxu0 %v576
        %2065 = vmatprep.subr.bf16.mxu0 0
        %2066 = vmatpush2.bf16.msra.mxu0 %v591
        %2067 = vmatprep.subr.bf16.mxu0 0
        %2068 = vmatpush2.bf16.msra.mxu0 %v590
        %2069 = vmatprep.subr.bf16.mxu0 0
        %2070 = vmatpush2.bf16.msra.mxu0 %v589
        %2071 = vmatprep.subr.bf16.mxu0 0
        %2072 = vmatpush2.bf16.msra.mxu0 %v588
        %2073 = vmatprep.subr.bf16.mxu0 0
        %2074 = vmatpush2.bf16.msra.mxu0 %v587
        %2075 = vmatprep.subr.bf16.mxu0 0
        %2076 = vmatpush2.bf16.msra.mxu0 %v586
        %2077 = vmatprep.subr.bf16.mxu0 0
        %2078 = vmatpush2.bf16.msra.mxu0 %v585
        %2079 = vmatprep.subr.bf16.mxu0 0
        %2080 = vmatpush2.bf16.msra.mxu0 %v584
        %2081 = vmatprep.mubr.bf16.mxu0 %v2034
        %2082 = vmatmul.mubr.bf16.gmra.mxu0 %v2033
        %v2083 = vpop.f32.mrf.mxu0
        %v2084 = vadd.f32 0.0, %v2083
        %v2085 = vpop.f32.mrf.mxu0
        %v2086 = vpop.f32.mrf.mxu0
        %v2087 = vadd.f32 0.0, %v2086
        %v2088 = vpop.f32.mrf.mxu0
        %2089 = vmatprep.mubr.bf16.mxu0 %v2036
        %2090 = vmatmul.mubr.bf16.gmra.mxu0 %v2035
        %v2091 = vpop.f32.mrf.mxu0
        %v2092 = vadd.f32 0.0, %v2091
        %v2093 = vpop.f32.mrf.mxu0
        %v2094 = vpop.f32.mrf.mxu0
        %v2095 = vadd.f32 0.0, %v2094
        %v2096 = vpop.f32.mrf.mxu0
        %2097 = vmatprep.mubr.bf16.mxu0 %v2038
        %2098 = vmatmul.mubr.bf16.gmra.mxu0 %v2037
        %v2099 = vpop.f32.mrf.mxu0
        %v2100 = vadd.f32 0.0, %v2099
        %v2101 = vpop.f32.mrf.mxu0
        %v2102 = vpop.f32.mrf.mxu0
        %v2103 = vadd.f32 0.0, %v2102
        %v2104 = vpop.f32.mrf.mxu0
        %2105 = vmatprep.mubr.bf16.mxu0 %v2040
        %2106 = vmatmul.mubr.bf16.gmra.mxu0 %v2039
        %v2107 = vpop.f32.mrf.mxu0
        %v2108 = vadd.f32 0.0, %v2107
        %v2109 = vpop.f32.mrf.mxu0
        %v2110 = vpop.f32.mrf.mxu0
        %v2111 = vadd.f32 0.0, %v2110
        %v2112 = vpop.f32.mrf.mxu0
        %2113 = vdwg.mxu0
        %v2114 = vpack.c.bf16 %v2087, %v2084
        %v2115 = vpack.c.bf16 %v2095, %v2092
        %v2116 = vpack.c.bf16 %v2103, %v2100
        %v2117 = vpack.c.bf16 %v2111, %v2108
        %s2118 = scalar_lea.vmem %s2, 14
        %v2119 = vld [vmem:[%s2118] sm:$0x3]
        %v2121 = vsel %vm798, %v2114, 0
        %v2124 = vsel %vm798, %v2115, 0
        %v2127 = vsel %vm798, %v2116, 0
        %v2130 = vsel %vm798, %v2117, 0
        %v2133 = vsel %vm811, %v2119, 0
        %2135 = vmatprep.subr.bf16.mxu0 0
        %2136 = vmatpush1.bf16.msra.mxu0 0
        %2137 = vmatprep.subr.bf16.mxu0 0
        %2138 = vmatpush1.bf16.msra.mxu0 0
        %2139 = vmatprep.subr.bf16.mxu0 0
        %2140 = vmatpush1.bf16.msra.mxu0 0
        %2141 = vmatprep.subr.bf16.mxu0 0
        %2142 = vmatpush1.bf16.msra.mxu0 0
        %2143 = vmatprep.subr.bf16.mxu0 0
        %2144 = vmatpush1.bf16.msra.mxu0 0
        %2145 = vmatprep.subr.bf16.mxu0 0
        %2146 = vmatpush1.bf16.msra.mxu0 0
        %2147 = vmatprep.subr.bf16.mxu0 0
        %2148 = vmatpush1.bf16.msra.mxu0 0
        %2149 = vmatprep.subr.bf16.mxu0 0
        %2150 = vmatpush1.bf16.msra.mxu0 %v2133
        %2151 = vmatprep.subr.bf16.mxu0 0
        %2152 = vmatpush2.bf16.msra.mxu0 0
        %2153 = vmatprep.subr.bf16.mxu0 0
        %2154 = vmatpush2.bf16.msra.mxu0 0
        %2155 = vmatprep.subr.bf16.mxu0 0
        %2156 = vmatpush2.bf16.msra.mxu0 0
        %2157 = vmatprep.subr.bf16.mxu0 0
        %2158 = vmatpush2.bf16.msra.mxu0 0
        %2159 = vmatprep.subr.bf16.mxu0 0
        %2160 = vmatpush2.bf16.msra.mxu0 0
        %2161 = vmatprep.subr.bf16.mxu0 0
        %2162 = vmatpush2.bf16.msra.mxu0 0
        %2163 = vmatprep.subr.bf16.mxu0 0
        %2164 = vmatpush2.bf16.msra.mxu0 0
        %2165 = vmatprep.subr.bf16.mxu0 0
        %2166 = vmatpush2.bf16.msra.mxu0 0
        %2167 = vmatprep.mubr.bf16.mxu0 0
        %2168 = vmatmul.mubr.bf16.gmra.mxu0 %v2121
        %v2169 = vpop.f32.mrf.mxu0
        %v2170 = vadd.f32 0.0, %v2169
        %v2171 = vpop.f32.mrf.mxu0
        %v2172 = vpop.f32.mrf.mxu0
        %v2173 = vadd.f32 0.0, %v2172
        %v2174 = vpop.f32.mrf.mxu0
        %2175 = vmatprep.mubr.bf16.mxu0 0
        %2176 = vmatmul.mubr.bf16.gmra.mxu0 %v2124
        %v2177 = vpop.f32.mrf.mxu0
        %v2178 = vadd.f32 0.0, %v2177
        %v2179 = vpop.f32.mrf.mxu0
        %v2180 = vpop.f32.mrf.mxu0
        %v2181 = vadd.f32 0.0, %v2180
        %v2182 = vpop.f32.mrf.mxu0
        %2183 = vmatprep.mubr.bf16.mxu0 0
        %2184 = vmatmul.mubr.bf16.gmra.mxu0 %v2127
        %v2185 = vpop.f32.mrf.mxu0
        %v2186 = vadd.f32 0.0, %v2185
        %v2187 = vpop.f32.mrf.mxu0
        %v2188 = vpop.f32.mrf.mxu0
        %v2189 = vadd.f32 0.0, %v2188
        %v2190 = vpop.f32.mrf.mxu0
        %2191 = vmatprep.mubr.bf16.mxu0 0
        %2192 = vmatmul.mubr.bf16.gmra.mxu0 %v2130
        %v2193 = vpop.f32.mrf.mxu0
        %v2194 = vadd.f32 0.0, %v2193
        %v2195 = vpop.f32.mrf.mxu0
        %v2196 = vpop.f32.mrf.mxu0
        %v2197 = vadd.f32 0.0, %v2196
        %v2198 = vpop.f32.mrf.mxu0
        %2199 = vdwg.mxu0
        %v2200 = vadd.f32 %v1992, %v2170
        %v2201 = vadd.f32 %v1993, %v2173
        %v2202 = vadd.f32 %v1994, %v2178
        %v2203 = vadd.f32 %v1995, %v2181
        %v2204 = vadd.f32 %v1996, %v2186
        %v2205 = vadd.f32 %v1997, %v2189
        %v2206 = vadd.f32 %v1998, %v2194
        %v2207 = vadd.f32 %v1999, %v2197
        %s2208 = scalar_lea.vmem [#allocation3], 512
        %v2209 = vld [vmem:[%s2208] sm:$0xff]
        %v2210 = vld [vmem:[%s2208 + $0x8] sm:$0xff]
        %v2211 = vld [vmem:[%s2208 + $0x10] sm:$0xff]
        %v2212 = vld [vmem:[%s2208 + $0x18] sm:$0xff]
        %v2213 = vld [vmem:[%s2208 + $0x20] sm:$0xff]
        %v2214 = vld [vmem:[%s2208 + $0x28] sm:$0xff]
        %v2215 = vld [vmem:[%s2208 + $0x30] sm:$0xff]
        %v2216 = vld [vmem:[%s2208 + $0x38] sm:$0xff]
        %v2225 = vunpack.c.l.b16 %v2209
        %v2226 = vunpack.c.h.b16 %v2209
        %v2227 = vunpack.c.l.b16 %v2210
        %v2228 = vunpack.c.h.b16 %v2210
        %v2229 = vunpack.c.l.b16 %v2211
        %v2230 = vunpack.c.h.b16 %v2211
        %v2231 = vunpack.c.l.b16 %v2212
        %v2232 = vunpack.c.h.b16 %v2212
        %v2233 = vunpack.c.l.b16 %v2213
        %v2234 = vunpack.c.h.b16 %v2213
        %v2235 = vunpack.c.l.b16 %v2214
        %v2236 = vunpack.c.h.b16 %v2214
        %v2237 = vunpack.c.l.b16 %v2215
        %v2238 = vunpack.c.h.b16 %v2215
        %v2239 = vunpack.c.l.b16 %v2216
        %v2240 = vunpack.c.h.b16 %v2216
        %v2241 = vpack.c.b16 %v2227, %v2225
        %v2242 = vpack.c.b16 %v2228, %v2226
        %v2243 = vpack.c.b16 %v2231, %v2229
        %v2244 = vpack.c.b16 %v2232, %v2230
        %v2245 = vpack.c.b16 %v2235, %v2233
        %v2246 = vpack.c.b16 %v2236, %v2234
        %v2247 = vpack.c.b16 %v2239, %v2237
        %v2248 = vpack.c.b16 %v2240, %v2238
        %2257 = vmatprep.subr.bf16.mxu0 0
        %2258 = vmatpush1.bf16.msra.mxu0 %v583
        %2259 = vmatprep.subr.bf16.mxu0 0
        %2260 = vmatpush1.bf16.msra.mxu0 %v582
        %2261 = vmatprep.subr.bf16.mxu0 0
        %2262 = vmatpush1.bf16.msra.mxu0 %v581
        %2263 = vmatprep.subr.bf16.mxu0 0
        %2264 = vmatpush1.bf16.msra.mxu0 %v580
        %2265 = vmatprep.subr.bf16.mxu0 0
        %2266 = vmatpush1.bf16.msra.mxu0 %v579
        %2267 = vmatprep.subr.bf16.mxu0 0
        %2268 = vmatpush1.bf16.msra.mxu0 %v578
        %2269 = vmatprep.subr.bf16.mxu0 0
        %2270 = vmatpush1.bf16.msra.mxu0 %v577
        %2271 = vmatprep.subr.bf16.mxu0 0
        %2272 = vmatpush1.bf16.msra.mxu0 %v576
        %2273 = vmatprep.subr.bf16.mxu0 0
        %2274 = vmatpush2.bf16.msra.mxu0 %v591
        %2275 = vmatprep.subr.bf16.mxu0 0
        %2276 = vmatpush2.bf16.msra.mxu0 %v590
        %2277 = vmatprep.subr.bf16.mxu0 0
        %2278 = vmatpush2.bf16.msra.mxu0 %v589
        %2279 = vmatprep.subr.bf16.mxu0 0
        %2280 = vmatpush2.bf16.msra.mxu0 %v588
        %2281 = vmatprep.subr.bf16.mxu0 0
        %2282 = vmatpush2.bf16.msra.mxu0 %v587
        %2283 = vmatprep.subr.bf16.mxu0 0
        %2284 = vmatpush2.bf16.msra.mxu0 %v586
        %2285 = vmatprep.subr.bf16.mxu0 0
        %2286 = vmatpush2.bf16.msra.mxu0 %v585
        %2287 = vmatprep.subr.bf16.mxu0 0
        %2288 = vmatpush2.bf16.msra.mxu0 %v584
        %2289 = vmatprep.mubr.bf16.mxu0 %v2242
        %2290 = vmatmul.mubr.bf16.gmra.mxu0 %v2241
        %v2291 = vpop.f32.mrf.mxu0
        %v2292 = vadd.f32 0.0, %v2291
        %v2293 = vpop.f32.mrf.mxu0
        %v2294 = vpop.f32.mrf.mxu0
        %v2295 = vadd.f32 0.0, %v2294
        %v2296 = vpop.f32.mrf.mxu0
        %2297 = vmatprep.mubr.bf16.mxu0 %v2244
        %2298 = vmatmul.mubr.bf16.gmra.mxu0 %v2243
        %v2299 = vpop.f32.mrf.mxu0
        %v2300 = vadd.f32 0.0, %v2299
        %v2301 = vpop.f32.mrf.mxu0
        %v2302 = vpop.f32.mrf.mxu0
        %v2303 = vadd.f32 0.0, %v2302
        %v2304 = vpop.f32.mrf.mxu0
        %2305 = vmatprep.mubr.bf16.mxu0 %v2246
        %2306 = vmatmul.mubr.bf16.gmra.mxu0 %v2245
        %v2307 = vpop.f32.mrf.mxu0
        %v2308 = vadd.f32 0.0, %v2307
        %v2309 = vpop.f32.mrf.mxu0
        %v2310 = vpop.f32.mrf.mxu0
        %v2311 = vadd.f32 0.0, %v2310
        %v2312 = vpop.f32.mrf.mxu0
        %2313 = vmatprep.mubr.bf16.mxu0 %v2248
        %2314 = vmatmul.mubr.bf16.gmra.mxu0 %v2247
        %v2315 = vpop.f32.mrf.mxu0
        %v2316 = vadd.f32 0.0, %v2315
        %v2317 = vpop.f32.mrf.mxu0
        %v2318 = vpop.f32.mrf.mxu0
        %v2319 = vadd.f32 0.0, %v2318
        %v2320 = vpop.f32.mrf.mxu0
        %2321 = vdwg.mxu0
        %v2322 = vpack.c.bf16 %v2295, %v2292
        %v2323 = vpack.c.bf16 %v2303, %v2300
        %v2324 = vpack.c.bf16 %v2311, %v2308
        %v2325 = vpack.c.bf16 %v2319, %v2316
        %s2326 = scalar_lea.vmem %s2, 16
        %v2327 = vld [vmem:[%s2326] sm:$0x3]
        %v2329 = vsel %vm798, %v2322, 0
        %v2332 = vsel %vm798, %v2323, 0
        %v2335 = vsel %vm798, %v2324, 0
        %v2338 = vsel %vm798, %v2325, 0
        %v2341 = vsel %vm811, %v2327, 0
        %2343 = vmatprep.subr.bf16.mxu0 0
        %2344 = vmatpush1.bf16.msra.mxu0 0
        %2345 = vmatprep.subr.bf16.mxu0 0
        %2346 = vmatpush1.bf16.msra.mxu0 0
        %2347 = vmatprep.subr.bf16.mxu0 0
        %2348 = vmatpush1.bf16.msra.mxu0 0
        %2349 = vmatprep.subr.bf16.mxu0 0
        %2350 = vmatpush1.bf16.msra.mxu0 0
        %2351 = vmatprep.subr.bf16.mxu0 0
        %2352 = vmatpush1.bf16.msra.mxu0 0
        %2353 = vmatprep.subr.bf16.mxu0 0
        %2354 = vmatpush1.bf16.msra.mxu0 0
        %2355 = vmatprep.subr.bf16.mxu0 0
        %2356 = vmatpush1.bf16.msra.mxu0 0
        %2357 = vmatprep.subr.bf16.mxu0 0
        %2358 = vmatpush1.bf16.msra.mxu0 %v2341
        %2359 = vmatprep.subr.bf16.mxu0 0
        %2360 = vmatpush2.bf16.msra.mxu0 0
        %2361 = vmatprep.subr.bf16.mxu0 0
        %2362 = vmatpush2.bf16.msra.mxu0 0
        %2363 = vmatprep.subr.bf16.mxu0 0
        %2364 = vmatpush2.bf16.msra.mxu0 0
        %2365 = vmatprep.subr.bf16.mxu0 0
        %2366 = vmatpush2.bf16.msra.mxu0 0
        %2367 = vmatprep.subr.bf16.mxu0 0
        %2368 = vmatpush2.bf16.msra.mxu0 0
        %2369 = vmatprep.subr.bf16.mxu0 0
        %2370 = vmatpush2.bf16.msra.mxu0 0
        %2371 = vmatprep.subr.bf16.mxu0 0
        %2372 = vmatpush2.bf16.msra.mxu0 0
        %2373 = vmatprep.subr.bf16.mxu0 0
        %2374 = vmatpush2.bf16.msra.mxu0 0
        %2375 = vmatprep.mubr.bf16.mxu0 0
        %2376 = vmatmul.mubr.bf16.gmra.mxu0 %v2329
        %v2377 = vpop.f32.mrf.mxu0
        %v2378 = vadd.f32 0.0, %v2377
        %v2379 = vpop.f32.mrf.mxu0
        %v2380 = vpop.f32.mrf.mxu0
        %v2381 = vadd.f32 0.0, %v2380
        %v2382 = vpop.f32.mrf.mxu0
        %2383 = vmatprep.mubr.bf16.mxu0 0
        %2384 = vmatmul.mubr.bf16.gmra.mxu0 %v2332
        %v2385 = vpop.f32.mrf.mxu0
        %v2386 = vadd.f32 0.0, %v2385
        %v2387 = vpop.f32.mrf.mxu0
        %v2388 = vpop.f32.mrf.mxu0
        %v2389 = vadd.f32 0.0, %v2388
        %v2390 = vpop.f32.mrf.mxu0
        %2391 = vmatprep.mubr.bf16.mxu0 0
        %2392 = vmatmul.mubr.bf16.gmra.mxu0 %v2335
        %v2393 = vpop.f32.mrf.mxu0
        %v2394 = vadd.f32 0.0, %v2393
        %v2395 = vpop.f32.mrf.mxu0
        %v2396 = vpop.f32.mrf.mxu0
        %v2397 = vadd.f32 0.0, %v2396
        %v2398 = vpop.f32.mrf.mxu0
        %2399 = vmatprep.mubr.bf16.mxu0 0
        %2400 = vmatmul.mubr.bf16.gmra.mxu0 %v2338
        %v2401 = vpop.f32.mrf.mxu0
        %v2402 = vadd.f32 0.0, %v2401
        %v2403 = vpop.f32.mrf.mxu0
        %v2404 = vpop.f32.mrf.mxu0
        %v2405 = vadd.f32 0.0, %v2404
        %v2406 = vpop.f32.mrf.mxu0
        %2407 = vdwg.mxu0
        %v2408 = vadd.f32 %v2200, %v2378
        %v2409 = vadd.f32 %v2201, %v2381
        %v2410 = vadd.f32 %v2202, %v2386
        %v2411 = vadd.f32 %v2203, %v2389
        %v2412 = vadd.f32 %v2204, %v2394
        %v2413 = vadd.f32 %v2205, %v2397
        %v2414 = vadd.f32 %v2206, %v2402
        %v2415 = vadd.f32 %v2207, %v2405
        %v2416 = vld [vmem:[%s3] sm:$0x1]
        %v2418 = vlaneseq
        %v2419 = vshrl.u32 %v2418, 7
        %v2420 = vsub.s32 0, %v2419
        %v2421 = vrot.slane %v2416, %v2420
        %v2423 = vadd.f32 %v2408, %v2421
        %v2424 = vadd.f32 %v2409, %v2421
        %v2425 = vadd.f32 %v2410, %v2421
        %v2426 = vadd.f32 %v2411, %v2421
        %v2427 = vadd.f32 %v2412, %v2421
        %v2428 = vadd.f32 %v2413, %v2421
        %v2429 = vadd.f32 %v2414, %v2421
        %v2430 = vadd.f32 %v2415, %v2421
        %v2431 = vmax.f32 %v2423, 0.0
        %v2432 = vmax.f32 %v2424, 0.0
        %v2433 = vmax.f32 %v2425, 0.0
        %v2434 = vmax.f32 %v2426, 0.0
        %v2435 = vmax.f32 %v2427, 0.0
        %v2436 = vmax.f32 %v2428, 0.0
        %v2437 = vmax.f32 %v2429, 0.0
        %v2438 = vmax.f32 %v2430, 0.0
        %v2439 = vpack.c.bf16 %v2432, %v2431
        %v2440 = vpack.c.bf16 %v2434, %v2433
        %v2441 = vpack.c.bf16 %v2436, %v2435
        %v2442 = vpack.c.bf16 %v2438, %v2437
        %v2443 = vld [vmem:[%s4] sm:$0xf]
        %v2444 = vld [vmem:[%s4 + $0x4] sm:$0xf]
        %v2447 = vunpack.c.l.b16 %v2443
        %v2448 = vunpack.c.l.b16 %v2444
        %v2449 = vpack.c.b16 %v2448, %v2447
        %vm2450 = vcmask 523264
        %v2452 = vsel %vm2450, %v2449, 0
        %2454 = vmatprep.subr.bf16.mxu0 0
        %2455 = vmatpush1.bf16.msra.mxu0 0
        %2456 = vmatprep.subr.bf16.mxu0 0
        %2457 = vmatpush1.bf16.msra.mxu0 0
        %2458 = vmatprep.subr.bf16.mxu0 0
        %2459 = vmatpush1.bf16.msra.mxu0 0
        %2460 = vmatprep.subr.bf16.mxu0 0
        %2461 = vmatpush1.bf16.msra.mxu0 0
        %2462 = vmatprep.subr.bf16.mxu0 0
        %2463 = vmatpush1.bf16.msra.mxu0 %v2442
        %2464 = vmatprep.subr.bf16.mxu0 0
        %2465 = vmatpush1.bf16.msra.mxu0 %v2441
        %2466 = vmatprep.subr.bf16.mxu0 0
        %2467 = vmatpush1.bf16.msra.mxu0 %v2440
        %2468 = vmatprep.subr.bf16.mxu0 0
        %2469 = vmatpush1.bf16.msra.mxu0 %v2439
        %2470 = vmatprep.subr.bf16.mxu0 0
        %2471 = vmatpush2.bf16.msra.mxu0 0
        %2472 = vmatprep.subr.bf16.mxu0 0
        %2473 = vmatpush2.bf16.msra.mxu0 0
        %2474 = vmatprep.subr.bf16.mxu0 0
        %2475 = vmatpush2.bf16.msra.mxu0 0
        %2476 = vmatprep.subr.bf16.mxu0 0
        %2477 = vmatpush2.bf16.msra.mxu0 0
        %2478 = vmatprep.subr.bf16.mxu0 0
        %2479 = vmatpush2.bf16.msra.mxu0 0
        %2480 = vmatprep.subr.bf16.mxu0 0
        %2481 = vmatpush2.bf16.msra.mxu0 0
        %2482 = vmatprep.subr.bf16.mxu0 0
        %2483 = vmatpush2.bf16.msra.mxu0 0
        %2484 = vmatprep.subr.bf16.mxu0 0
        %2485 = vmatpush2.bf16.msra.mxu0 0
        %2486 = vmatprep.mubr.bf16.mxu0 0
        %2487 = vmatmul.mubr.bf16.gmra.mxu0 %v2452
        %v2488 = vpop.f32.mrf.mxu0
        %v2489 = vadd.f32 0.0, %v2488
        %v2490 = vpop.f32.mrf.mxu0
        %v2491 = vpop.f32.mrf.mxu0
        %v2492 = vadd.f32 0.0, %v2491
        %v2493 = vpop.f32.mrf.mxu0
        %2494 = vdwg.mxu0
        %v2495 = vpack.c.bf16 %v2492, %v2489
        %v2496 = vld [vmem:[%s5] sm:$0xf]
        %v2497 = vld [vmem:[%s5 + $0x4] sm:$0xf]
        %s2498 = scalar_lea.vmem %s4, 8
        %v2499 = vld [vmem:[%s2498] sm:$0xf]
        %v2500 = vld [vmem:[%s2498 + $0x4] sm:$0xf]
        %v2503 = vunpack.c.l.b16 %v2499
        %v2504 = vunpack.c.l.b16 %v2500
        %v2505 = vpack.c.b16 %v2504, %v2503
        %v2507 = vsel %vm2450, %v2505, 0
        %2509 = vmatprep.subr.bf16.mxu0 0
        %2510 = vmatpush1.bf16.msra.mxu0 0
        %2511 = vmatprep.subr.bf16.mxu0 0
        %2512 = vmatpush1.bf16.msra.mxu0 0
        %2513 = vmatprep.subr.bf16.mxu0 0
        %2514 = vmatpush1.bf16.msra.mxu0 0
        %2515 = vmatprep.subr.bf16.mxu0 0
        %2516 = vmatpush1.bf16.msra.mxu0 0
        %2517 = vmatprep.subr.bf16.mxu0 0
        %2518 = vmatpush1.bf16.msra.mxu0 %v2442
        %2519 = vmatprep.subr.bf16.mxu0 0
        %2520 = vmatpush1.bf16.msra.mxu0 %v2441
        %2521 = vmatprep.subr.bf16.mxu0 0
        %2522 = vmatpush1.bf16.msra.mxu0 %v2440
        %2523 = vmatprep.subr.bf16.mxu0 0
        %2524 = vmatpush1.bf16.msra.mxu0 %v2439
        %2525 = vmatprep.subr.bf16.mxu0 0
        %2526 = vmatpush2.bf16.msra.mxu0 0
        %2527 = vmatprep.subr.bf16.mxu0 0
        %2528 = vmatpush2.bf16.msra.mxu0 0
        %2529 = vmatprep.subr.bf16.mxu0 0
        %2530 = vmatpush2.bf16.msra.mxu0 0
        %2531 = vmatprep.subr.bf16.mxu0 0
        %2532 = vmatpush2.bf16.msra.mxu0 0
        %2533 = vmatprep.subr.bf16.mxu0 0
        %2534 = vmatpush2.bf16.msra.mxu0 0
        %2535 = vmatprep.subr.bf16.mxu0 0
        %2536 = vmatpush2.bf16.msra.mxu0 0
        %2537 = vmatprep.subr.bf16.mxu0 0
        %2538 = vmatpush2.bf16.msra.mxu0 0
        %2539 = vmatprep.subr.bf16.mxu0 0
        %2540 = vmatpush2.bf16.msra.mxu0 0
        %2541 = vmatprep.mubr.bf16.mxu0 0
        %2542 = vmatmul.mubr.bf16.gmra.mxu0 %v2507
        %v2543 = vpop.f32.mrf.mxu0
        %v2544 = vadd.f32 0.0, %v2543
        %v2545 = vpop.f32.mrf.mxu0
        %v2546 = vpop.f32.mrf.mxu0
        %v2547 = vadd.f32 0.0, %v2546
        %v2548 = vpop.f32.mrf.mxu0
        %2549 = vdwg.mxu0
        %v2550 = vpack.c.bf16 %v2547, %v2544
        %s2551 = scalar_lea.vmem %s5, 8
        %v2552 = vld [vmem:[%s2551] sm:$0xf]
        %v2553 = vld [vmem:[%s2551 + $0x4] sm:$0xf]
        %v2556 = vunpack.c.l.b16 %v2552
        %v2557 = vunpack.c.l.b16 %v2553
        %v2558 = vpack.c.b16 %v2557, %v2556
        %vm2560 = vcmask 130048
        %v2562 = vsel %vm2560, %v2550, 0
        %2564 = vmatprep.subr.bf16.mxu0 0
        %2565 = vmatpush1.bf16.msra.mxu0 0
        %2566 = vmatprep.subr.bf16.mxu0 0
        %2567 = vmatpush1.bf16.msra.mxu0 0
        %2568 = vmatprep.subr.bf16.mxu0 0
        %2569 = vmatpush1.bf16.msra.mxu0 0
        %2570 = vmatprep.subr.bf16.mxu0 0
        %2571 = vmatpush1.bf16.msra.mxu0 0
        %2572 = vmatprep.subr.bf16.mxu0 0
        %2573 = vmatpush1.bf16.msra.mxu0 0
        %2574 = vmatprep.subr.bf16.mxu0 0
        %2575 = vmatpush1.bf16.msra.mxu0 0
        %2576 = vmatprep.subr.bf16.mxu0 0
        %2577 = vmatpush1.bf16.msra.mxu0 0
        %2578 = vmatprep.subr.bf16.mxu0 0
        %2579 = vmatpush1.bf16.msra.mxu0 %v2558
        %2580 = vmatprep.subr.bf16.mxu0 0
        %2581 = vmatpush2.bf16.msra.mxu0 0
        %2582 = vmatprep.subr.bf16.mxu0 0
        %2583 = vmatpush2.bf16.msra.mxu0 0
        %2584 = vmatprep.subr.bf16.mxu0 0
        %2585 = vmatpush2.bf16.msra.mxu0 0
        %2586 = vmatprep.subr.bf16.mxu0 0
        %2587 = vmatpush2.bf16.msra.mxu0 0
        %2588 = vmatprep.subr.bf16.mxu0 0
        %2589 = vmatpush2.bf16.msra.mxu0 0
        %2590 = vmatprep.subr.bf16.mxu0 0
        %2591 = vmatpush2.bf16.msra.mxu0 0
        %2592 = vmatprep.subr.bf16.mxu0 0
        %2593 = vmatpush2.bf16.msra.mxu0 0
        %2594 = vmatprep.subr.bf16.mxu0 0
        %2595 = vmatpush2.bf16.msra.mxu0 0
        %2596 = vmatprep.mubr.bf16.mxu0 0
        %2597 = vmatmul.mubr.bf16.gmra.mxu0 %v2562
        %v2598 = vpop.f32.mrf.mxu0
        %v2599 = vadd.f32 0.0, %v2598
        %v2600 = vpop.f32.mrf.mxu0
        %v2601 = vpop.f32.mrf.mxu0
        %v2602 = vadd.f32 0.0, %v2601
        %v2603 = vpop.f32.mrf.mxu0
        %2604 = vdwg.mxu0
        %v2607 = vunpack.c.l.b16 %v2496
        %v2608 = vunpack.c.l.b16 %v2497
        %v2609 = vpack.c.b16 %v2608, %v2607
        %v2612 = vsel %vm2560, %v2495, 0
        %2614 = vmatprep.subr.bf16.mxu0 0
        %2615 = vmatpush1.bf16.msra.mxu0 0
        %2616 = vmatprep.subr.bf16.mxu0 0
        %2617 = vmatpush1.bf16.msra.mxu0 0
        %2618 = vmatprep.subr.bf16.mxu0 0
        %2619 = vmatpush1.bf16.msra.mxu0 0
        %2620 = vmatprep.subr.bf16.mxu0 0
        %2621 = vmatpush1.bf16.msra.mxu0 0
        %2622 = vmatprep.subr.bf16.mxu0 0
        %2623 = vmatpush1.bf16.msra.mxu0 0
        %2624 = vmatprep.subr.bf16.mxu0 0
        %2625 = vmatpush1.bf16.msra.mxu0 0
        %2626 = vmatprep.subr.bf16.mxu0 0
        %2627 = vmatpush1.bf16.msra.mxu0 0
        %2628 = vmatprep.subr.bf16.mxu0 0
        %2629 = vmatpush1.bf16.msra.mxu0 %v2609
        %2630 = vmatprep.subr.bf16.mxu0 0
        %2631 = vmatpush2.bf16.msra.mxu0 0
        %2632 = vmatprep.subr.bf16.mxu0 0
        %2633 = vmatpush2.bf16.msra.mxu0 0
        %2634 = vmatprep.subr.bf16.mxu0 0
        %2635 = vmatpush2.bf16.msra.mxu0 0
        %2636 = vmatprep.subr.bf16.mxu0 0
        %2637 = vmatpush2.bf16.msra.mxu0 0
        %2638 = vmatprep.subr.bf16.mxu0 0
        %2639 = vmatpush2.bf16.msra.mxu0 0
        %2640 = vmatprep.subr.bf16.mxu0 0
        %2641 = vmatpush2.bf16.msra.mxu0 0
        %2642 = vmatprep.subr.bf16.mxu0 0
        %2643 = vmatpush2.bf16.msra.mxu0 0
        %2644 = vmatprep.subr.bf16.mxu0 0
        %2645 = vmatpush2.bf16.msra.mxu0 0
        %2646 = vmatprep.mubr.bf16.mxu0 0
        %2647 = vmatmul.mubr.bf16.gmra.mxu0 %v2612
        %v2648 = vpop.f32.mrf.mxu0
        %v2649 = vadd.f32 %v2599, %v2648
        %v2650 = vpop.f32.mrf.mxu0
        %v2651 = vpop.f32.mrf.mxu0
        %v2652 = vadd.f32 %v2602, %v2651
        %v2653 = vpop.f32.mrf.mxu0
        %2654 = vdwg.mxu0
        %s2655 = scalar_lea.vmem %s4, 16
        %v2656 = vld [vmem:[%s2655] sm:$0xf]
        %v2657 = vld [vmem:[%s2655 + $0x4] sm:$0xf]
        %v2660 = vunpack.c.l.b16 %v2656
        %v2661 = vunpack.c.l.b16 %v2657
        %v2662 = vpack.c.b16 %v2661, %v2660
        %v2664 = vsel %vm2450, %v2662, 0
        %2666 = vmatprep.subr.bf16.mxu0 0
        %2667 = vmatpush1.bf16.msra.mxu0 0
        %2668 = vmatprep.subr.bf16.mxu0 0
        %2669 = vmatpush1.bf16.msra.mxu0 0
        %2670 = vmatprep.subr.bf16.mxu0 0
        %2671 = vmatpush1.bf16.msra.mxu0 0
        %2672 = vmatprep.subr.bf16.mxu0 0
        %2673 = vmatpush1.bf16.msra.mxu0 0
        %2674 = vmatprep.subr.bf16.mxu0 0
        %2675 = vmatpush1.bf16.msra.mxu0 %v2442
        %2676 = vmatprep.subr.bf16.mxu0 0
        %2677 = vmatpush1.bf16.msra.mxu0 %v2441
        %2678 = vmatprep.subr.bf16.mxu0 0
        %2679 = vmatpush1.bf16.msra.mxu0 %v2440
        %2680 = vmatprep.subr.bf16.mxu0 0
        %2681 = vmatpush1.bf16.msra.mxu0 %v2439
        %2682 = vmatprep.subr.bf16.mxu0 0
        %2683 = vmatpush2.bf16.msra.mxu0 0
        %2684 = vmatprep.subr.bf16.mxu0 0
        %2685 = vmatpush2.bf16.msra.mxu0 0
        %2686 = vmatprep.subr.bf16.mxu0 0
        %2687 = vmatpush2.bf16.msra.mxu0 0
        %2688 = vmatprep.subr.bf16.mxu0 0
        %2689 = vmatpush2.bf16.msra.mxu0 0
        %2690 = vmatprep.subr.bf16.mxu0 0
        %2691 = vmatpush2.bf16.msra.mxu0 0
        %2692 = vmatprep.subr.bf16.mxu0 0
        %2693 = vmatpush2.bf16.msra.mxu0 0
        %2694 = vmatprep.subr.bf16.mxu0 0
        %2695 = vmatpush2.bf16.msra.mxu0 0
        %2696 = vmatprep.subr.bf16.mxu0 0
        %2697 = vmatpush2.bf16.msra.mxu0 0
        %2698 = vmatprep.mubr.bf16.mxu0 0
        %2699 = vmatmul.mubr.bf16.gmra.mxu0 %v2664
        %v2700 = vpop.f32.mrf.mxu0
        %v2701 = vadd.f32 0.0, %v2700
        %v2702 = vpop.f32.mrf.mxu0
        %v2703 = vpop.f32.mrf.mxu0
        %v2704 = vadd.f32 0.0, %v2703
        %v2705 = vpop.f32.mrf.mxu0
        %2706 = vdwg.mxu0
        %v2707 = vpack.c.bf16 %v2704, %v2701
        %s2708 = scalar_lea.vmem %s5, 16
        %v2709 = vld [vmem:[%s2708] sm:$0xf]
        %v2710 = vld [vmem:[%s2708 + $0x4] sm:$0xf]
        %v2713 = vunpack.c.l.b16 %v2709
        %v2714 = vunpack.c.l.b16 %v2710
        %v2715 = vpack.c.b16 %v2714, %v2713
        %v2718 = vsel %vm2560, %v2707, 0
        %2720 = vmatprep.subr.bf16.mxu0 0
        %2721 = vmatpush1.bf16.msra.mxu0 0
        %2722 = vmatprep.subr.bf16.mxu0 0
        %2723 = vmatpush1.bf16.msra.mxu0 0
        %2724 = vmatprep.subr.bf16.mxu0 0
        %2725 = vmatpush1.bf16.msra.mxu0 0
        %2726 = vmatprep.subr.bf16.mxu0 0
        %2727 = vmatpush1.bf16.msra.mxu0 0
        %2728 = vmatprep.subr.bf16.mxu0 0
        %2729 = vmatpush1.bf16.msra.mxu0 0
        %2730 = vmatprep.subr.bf16.mxu0 0
        %2731 = vmatpush1.bf16.msra.mxu0 0
        %2732 = vmatprep.subr.bf16.mxu0 0
        %2733 = vmatpush1.bf16.msra.mxu0 0
        %2734 = vmatprep.subr.bf16.mxu0 0
        %2735 = vmatpush1.bf16.msra.mxu0 %v2715
        %2736 = vmatprep.subr.bf16.mxu0 0
        %2737 = vmatpush2.bf16.msra.mxu0 0
        %2738 = vmatprep.subr.bf16.mxu0 0
        %2739 = vmatpush2.bf16.msra.mxu0 0
        %2740 = vmatprep.subr.bf16.mxu0 0
        %2741 = vmatpush2.bf16.msra.mxu0 0
        %2742 = vmatprep.subr.bf16.mxu0 0
        %2743 = vmatpush2.bf16.msra.mxu0 0
        %2744 = vmatprep.subr.bf16.mxu0 0
        %2745 = vmatpush2.bf16.msra.mxu0 0
        %2746 = vmatprep.subr.bf16.mxu0 0
        %2747 = vmatpush2.bf16.msra.mxu0 0
        %2748 = vmatprep.subr.bf16.mxu0 0
        %2749 = vmatpush2.bf16.msra.mxu0 0
        %2750 = vmatprep.subr.bf16.mxu0 0
        %2751 = vmatpush2.bf16.msra.mxu0 0
        %2752 = vmatprep.mubr.bf16.mxu0 0
        %2753 = vmatmul.mubr.bf16.gmra.mxu0 %v2718
        %v2754 = vpop.f32.mrf.mxu0
        %v2755 = vadd.f32 0.0, %v2754
        %v2756 = vpop.f32.mrf.mxu0
        %v2757 = vpop.f32.mrf.mxu0
        %v2758 = vadd.f32 0.0, %v2757
        %v2759 = vpop.f32.mrf.mxu0
        %2760 = vdwg.mxu0
        %v2761 = vadd.f32 %v2649, %v2755
        %v2762 = vadd.f32 %v2652, %v2758
        %s2763 = scalar_lea.vmem %s4, 24
        %v2764 = vld [vmem:[%s2763] sm:$0xf]
        %v2765 = vld [vmem:[%s2763 + $0x4] sm:$0xf]
        %v2768 = vunpack.c.l.b16 %v2764
        %v2769 = vunpack.c.l.b16 %v2765
        %v2770 = vpack.c.b16 %v2769, %v2768
        %v2772 = vsel %vm2450, %v2770, 0
        %2774 = vmatprep.subr.bf16.mxu0 0
        %2775 = vmatpush1.bf16.msra.mxu0 0
        %2776 = vmatprep.subr.bf16.mxu0 0
        %2777 = vmatpush1.bf16.msra.mxu0 0
        %2778 = vmatprep.subr.bf16.mxu0 0
        %2779 = vmatpush1.bf16.msra.mxu0 0
        %2780 = vmatprep.subr.bf16.mxu0 0
        %2781 = vmatpush1.bf16.msra.mxu0 0
        %2782 = vmatprep.subr.bf16.mxu0 0
        %2783 = vmatpush1.bf16.msra.mxu0 %v2442
        %2784 = vmatprep.subr.bf16.mxu0 0
        %2785 = vmatpush1.bf16.msra.mxu0 %v2441
        %2786 = vmatprep.subr.bf16.mxu0 0
        %2787 = vmatpush1.bf16.msra.mxu0 %v2440
        %2788 = vmatprep.subr.bf16.mxu0 0
        %2789 = vmatpush1.bf16.msra.mxu0 %v2439
        %2790 = vmatprep.subr.bf16.mxu0 0
        %2791 = vmatpush2.bf16.msra.mxu0 0
        %2792 = vmatprep.subr.bf16.mxu0 0
        %2793 = vmatpush2.bf16.msra.mxu0 0
        %2794 = vmatprep.subr.bf16.mxu0 0
        %2795 = vmatpush2.bf16.msra.mxu0 0
        %2796 = vmatprep.subr.bf16.mxu0 0
        %2797 = vmatpush2.bf16.msra.mxu0 0
        %2798 = vmatprep.subr.bf16.mxu0 0
        %2799 = vmatpush2.bf16.msra.mxu0 0
        %2800 = vmatprep.subr.bf16.mxu0 0
        %2801 = vmatpush2.bf16.msra.mxu0 0
        %2802 = vmatprep.subr.bf16.mxu0 0
        %2803 = vmatpush2.bf16.msra.mxu0 0
        %2804 = vmatprep.subr.bf16.mxu0 0
        %2805 = vmatpush2.bf16.msra.mxu0 0
        %2806 = vmatprep.mubr.bf16.mxu0 0
        %2807 = vmatmul.mubr.bf16.gmra.mxu0 %v2772
        %v2808 = vpop.f32.mrf.mxu0
        %v2809 = vadd.f32 0.0, %v2808
        %v2810 = vpop.f32.mrf.mxu0
        %v2811 = vpop.f32.mrf.mxu0
        %v2812 = vadd.f32 0.0, %v2811
        %v2813 = vpop.f32.mrf.mxu0
        %2814 = vdwg.mxu0
        %v2815 = vpack.c.bf16 %v2812, %v2809
        %s2816 = scalar_lea.vmem %s5, 24
        %v2817 = vld [vmem:[%s2816] sm:$0xf]
        %v2818 = vld [vmem:[%s2816 + $0x4] sm:$0xf]
        %v2821 = vunpack.c.l.b16 %v2817
        %v2822 = vunpack.c.l.b16 %v2818
        %v2823 = vpack.c.b16 %v2822, %v2821
        %v2826 = vsel %vm2560, %v2815, 0
        %2828 = vmatprep.subr.bf16.mxu0 0
        %2829 = vmatpush1.bf16.msra.mxu0 0
        %2830 = vmatprep.subr.bf16.mxu0 0
        %2831 = vmatpush1.bf16.msra.mxu0 0
        %2832 = vmatprep.subr.bf16.mxu0 0
        %2833 = vmatpush1.bf16.msra.mxu0 0
        %2834 = vmatprep.subr.bf16.mxu0 0
        %2835 = vmatpush1.bf16.msra.mxu0 0
        %2836 = vmatprep.subr.bf16.mxu0 0
        %2837 = vmatpush1.bf16.msra.mxu0 0
        %2838 = vmatprep.subr.bf16.mxu0 0
        %2839 = vmatpush1.bf16.msra.mxu0 0
        %2840 = vmatprep.subr.bf16.mxu0 0
        %2841 = vmatpush1.bf16.msra.mxu0 0
        %2842 = vmatprep.subr.bf16.mxu0 0
        %2843 = vmatpush1.bf16.msra.mxu0 %v2823
        %2844 = vmatprep.subr.bf16.mxu0 0
        %2845 = vmatpush2.bf16.msra.mxu0 0
        %2846 = vmatprep.subr.bf16.mxu0 0
        %2847 = vmatpush2.bf16.msra.mxu0 0
        %2848 = vmatprep.subr.bf16.mxu0 0
        %2849 = vmatpush2.bf16.msra.mxu0 0
        %2850 = vmatprep.subr.bf16.mxu0 0
        %2851 = vmatpush2.bf16.msra.mxu0 0
        %2852 = vmatprep.subr.bf16.mxu0 0
        %2853 = vmatpush2.bf16.msra.mxu0 0
        %2854 = vmatprep.subr.bf16.mxu0 0
        %2855 = vmatpush2.bf16.msra.mxu0 0
        %2856 = vmatprep.subr.bf16.mxu0 0
        %2857 = vmatpush2.bf16.msra.mxu0 0
        %2858 = vmatprep.subr.bf16.mxu0 0
        %2859 = vmatpush2.bf16.msra.mxu0 0
        %2860 = vmatprep.mubr.bf16.mxu0 0
        %2861 = vmatmul.mubr.bf16.gmra.mxu0 %v2826
        %v2862 = vpop.f32.mrf.mxu0
        %v2863 = vadd.f32 0.0, %v2862
        %v2864 = vpop.f32.mrf.mxu0
        %v2865 = vpop.f32.mrf.mxu0
        %v2866 = vadd.f32 0.0, %v2865
        %v2867 = vpop.f32.mrf.mxu0
        %2868 = vdwg.mxu0
        %v2869 = vadd.f32 %v2761, %v2863
        %v2870 = vadd.f32 %v2762, %v2866
        %s2871 = scalar_lea.vmem %s4, 32
        %v2872 = vld [vmem:[%s2871] sm:$0xf]
        %v2873 = vld [vmem:[%s2871 + $0x4] sm:$0xf]
        %v2876 = vunpack.c.l.b16 %v2872
        %v2877 = vunpack.c.l.b16 %v2873
        %v2878 = vpack.c.b16 %v2877, %v2876
        %v2880 = vsel %vm2450, %v2878, 0
        %2882 = vmatprep.subr.bf16.mxu0 0
        %2883 = vmatpush1.bf16.msra.mxu0 0
        %2884 = vmatprep.subr.bf16.mxu0 0
        %2885 = vmatpush1.bf16.msra.mxu0 0
        %2886 = vmatprep.subr.bf16.mxu0 0
        %2887 = vmatpush1.bf16.msra.mxu0 0
        %2888 = vmatprep.subr.bf16.mxu0 0
        %2889 = vmatpush1.bf16.msra.mxu0 0
        %2890 = vmatprep.subr.bf16.mxu0 0
        %2891 = vmatpush1.bf16.msra.mxu0 %v2442
        %2892 = vmatprep.subr.bf16.mxu0 0
        %2893 = vmatpush1.bf16.msra.mxu0 %v2441
        %2894 = vmatprep.subr.bf16.mxu0 0
        %2895 = vmatpush1.bf16.msra.mxu0 %v2440
        %2896 = vmatprep.subr.bf16.mxu0 0
        %2897 = vmatpush1.bf16.msra.mxu0 %v2439
        %2898 = vmatprep.subr.bf16.mxu0 0
        %2899 = vmatpush2.bf16.msra.mxu0 0
        %2900 = vmatprep.subr.bf16.mxu0 0
        %2901 = vmatpush2.bf16.msra.mxu0 0
        %2902 = vmatprep.subr.bf16.mxu0 0
        %2903 = vmatpush2.bf16.msra.mxu0 0
        %2904 = vmatprep.subr.bf16.mxu0 0
        %2905 = vmatpush2.bf16.msra.mxu0 0
        %2906 = vmatprep.subr.bf16.mxu0 0
        %2907 = vmatpush2.bf16.msra.mxu0 0
        %2908 = vmatprep.subr.bf16.mxu0 0
        %2909 = vmatpush2.bf16.msra.mxu0 0
        %2910 = vmatprep.subr.bf16.mxu0 0
        %2911 = vmatpush2.bf16.msra.mxu0 0
        %2912 = vmatprep.subr.bf16.mxu0 0
        %2913 = vmatpush2.bf16.msra.mxu0 0
        %2914 = vmatprep.mubr.bf16.mxu0 0
        %2915 = vmatmul.mubr.bf16.gmra.mxu0 %v2880
        %v2916 = vpop.f32.mrf.mxu0
        %v2917 = vadd.f32 0.0, %v2916
        %v2918 = vpop.f32.mrf.mxu0
        %v2919 = vpop.f32.mrf.mxu0
        %v2920 = vadd.f32 0.0, %v2919
        %v2921 = vpop.f32.mrf.mxu0
        %2922 = vdwg.mxu0
        %v2923 = vpack.c.bf16 %v2920, %v2917
        %s2924 = scalar_lea.vmem %s5, 32
        %v2925 = vld [vmem:[%s2924] sm:$0xf]
        %v2926 = vld [vmem:[%s2924 + $0x4] sm:$0xf]
        %v2929 = vunpack.c.l.b16 %v2925
        %v2930 = vunpack.c.l.b16 %v2926
        %v2931 = vpack.c.b16 %v2930, %v2929
        %v2934 = vsel %vm2560, %v2923, 0
        %2936 = vmatprep.subr.bf16.mxu0 0
        %2937 = vmatpush1.bf16.msra.mxu0 0
        %2938 = vmatprep.subr.bf16.mxu0 0
        %2939 = vmatpush1.bf16.msra.mxu0 0
        %2940 = vmatprep.subr.bf16.mxu0 0
        %2941 = vmatpush1.bf16.msra.mxu0 0
        %2942 = vmatprep.subr.bf16.mxu0 0
        %2943 = vmatpush1.bf16.msra.mxu0 0
        %2944 = vmatprep.subr.bf16.mxu0 0
        %2945 = vmatpush1.bf16.msra.mxu0 0
        %2946 = vmatprep.subr.bf16.mxu0 0
        %2947 = vmatpush1.bf16.msra.mxu0 0
        %2948 = vmatprep.subr.bf16.mxu0 0
        %2949 = vmatpush1.bf16.msra.mxu0 0
        %2950 = vmatprep.subr.bf16.mxu0 0
        %2951 = vmatpush1.bf16.msra.mxu0 %v2931
        %2952 = vmatprep.subr.bf16.mxu0 0
        %2953 = vmatpush2.bf16.msra.mxu0 0
        %2954 = vmatprep.subr.bf16.mxu0 0
        %2955 = vmatpush2.bf16.msra.mxu0 0
        %2956 = vmatprep.subr.bf16.mxu0 0
        %2957 = vmatpush2.bf16.msra.mxu0 0
        %2958 = vmatprep.subr.bf16.mxu0 0
        %2959 = vmatpush2.bf16.msra.mxu0 0
        %2960 = vmatprep.subr.bf16.mxu0 0
        %2961 = vmatpush2.bf16.msra.mxu0 0
        %2962 = vmatprep.subr.bf16.mxu0 0
        %2963 = vmatpush2.bf16.msra.mxu0 0
        %2964 = vmatprep.subr.bf16.mxu0 0
        %2965 = vmatpush2.bf16.msra.mxu0 0
        %2966 = vmatprep.subr.bf16.mxu0 0
        %2967 = vmatpush2.bf16.msra.mxu0 0
        %2968 = vmatprep.mubr.bf16.mxu0 0
        %2969 = vmatmul.mubr.bf16.gmra.mxu0 %v2934
        %v2970 = vpop.f32.mrf.mxu0
        %v2971 = vadd.f32 0.0, %v2970
        %v2972 = vpop.f32.mrf.mxu0
        %v2973 = vpop.f32.mrf.mxu0
        %v2974 = vadd.f32 0.0, %v2973
        %v2975 = vpop.f32.mrf.mxu0
        %2976 = vdwg.mxu0
        %v2977 = vadd.f32 %v2869, %v2971
        %v2978 = vadd.f32 %v2870, %v2974
        %s2979 = scalar_lea.vmem %s4, 40
        %v2980 = vld [vmem:[%s2979] sm:$0xf]
        %v2981 = vld [vmem:[%s2979 + $0x4] sm:$0xf]
        %v2984 = vunpack.c.l.b16 %v2980
        %v2985 = vunpack.c.l.b16 %v2981
        %v2986 = vpack.c.b16 %v2985, %v2984
        %v2988 = vsel %vm2450, %v2986, 0
        %2990 = vmatprep.subr.bf16.mxu0 0
        %2991 = vmatpush1.bf16.msra.mxu0 0
        %2992 = vmatprep.subr.bf16.mxu0 0
        %2993 = vmatpush1.bf16.msra.mxu0 0
        %2994 = vmatprep.subr.bf16.mxu0 0
        %2995 = vmatpush1.bf16.msra.mxu0 0
        %2996 = vmatprep.subr.bf16.mxu0 0
        %2997 = vmatpush1.bf16.msra.mxu0 0
        %2998 = vmatprep.subr.bf16.mxu0 0
        %2999 = vmatpush1.bf16.msra.mxu0 %v2442
        %3000 = vmatprep.subr.bf16.mxu0 0
        %3001 = vmatpush1.bf16.msra.mxu0 %v2441
        %3002 = vmatprep.subr.bf16.mxu0 0
        %3003 = vmatpush1.bf16.msra.mxu0 %v2440
        %3004 = vmatprep.subr.bf16.mxu0 0
        %3005 = vmatpush1.bf16.msra.mxu0 %v2439
        %3006 = vmatprep.subr.bf16.mxu0 0
        %3007 = vmatpush2.bf16.msra.mxu0 0
        %3008 = vmatprep.subr.bf16.mxu0 0
        %3009 = vmatpush2.bf16.msra.mxu0 0
        %3010 = vmatprep.subr.bf16.mxu0 0
        %3011 = vmatpush2.bf16.msra.mxu0 0
        %3012 = vmatprep.subr.bf16.mxu0 0
        %3013 = vmatpush2.bf16.msra.mxu0 0
        %3014 = vmatprep.subr.bf16.mxu0 0
        %3015 = vmatpush2.bf16.msra.mxu0 0
        %3016 = vmatprep.subr.bf16.mxu0 0
        %3017 = vmatpush2.bf16.msra.mxu0 0
        %3018 = vmatprep.subr.bf16.mxu0 0
        %3019 = vmatpush2.bf16.msra.mxu0 0
        %3020 = vmatprep.subr.bf16.mxu0 0
        %3021 = vmatpush2.bf16.msra.mxu0 0
        %3022 = vmatprep.mubr.bf16.mxu0 0
        %3023 = vmatmul.mubr.bf16.gmra.mxu0 %v2988
        %v3024 = vpop.f32.mrf.mxu0
        %v3025 = vadd.f32 0.0, %v3024
        %v3026 = vpop.f32.mrf.mxu0
        %v3027 = vpop.f32.mrf.mxu0
        %v3028 = vadd.f32 0.0, %v3027
        %v3029 = vpop.f32.mrf.mxu0
        %3030 = vdwg.mxu0
        %v3031 = vpack.c.bf16 %v3028, %v3025
        %s3032 = scalar_lea.vmem %s5, 40
        %v3033 = vld [vmem:[%s3032] sm:$0xf]
        %v3034 = vld [vmem:[%s3032 + $0x4] sm:$0xf]
        %v3037 = vunpack.c.l.b16 %v3033
        %v3038 = vunpack.c.l.b16 %v3034
        %v3039 = vpack.c.b16 %v3038, %v3037
        %v3042 = vsel %vm2560, %v3031, 0
        %3044 = vmatprep.subr.bf16.mxu0 0
        %3045 = vmatpush1.bf16.msra.mxu0 0
        %3046 = vmatprep.subr.bf16.mxu0 0
        %3047 = vmatpush1.bf16.msra.mxu0 0
        %3048 = vmatprep.subr.bf16.mxu0 0
        %3049 = vmatpush1.bf16.msra.mxu0 0
        %3050 = vmatprep.subr.bf16.mxu0 0
        %3051 = vmatpush1.bf16.msra.mxu0 0
        %3052 = vmatprep.subr.bf16.mxu0 0
        %3053 = vmatpush1.bf16.msra.mxu0 0
        %3054 = vmatprep.subr.bf16.mxu0 0
        %3055 = vmatpush1.bf16.msra.mxu0 0
        %3056 = vmatprep.subr.bf16.mxu0 0
        %3057 = vmatpush1.bf16.msra.mxu0 0
        %3058 = vmatprep.subr.bf16.mxu0 0
        %3059 = vmatpush1.bf16.msra.mxu0 %v3039
        %3060 = vmatprep.subr.bf16.mxu0 0
        %3061 = vmatpush2.bf16.msra.mxu0 0
        %3062 = vmatprep.subr.bf16.mxu0 0
        %3063 = vmatpush2.bf16.msra.mxu0 0
        %3064 = vmatprep.subr.bf16.mxu0 0
        %3065 = vmatpush2.bf16.msra.mxu0 0
        %3066 = vmatprep.subr.bf16.mxu0 0
        %3067 = vmatpush2.bf16.msra.mxu0 0
        %3068 = vmatprep.subr.bf16.mxu0 0
        %3069 = vmatpush2.bf16.msra.mxu0 0
        %3070 = vmatprep.subr.bf16.mxu0 0
        %3071 = vmatpush2.bf16.msra.mxu0 0
        %3072 = vmatprep.subr.bf16.mxu0 0
        %3073 = vmatpush2.bf16.msra.mxu0 0
        %3074 = vmatprep.subr.bf16.mxu0 0
        %3075 = vmatpush2.bf16.msra.mxu0 0
        %3076 = vmatprep.mubr.bf16.mxu0 0
        %3077 = vmatmul.mubr.bf16.gmra.mxu0 %v3042
        %v3078 = vpop.f32.mrf.mxu0
        %v3079 = vadd.f32 0.0, %v3078
        %v3080 = vpop.f32.mrf.mxu0
        %v3081 = vpop.f32.mrf.mxu0
        %v3082 = vadd.f32 0.0, %v3081
        %v3083 = vpop.f32.mrf.mxu0
        %3084 = vdwg.mxu0
        %v3085 = vadd.f32 %v2977, %v3079
        %v3086 = vadd.f32 %v2978, %v3082
        %s3087 = scalar_lea.vmem %s4, 48
        %v3088 = vld [vmem:[%s3087] sm:$0xf]
        %v3089 = vld [vmem:[%s3087 + $0x4] sm:$0xf]
        %v3092 = vunpack.c.l.b16 %v3088
        %v3093 = vunpack.c.l.b16 %v3089
        %v3094 = vpack.c.b16 %v3093, %v3092
        %v3096 = vsel %vm2450, %v3094, 0
        %3098 = vmatprep.subr.bf16.mxu0 0
        %3099 = vmatpush1.bf16.msra.mxu0 0
        %3100 = vmatprep.subr.bf16.mxu0 0
        %3101 = vmatpush1.bf16.msra.mxu0 0
        %3102 = vmatprep.subr.bf16.mxu0 0
        %3103 = vmatpush1.bf16.msra.mxu0 0
        %3104 = vmatprep.subr.bf16.mxu0 0
        %3105 = vmatpush1.bf16.msra.mxu0 0
        %3106 = vmatprep.subr.bf16.mxu0 0
        %3107 = vmatpush1.bf16.msra.mxu0 %v2442
        %3108 = vmatprep.subr.bf16.mxu0 0
        %3109 = vmatpush1.bf16.msra.mxu0 %v2441
        %3110 = vmatprep.subr.bf16.mxu0 0
        %3111 = vmatpush1.bf16.msra.mxu0 %v2440
        %3112 = vmatprep.subr.bf16.mxu0 0
        %3113 = vmatpush1.bf16.msra.mxu0 %v2439
        %3114 = vmatprep.subr.bf16.mxu0 0
        %3115 = vmatpush2.bf16.msra.mxu0 0
        %3116 = vmatprep.subr.bf16.mxu0 0
        %3117 = vmatpush2.bf16.msra.mxu0 0
        %3118 = vmatprep.subr.bf16.mxu0 0
        %3119 = vmatpush2.bf16.msra.mxu0 0
        %3120 = vmatprep.subr.bf16.mxu0 0
        %3121 = vmatpush2.bf16.msra.mxu0 0
        %3122 = vmatprep.subr.bf16.mxu0 0
        %3123 = vmatpush2.bf16.msra.mxu0 0
        %3124 = vmatprep.subr.bf16.mxu0 0
        %3125 = vmatpush2.bf16.msra.mxu0 0
        %3126 = vmatprep.subr.bf16.mxu0 0
        %3127 = vmatpush2.bf16.msra.mxu0 0
        %3128 = vmatprep.subr.bf16.mxu0 0
        %3129 = vmatpush2.bf16.msra.mxu0 0
        %3130 = vmatprep.mubr.bf16.mxu0 0
        %3131 = vmatmul.mubr.bf16.gmra.mxu0 %v3096
        %v3132 = vpop.f32.mrf.mxu0
        %v3133 = vadd.f32 0.0, %v3132
        %v3134 = vpop.f32.mrf.mxu0
        %v3135 = vpop.f32.mrf.mxu0
        %v3136 = vadd.f32 0.0, %v3135
        %v3137 = vpop.f32.mrf.mxu0
        %3138 = vdwg.mxu0
        %v3139 = vpack.c.bf16 %v3136, %v3133
        %s3140 = scalar_lea.vmem %s5, 48
        %v3141 = vld [vmem:[%s3140] sm:$0xf]
        %v3142 = vld [vmem:[%s3140 + $0x4] sm:$0xf]
        %v3145 = vunpack.c.l.b16 %v3141
        %v3146 = vunpack.c.l.b16 %v3142
        %v3147 = vpack.c.b16 %v3146, %v3145
        %v3150 = vsel %vm2560, %v3139, 0
        %3152 = vmatprep.subr.bf16.mxu0 0
        %3153 = vmatpush1.bf16.msra.mxu0 0
        %3154 = vmatprep.subr.bf16.mxu0 0
        %3155 = vmatpush1.bf16.msra.mxu0 0
        %3156 = vmatprep.subr.bf16.mxu0 0
        %3157 = vmatpush1.bf16.msra.mxu0 0
        %3158 = vmatprep.subr.bf16.mxu0 0
        %3159 = vmatpush1.bf16.msra.mxu0 0
        %3160 = vmatprep.subr.bf16.mxu0 0
        %3161 = vmatpush1.bf16.msra.mxu0 0
        %3162 = vmatprep.subr.bf16.mxu0 0
        %3163 = vmatpush1.bf16.msra.mxu0 0
        %3164 = vmatprep.subr.bf16.mxu0 0
        %3165 = vmatpush1.bf16.msra.mxu0 0
        %3166 = vmatprep.subr.bf16.mxu0 0
        %3167 = vmatpush1.bf16.msra.mxu0 %v3147
        %3168 = vmatprep.subr.bf16.mxu0 0
        %3169 = vmatpush2.bf16.msra.mxu0 0
        %3170 = vmatprep.subr.bf16.mxu0 0
        %3171 = vmatpush2.bf16.msra.mxu0 0
        %3172 = vmatprep.subr.bf16.mxu0 0
        %3173 = vmatpush2.bf16.msra.mxu0 0
        %3174 = vmatprep.subr.bf16.mxu0 0
        %3175 = vmatpush2.bf16.msra.mxu0 0
        %3176 = vmatprep.subr.bf16.mxu0 0
        %3177 = vmatpush2.bf16.msra.mxu0 0
        %3178 = vmatprep.subr.bf16.mxu0 0
        %3179 = vmatpush2.bf16.msra.mxu0 0
        %3180 = vmatprep.subr.bf16.mxu0 0
        %3181 = vmatpush2.bf16.msra.mxu0 0
        %3182 = vmatprep.subr.bf16.mxu0 0
        %3183 = vmatpush2.bf16.msra.mxu0 0
        %3184 = vmatprep.mubr.bf16.mxu0 0
        %3185 = vmatmul.mubr.bf16.gmra.mxu0 %v3150
        %v3186 = vpop.f32.mrf.mxu0
        %v3187 = vadd.f32 0.0, %v3186
        %v3188 = vpop.f32.mrf.mxu0
        %v3189 = vpop.f32.mrf.mxu0
        %v3190 = vadd.f32 0.0, %v3189
        %v3191 = vpop.f32.mrf.mxu0
        %3192 = vdwg.mxu0
        %v3193 = vadd.f32 %v3085, %v3187
        %v3194 = vadd.f32 %v3086, %v3190
        %s3195 = scalar_lea.vmem %s4, 56
        %v3196 = vld [vmem:[%s3195] sm:$0xf]
        %v3197 = vld [vmem:[%s3195 + $0x4] sm:$0xf]
        %v3200 = vunpack.c.l.b16 %v3196
        %v3201 = vunpack.c.l.b16 %v3197
        %v3202 = vpack.c.b16 %v3201, %v3200
        %v3204 = vsel %vm2450, %v3202, 0
        %3206 = vmatprep.subr.bf16.mxu0 0
        %3207 = vmatpush1.bf16.msra.mxu0 0
        %3208 = vmatprep.subr.bf16.mxu0 0
        %3209 = vmatpush1.bf16.msra.mxu0 0
        %3210 = vmatprep.subr.bf16.mxu0 0
        %3211 = vmatpush1.bf16.msra.mxu0 0
        %3212 = vmatprep.subr.bf16.mxu0 0
        %3213 = vmatpush1.bf16.msra.mxu0 0
        %3214 = vmatprep.subr.bf16.mxu0 0
        %3215 = vmatpush1.bf16.msra.mxu0 %v2442
        %3216 = vmatprep.subr.bf16.mxu0 0
        %3217 = vmatpush1.bf16.msra.mxu0 %v2441
        %3218 = vmatprep.subr.bf16.mxu0 0
        %3219 = vmatpush1.bf16.msra.mxu0 %v2440
        %3220 = vmatprep.subr.bf16.mxu0 0
        %3221 = vmatpush1.bf16.msra.mxu0 %v2439
        %3222 = vmatprep.subr.bf16.mxu0 0
        %3223 = vmatpush2.bf16.msra.mxu0 0
        %3224 = vmatprep.subr.bf16.mxu0 0
        %3225 = vmatpush2.bf16.msra.mxu0 0
        %3226 = vmatprep.subr.bf16.mxu0 0
        %3227 = vmatpush2.bf16.msra.mxu0 0
        %3228 = vmatprep.subr.bf16.mxu0 0
        %3229 = vmatpush2.bf16.msra.mxu0 0
        %3230 = vmatprep.subr.bf16.mxu0 0
        %3231 = vmatpush2.bf16.msra.mxu0 0
        %3232 = vmatprep.subr.bf16.mxu0 0
        %3233 = vmatpush2.bf16.msra.mxu0 0
        %3234 = vmatprep.subr.bf16.mxu0 0
        %3235 = vmatpush2.bf16.msra.mxu0 0
        %3236 = vmatprep.subr.bf16.mxu0 0
        %3237 = vmatpush2.bf16.msra.mxu0 0
        %3238 = vmatprep.mubr.bf16.mxu0 0
        %3239 = vmatmul.mubr.bf16.gmra.mxu0 %v3204
        %v3240 = vpop.f32.mrf.mxu0
        %v3241 = vadd.f32 0.0, %v3240
        %v3242 = vpop.f32.mrf.mxu0
        %v3243 = vpop.f32.mrf.mxu0
        %v3244 = vadd.f32 0.0, %v3243
        %v3245 = vpop.f32.mrf.mxu0
        %3246 = vdwg.mxu0
        %v3247 = vpack.c.bf16 %v3244, %v3241
        %s3248 = scalar_lea.vmem %s5, 56
        %v3249 = vld [vmem:[%s3248] sm:$0xf]
        %v3250 = vld [vmem:[%s3248 + $0x4] sm:$0xf]
        %v3253 = vunpack.c.l.b16 %v3249
        %v3254 = vunpack.c.l.b16 %v3250
        %v3255 = vpack.c.b16 %v3254, %v3253
        %v3258 = vsel %vm2560, %v3247, 0
        %3260 = vmatprep.subr.bf16.mxu0 0
        %3261 = vmatpush1.bf16.msra.mxu0 0
        %3262 = vmatprep.subr.bf16.mxu0 0
        %3263 = vmatpush1.bf16.msra.mxu0 0
        %3264 = vmatprep.subr.bf16.mxu0 0
        %3265 = vmatpush1.bf16.msra.mxu0 0
        %3266 = vmatprep.subr.bf16.mxu0 0
        %3267 = vmatpush1.bf16.msra.mxu0 0
        %3268 = vmatprep.subr.bf16.mxu0 0
        %3269 = vmatpush1.bf16.msra.mxu0 0
        %3270 = vmatprep.subr.bf16.mxu0 0
        %3271 = vmatpush1.bf16.msra.mxu0 0
        %3272 = vmatprep.subr.bf16.mxu0 0
        %3273 = vmatpush1.bf16.msra.mxu0 0
        %3274 = vmatprep.subr.bf16.mxu0 0
        %3275 = vmatpush1.bf16.msra.mxu0 %v3255
        %3276 = vmatprep.subr.bf16.mxu0 0
        %3277 = vmatpush2.bf16.msra.mxu0 0
        %3278 = vmatprep.subr.bf16.mxu0 0
        %3279 = vmatpush2.bf16.msra.mxu0 0
        %3280 = vmatprep.subr.bf16.mxu0 0
        %3281 = vmatpush2.bf16.msra.mxu0 0
        %3282 = vmatprep.subr.bf16.mxu0 0
        %3283 = vmatpush2.bf16.msra.mxu0 0
        %3284 = vmatprep.subr.bf16.mxu0 0
        %3285 = vmatpush2.bf16.msra.mxu0 0
        %3286 = vmatprep.subr.bf16.mxu0 0
        %3287 = vmatpush2.bf16.msra.mxu0 0
        %3288 = vmatprep.subr.bf16.mxu0 0
        %3289 = vmatpush2.bf16.msra.mxu0 0
        %3290 = vmatprep.subr.bf16.mxu0 0
        %3291 = vmatpush2.bf16.msra.mxu0 0
        %3292 = vmatprep.mubr.bf16.mxu0 0
        %3293 = vmatmul.mubr.bf16.gmra.mxu0 %v3258
        %v3294 = vpop.f32.mrf.mxu0
        %v3295 = vadd.f32 0.0, %v3294
        %v3296 = vpop.f32.mrf.mxu0
        %v3297 = vpop.f32.mrf.mxu0
        %v3298 = vadd.f32 0.0, %v3297
        %v3299 = vpop.f32.mrf.mxu0
        %3300 = vdwg.mxu0
        %v3301 = vadd.f32 %v3193, %v3295
        %v3302 = vadd.f32 %v3194, %v3298
        %s3303 = scalar_lea.vmem %s4, 64
        %v3304 = vld [vmem:[%s3303] sm:$0xf]
        %v3305 = vld [vmem:[%s3303 + $0x4] sm:$0xf]
        %v3308 = vunpack.c.l.b16 %v3304
        %v3309 = vunpack.c.l.b16 %v3305
        %v3310 = vpack.c.b16 %v3309, %v3308
        %v3312 = vsel %vm2450, %v3310, 0
        %3314 = vmatprep.subr.bf16.mxu0 0
        %3315 = vmatpush1.bf16.msra.mxu0 0
        %3316 = vmatprep.subr.bf16.mxu0 0
        %3317 = vmatpush1.bf16.msra.mxu0 0
        %3318 = vmatprep.subr.bf16.mxu0 0
        %3319 = vmatpush1.bf16.msra.mxu0 0
        %3320 = vmatprep.subr.bf16.mxu0 0
        %3321 = vmatpush1.bf16.msra.mxu0 0
        %3322 = vmatprep.subr.bf16.mxu0 0
        %3323 = vmatpush1.bf16.msra.mxu0 %v2442
        %3324 = vmatprep.subr.bf16.mxu0 0
        %3325 = vmatpush1.bf16.msra.mxu0 %v2441
        %3326 = vmatprep.subr.bf16.mxu0 0
        %3327 = vmatpush1.bf16.msra.mxu0 %v2440
        %3328 = vmatprep.subr.bf16.mxu0 0
        %3329 = vmatpush1.bf16.msra.mxu0 %v2439
        %3330 = vmatprep.subr.bf16.mxu0 0
        %3331 = vmatpush2.bf16.msra.mxu0 0
        %3332 = vmatprep.subr.bf16.mxu0 0
        %3333 = vmatpush2.bf16.msra.mxu0 0
        %3334 = vmatprep.subr.bf16.mxu0 0
        %3335 = vmatpush2.bf16.msra.mxu0 0
        %3336 = vmatprep.subr.bf16.mxu0 0
        %3337 = vmatpush2.bf16.msra.mxu0 0
        %3338 = vmatprep.subr.bf16.mxu0 0
        %3339 = vmatpush2.bf16.msra.mxu0 0
        %3340 = vmatprep.subr.bf16.mxu0 0
        %3341 = vmatpush2.bf16.msra.mxu0 0
        %3342 = vmatprep.subr.bf16.mxu0 0
        %3343 = vmatpush2.bf16.msra.mxu0 0
        %3344 = vmatprep.subr.bf16.mxu0 0
        %3345 = vmatpush2.bf16.msra.mxu0 0
        %3346 = vmatprep.mubr.bf16.mxu0 0
        %3347 = vmatmul.mubr.bf16.gmra.mxu0 %v3312
        %v3348 = vpop.f32.mrf.mxu0
        %v3349 = vadd.f32 0.0, %v3348
        %v3350 = vpop.f32.mrf.mxu0
        %v3351 = vpop.f32.mrf.mxu0
        %v3352 = vadd.f32 0.0, %v3351
        %v3353 = vpop.f32.mrf.mxu0
        %3354 = vdwg.mxu0
        %v3355 = vpack.c.bf16 %v3352, %v3349
        %s3356 = scalar_lea.vmem %s5, 64
        %v3357 = vld [vmem:[%s3356] sm:$0xf]
        %v3358 = vld [vmem:[%s3356 + $0x4] sm:$0xf]
        %v3361 = vunpack.c.l.b16 %v3357
        %v3362 = vunpack.c.l.b16 %v3358
        %v3363 = vpack.c.b16 %v3362, %v3361
        %v3366 = vsel %vm2560, %v3355, 0
        %3368 = vmatprep.subr.bf16.mxu0 0
        %3369 = vmatpush1.bf16.msra.mxu0 0
        %3370 = vmatprep.subr.bf16.mxu0 0
        %3371 = vmatpush1.bf16.msra.mxu0 0
        %3372 = vmatprep.subr.bf16.mxu0 0
        %3373 = vmatpush1.bf16.msra.mxu0 0
        %3374 = vmatprep.subr.bf16.mxu0 0
        %3375 = vmatpush1.bf16.msra.mxu0 0
        %3376 = vmatprep.subr.bf16.mxu0 0
        %3377 = vmatpush1.bf16.msra.mxu0 0
        %3378 = vmatprep.subr.bf16.mxu0 0
        %3379 = vmatpush1.bf16.msra.mxu0 0
        %3380 = vmatprep.subr.bf16.mxu0 0
        %3381 = vmatpush1.bf16.msra.mxu0 0
        %3382 = vmatprep.subr.bf16.mxu0 0
        %3383 = vmatpush1.bf16.msra.mxu0 %v3363
        %3384 = vmatprep.subr.bf16.mxu0 0
        %3385 = vmatpush2.bf16.msra.mxu0 0
        %3386 = vmatprep.subr.bf16.mxu0 0
        %3387 = vmatpush2.bf16.msra.mxu0 0
        %3388 = vmatprep.subr.bf16.mxu0 0
        %3389 = vmatpush2.bf16.msra.mxu0 0
        %3390 = vmatprep.subr.bf16.mxu0 0
        %3391 = vmatpush2.bf16.msra.mxu0 0
        %3392 = vmatprep.subr.bf16.mxu0 0
        %3393 = vmatpush2.bf16.msra.mxu0 0
        %3394 = vmatprep.subr.bf16.mxu0 0
        %3395 = vmatpush2.bf16.msra.mxu0 0
        %3396 = vmatprep.subr.bf16.mxu0 0
        %3397 = vmatpush2.bf16.msra.mxu0 0
        %3398 = vmatprep.subr.bf16.mxu0 0
        %3399 = vmatpush2.bf16.msra.mxu0 0
        %3400 = vmatprep.mubr.bf16.mxu0 0
        %3401 = vmatmul.mubr.bf16.gmra.mxu0 %v3366
        %v3402 = vpop.f32.mrf.mxu0
        %v3403 = vadd.f32 0.0, %v3402
        %v3404 = vpop.f32.mrf.mxu0
        %v3405 = vpop.f32.mrf.mxu0
        %v3406 = vadd.f32 0.0, %v3405
        %v3407 = vpop.f32.mrf.mxu0
        %3408 = vdwg.mxu0
        %v3409 = vadd.f32 %v3301, %v3403
        %v3410 = vadd.f32 %v3302, %v3406
        %v3411 = vld [vmem:[%s6] sm:$0x1]
        %v3413 = vlaneseq
        %v3414 = vshrl.u32 %v3413, 7
        %v3415 = vsub.s32 0, %v3414
        %v3416 = vrot.slane %v3411, %v3415
        %v3418 = vadd.f32 %v3409, %v3416
        %v3419 = vadd.f32 %v3410, %v3416
        %v3420 = vmax.f32 %v3418, 0.0
        %v3421 = vmax.f32 %v3419, 0.0
        %v3422 = vpack.c.bf16 %v3421, %v3420
        %v3423 = vld [vmem:[%s7] sm:$0x3]
        %v3425 = vsel %vm2560, %v3423, 0
        %3427 = vmatprep.subr.bf16.mxu0 0
        %3428 = vmatpush1.bf16.msra.mxu0 0
        %3429 = vmatprep.subr.bf16.mxu0 0
        %3430 = vmatpush1.bf16.msra.mxu0 0
        %3431 = vmatprep.subr.bf16.mxu0 0
        %3432 = vmatpush1.bf16.msra.mxu0 0
        %3433 = vmatprep.subr.bf16.mxu0 0
        %3434 = vmatpush1.bf16.msra.mxu0 0
        %3435 = vmatprep.subr.bf16.mxu0 0
        %3436 = vmatpush1.bf16.msra.mxu0 0
        %3437 = vmatprep.subr.bf16.mxu0 0
        %3438 = vmatpush1.bf16.msra.mxu0 0
        %3439 = vmatprep.subr.bf16.mxu0 0
        %3440 = vmatpush1.bf16.msra.mxu0 0
        %3441 = vmatprep.subr.bf16.mxu0 0
        %3442 = vmatpush1.bf16.msra.mxu0 %v3422
        %3443 = vmatprep.subr.bf16.mxu0 0
        %3444 = vmatpush2.bf16.msra.mxu0 0
        %3445 = vmatprep.subr.bf16.mxu0 0
        %3446 = vmatpush2.bf16.msra.mxu0 0
        %3447 = vmatprep.subr.bf16.mxu0 0
        %3448 = vmatpush2.bf16.msra.mxu0 0
        %3449 = vmatprep.subr.bf16.mxu0 0
        %3450 = vmatpush2.bf16.msra.mxu0 0
        %3451 = vmatprep.subr.bf16.mxu0 0
        %3452 = vmatpush2.bf16.msra.mxu0 0
        %3453 = vmatprep.subr.bf16.mxu0 0
        %3454 = vmatpush2.bf16.msra.mxu0 0
        %3455 = vmatprep.subr.bf16.mxu0 0
        %3456 = vmatpush2.bf16.msra.mxu0 0
        %3457 = vmatprep.subr.bf16.mxu0 0
        %3458 = vmatpush2.bf16.msra.mxu0 0
        %3459 = vmatprep.mubr.bf16.mxu0 0
        %3460 = vmatmul.mubr.bf16.gmra.mxu0 %v3425
        %v3461 = vpop.f32.mrf.mxu0
        %v3462 = vadd.f32 0.0, %v3461
        %v3463 = vpop.f32.mrf.mxu0
        %v3464 = vpop.f32.mrf.mxu0
        %v3465 = vpop.f32.mrf.mxu0
        %3466 = vdwg.mxu0
        %v3467 = vpack.c.bf16 %v3462, %v3462
        %v3468 = vld [vmem:[%s8] sm:$0xf]
        %v3469 = vld [vmem:[%s8 + $0x4] sm:$0xf]
        %v3470 = vld [vmem:[%s8 + $0x8] sm:$0xf]
        %v3471 = vld [vmem:[%s8 + $0xc] sm:$0xf]
        %s3472 = scalar_lea.vmem %s7, 2
        %v3473 = vld [vmem:[%s3472] sm:$0x3]
        %v3475 = vsel %vm2560, %v3473, 0
        %3477 = vmatprep.subr.bf16.mxu0 0
        %3478 = vmatpush1.bf16.msra.mxu0 0
        %3479 = vmatprep.subr.bf16.mxu0 0
        %3480 = vmatpush1.bf16.msra.mxu0 0
        %3481 = vmatprep.subr.bf16.mxu0 0
        %3482 = vmatpush1.bf16.msra.mxu0 0
        %3483 = vmatprep.subr.bf16.mxu0 0
        %3484 = vmatpush1.bf16.msra.mxu0 0
        %3485 = vmatprep.subr.bf16.mxu0 0
        %3486 = vmatpush1.bf16.msra.mxu0 0
        %3487 = vmatprep.subr.bf16.mxu0 0
        %3488 = vmatpush1.bf16.msra.mxu0 0
        %3489 = vmatprep.subr.bf16.mxu0 0
        %3490 = vmatpush1.bf16.msra.mxu0 0
        %3491 = vmatprep.subr.bf16.mxu0 0
        %3492 = vmatpush1.bf16.msra.mxu0 %v3422
        %3493 = vmatprep.subr.bf16.mxu0 0
        %3494 = vmatpush2.bf16.msra.mxu0 0
        %3495 = vmatprep.subr.bf16.mxu0 0
        %3496 = vmatpush2.bf16.msra.mxu0 0
        %3497 = vmatprep.subr.bf16.mxu0 0
        %3498 = vmatpush2.bf16.msra.mxu0 0
        %3499 = vmatprep.subr.bf16.mxu0 0
        %3500 = vmatpush2.bf16.msra.mxu0 0
        %3501 = vmatprep.subr.bf16.mxu0 0
        %3502 = vmatpush2.bf16.msra.mxu0 0
        %3503 = vmatprep.subr.bf16.mxu0 0
        %3504 = vmatpush2.bf16.msra.mxu0 0
        %3505 = vmatprep.subr.bf16.mxu0 0
        %3506 = vmatpush2.bf16.msra.mxu0 0
        %3507 = vmatprep.subr.bf16.mxu0 0
        %3508 = vmatpush2.bf16.msra.mxu0 0
        %3509 = vmatprep.mubr.bf16.mxu0 0
        %3510 = vmatmul.mubr.bf16.gmra.mxu0 %v3475
        %v3511 = vpop.f32.mrf.mxu0
        %v3512 = vadd.f32 0.0, %v3511
        %v3513 = vpop.f32.mrf.mxu0
        %v3514 = vpop.f32.mrf.mxu0
        %v3515 = vpop.f32.mrf.mxu0
        %3516 = vdwg.mxu0
        %v3517 = vpack.c.bf16 %v3512, %v3512
        %s3518 = scalar_lea.vmem %s8, 16
        %v3519 = vld [vmem:[%s3518] sm:$0xf]
        %v3520 = vld [vmem:[%s3518 + $0x4] sm:$0xf]
        %v3521 = vld [vmem:[%s3518 + $0x8] sm:$0xf]
        %v3522 = vld [vmem:[%s3518 + $0xc] sm:$0xf]
        %v3527 = vunpack.c.l.b16 %v3519
        %v3528 = vunpack.c.l.b16 %v3520
        %v3529 = vunpack.c.l.b16 %v3521
        %v3530 = vunpack.c.l.b16 %v3522
        %v3531 = vpack.c.b16 %v3528, %v3527
        %v3532 = vpack.c.b16 %v3530, %v3529
        %vm3535 = vcmask 261120
        %v3537 = vsel %vm3535, %v3517, 0
        %3539 = vmatprep.subr.bf16.mxu0 0
        %3540 = vmatpush1.bf16.msra.mxu0 0
        %3541 = vmatprep.subr.bf16.mxu0 0
        %3542 = vmatpush1.bf16.msra.mxu0 0
        %3543 = vmatprep.subr.bf16.mxu0 0
        %3544 = vmatpush1.bf16.msra.mxu0 0
        %3545 = vmatprep.subr.bf16.mxu0 0
        %3546 = vmatpush1.bf16.msra.mxu0 0
        %3547 = vmatprep.subr.bf16.mxu0 0
        %3548 = vmatpush1.bf16.msra.mxu0 0
        %3549 = vmatprep.subr.bf16.mxu0 0
        %3550 = vmatpush1.bf16.msra.mxu0 0
        %3551 = vmatprep.subr.bf16.mxu0 0
        %3552 = vmatpush1.bf16.msra.mxu0 %v3532
        %3553 = vmatprep.subr.bf16.mxu0 0
        %3554 = vmatpush1.bf16.msra.mxu0 %v3531
        %3555 = vmatprep.subr.bf16.mxu0 0
        %3556 = vmatpush2.bf16.msra.mxu0 0
        %3557 = vmatprep.subr.bf16.mxu0 0
        %3558 = vmatpush2.bf16.msra.mxu0 0
        %3559 = vmatprep.subr.bf16.mxu0 0
        %3560 = vmatpush2.bf16.msra.mxu0 0
        %3561 = vmatprep.subr.bf16.mxu0 0
        %3562 = vmatpush2.bf16.msra.mxu0 0
        %3563 = vmatprep.subr.bf16.mxu0 0
        %3564 = vmatpush2.bf16.msra.mxu0 0
        %3565 = vmatprep.subr.bf16.mxu0 0
        %3566 = vmatpush2.bf16.msra.mxu0 0
        %3567 = vmatprep.subr.bf16.mxu0 0
        %3568 = vmatpush2.bf16.msra.mxu0 0
        %3569 = vmatprep.subr.bf16.mxu0 0
        %3570 = vmatpush2.bf16.msra.mxu0 0
        %3571 = vmatprep.mubr.bf16.mxu0 0
        %3572 = vmatmul.mubr.bf16.gmra.mxu0 %v3537
        %v3573 = vpop.f32.mrf.mxu0
        %v3574 = vadd.f32 0.0, %v3573
        %v3575 = vpop.f32.mrf.mxu0
        %v3576 = vpop.f32.mrf.mxu0
        %v3577 = vpop.f32.mrf.mxu0
        %3578 = vdwg.mxu0
        %v3583 = vunpack.c.l.b16 %v3468
        %v3584 = vunpack.c.l.b16 %v3469
        %v3585 = vunpack.c.l.b16 %v3470
        %v3586 = vunpack.c.l.b16 %v3471
        %v3587 = vpack.c.b16 %v3584, %v3583
        %v3588 = vpack.c.b16 %v3586, %v3585
        %v3592 = vsel %vm3535, %v3467, 0
        %3594 = vmatprep.subr.bf16.mxu0 0
        %3595 = vmatpush1.bf16.msra.mxu0 0
        %3596 = vmatprep.subr.bf16.mxu0 0
        %3597 = vmatpush1.bf16.msra.mxu0 0
        %3598 = vmatprep.subr.bf16.mxu0 0
        %3599 = vmatpush1.bf16.msra.mxu0 0
        %3600 = vmatprep.subr.bf16.mxu0 0
        %3601 = vmatpush1.bf16.msra.mxu0 0
        %3602 = vmatprep.subr.bf16.mxu0 0
        %3603 = vmatpush1.bf16.msra.mxu0 0
        %3604 = vmatprep.subr.bf16.mxu0 0
        %3605 = vmatpush1.bf16.msra.mxu0 0
        %3606 = vmatprep.subr.bf16.mxu0 0
        %3607 = vmatpush1.bf16.msra.mxu0 %v3588
        %3608 = vmatprep.subr.bf16.mxu0 0
        %3609 = vmatpush1.bf16.msra.mxu0 %v3587
        %3610 = vmatprep.subr.bf16.mxu0 0
        %3611 = vmatpush2.bf16.msra.mxu0 0
        %3612 = vmatprep.subr.bf16.mxu0 0
        %3613 = vmatpush2.bf16.msra.mxu0 0
        %3614 = vmatprep.subr.bf16.mxu0 0
        %3615 = vmatpush2.bf16.msra.mxu0 0
        %3616 = vmatprep.subr.bf16.mxu0 0
        %3617 = vmatpush2.bf16.msra.mxu0 0
        %3618 = vmatprep.subr.bf16.mxu0 0
        %3619 = vmatpush2.bf16.msra.mxu0 0
        %3620 = vmatprep.subr.bf16.mxu0 0
        %3621 = vmatpush2.bf16.msra.mxu0 0
        %3622 = vmatprep.subr.bf16.mxu0 0
        %3623 = vmatpush2.bf16.msra.mxu0 0
        %3624 = vmatprep.subr.bf16.mxu0 0
        %3625 = vmatpush2.bf16.msra.mxu0 0
        %3626 = vmatprep.mubr.bf16.mxu0 0
        %3627 = vmatmul.mubr.bf16.gmra.mxu0 %v3592
        %v3628 = vpop.f32.mrf.mxu0
        %v3629 = vadd.f32 %v3574, %v3628
        %v3630 = vpop.f32.mrf.mxu0
        %v3631 = vpop.f32.mrf.mxu0
        %v3632 = vpop.f32.mrf.mxu0
        %3633 = vdwg.mxu0
        %s3634 = scalar_lea.vmem %s7, 4
        %v3635 = vld [vmem:[%s3634] sm:$0x3]
        %v3637 = vsel %vm2560, %v3635, 0
        %3639 = vmatprep.subr.bf16.mxu0 0
        %3640 = vmatpush1.bf16.msra.mxu0 0
        %3641 = vmatprep.subr.bf16.mxu0 0
        %3642 = vmatpush1.bf16.msra.mxu0 0
        %3643 = vmatprep.subr.bf16.mxu0 0
        %3644 = vmatpush1.bf16.msra.mxu0 0
        %3645 = vmatprep.subr.bf16.mxu0 0
        %3646 = vmatpush1.bf16.msra.mxu0 0
        %3647 = vmatprep.subr.bf16.mxu0 0
        %3648 = vmatpush1.bf16.msra.mxu0 0
        %3649 = vmatprep.subr.bf16.mxu0 0
        %3650 = vmatpush1.bf16.msra.mxu0 0
        %3651 = vmatprep.subr.bf16.mxu0 0
        %3652 = vmatpush1.bf16.msra.mxu0 0
        %3653 = vmatprep.subr.bf16.mxu0 0
        %3654 = vmatpush1.bf16.msra.mxu0 %v3422
        %3655 = vmatprep.subr.bf16.mxu0 0
        %3656 = vmatpush2.bf16.msra.mxu0 0
        %3657 = vmatprep.subr.bf16.mxu0 0
        %3658 = vmatpush2.bf16.msra.mxu0 0
        %3659 = vmatprep.subr.bf16.mxu0 0
        %3660 = vmatpush2.bf16.msra.mxu0 0
        %3661 = vmatprep.subr.bf16.mxu0 0
        %3662 = vmatpush2.bf16.msra.mxu0 0
        %3663 = vmatprep.subr.bf16.mxu0 0
        %3664 = vmatpush2.bf16.msra.mxu0 0
        %3665 = vmatprep.subr.bf16.mxu0 0
        %3666 = vmatpush2.bf16.msra.mxu0 0
        %3667 = vmatprep.subr.bf16.mxu0 0
        %3668 = vmatpush2.bf16.msra.mxu0 0
        %3669 = vmatprep.subr.bf16.mxu0 0
        %3670 = vmatpush2.bf16.msra.mxu0 0
        %3671 = vmatprep.mubr.bf16.mxu0 0
        %3672 = vmatmul.mubr.bf16.gmra.mxu0 %v3637
        %v3673 = vpop.f32.mrf.mxu0
        %v3674 = vadd.f32 0.0, %v3673
        %v3675 = vpop.f32.mrf.mxu0
        %v3676 = vpop.f32.mrf.mxu0
        %v3677 = vpop.f32.mrf.mxu0
        %3678 = vdwg.mxu0
        %v3679 = vpack.c.bf16 %v3674, %v3674
        %s3680 = scalar_lea.vmem %s8, 32
        %v3681 = vld [vmem:[%s3680] sm:$0xf]
        %v3682 = vld [vmem:[%s3680 + $0x4] sm:$0xf]
        %v3683 = vld [vmem:[%s3680 + $0x8] sm:$0xf]
        %v3684 = vld [vmem:[%s3680 + $0xc] sm:$0xf]
        %v3689 = vunpack.c.l.b16 %v3681
        %v3690 = vunpack.c.l.b16 %v3682
        %v3691 = vunpack.c.l.b16 %v3683
        %v3692 = vunpack.c.l.b16 %v3684
        %v3693 = vpack.c.b16 %v3690, %v3689
        %v3694 = vpack.c.b16 %v3692, %v3691
        %v3698 = vsel %vm3535, %v3679, 0
        %3700 = vmatprep.subr.bf16.mxu0 0
        %3701 = vmatpush1.bf16.msra.mxu0 0
        %3702 = vmatprep.subr.bf16.mxu0 0
        %3703 = vmatpush1.bf16.msra.mxu0 0
        %3704 = vmatprep.subr.bf16.mxu0 0
        %3705 = vmatpush1.bf16.msra.mxu0 0
        %3706 = vmatprep.subr.bf16.mxu0 0
        %3707 = vmatpush1.bf16.msra.mxu0 0
        %3708 = vmatprep.subr.bf16.mxu0 0
        %3709 = vmatpush1.bf16.msra.mxu0 0
        %3710 = vmatprep.subr.bf16.mxu0 0
        %3711 = vmatpush1.bf16.msra.mxu0 0
        %3712 = vmatprep.subr.bf16.mxu0 0
        %3713 = vmatpush1.bf16.msra.mxu0 %v3694
        %3714 = vmatprep.subr.bf16.mxu0 0
        %3715 = vmatpush1.bf16.msra.mxu0 %v3693
        %3716 = vmatprep.subr.bf16.mxu0 0
        %3717 = vmatpush2.bf16.msra.mxu0 0
        %3718 = vmatprep.subr.bf16.mxu0 0
        %3719 = vmatpush2.bf16.msra.mxu0 0
        %3720 = vmatprep.subr.bf16.mxu0 0
        %3721 = vmatpush2.bf16.msra.mxu0 0
        %3722 = vmatprep.subr.bf16.mxu0 0
        %3723 = vmatpush2.bf16.msra.mxu0 0
        %3724 = vmatprep.subr.bf16.mxu0 0
        %3725 = vmatpush2.bf16.msra.mxu0 0
        %3726 = vmatprep.subr.bf16.mxu0 0
        %3727 = vmatpush2.bf16.msra.mxu0 0
        %3728 = vmatprep.subr.bf16.mxu0 0
        %3729 = vmatpush2.bf16.msra.mxu0 0
        %3730 = vmatprep.subr.bf16.mxu0 0
        %3731 = vmatpush2.bf16.msra.mxu0 0
        %3732 = vmatprep.mubr.bf16.mxu0 0
        %3733 = vmatmul.mubr.bf16.gmra.mxu0 %v3698
        %v3734 = vpop.f32.mrf.mxu0
        %v3735 = vadd.f32 0.0, %v3734
        %v3736 = vpop.f32.mrf.mxu0
        %v3737 = vpop.f32.mrf.mxu0
        %v3738 = vpop.f32.mrf.mxu0
        %3739 = vdwg.mxu0
        %v3740 = vadd.f32 %v3629, %v3735
        %s3741 = scalar_lea.vmem %s7, 6
        %v3742 = vld [vmem:[%s3741] sm:$0x3]
        %v3744 = vsel %vm2560, %v3742, 0
        %3746 = vmatprep.subr.bf16.mxu0 0
        %3747 = vmatpush1.bf16.msra.mxu0 0
        %3748 = vmatprep.subr.bf16.mxu0 0
        %3749 = vmatpush1.bf16.msra.mxu0 0
        %3750 = vmatprep.subr.bf16.mxu0 0
        %3751 = vmatpush1.bf16.msra.mxu0 0
        %3752 = vmatprep.subr.bf16.mxu0 0
        %3753 = vmatpush1.bf16.msra.mxu0 0
        %3754 = vmatprep.subr.bf16.mxu0 0
        %3755 = vmatpush1.bf16.msra.mxu0 0
        %3756 = vmatprep.subr.bf16.mxu0 0
        %3757 = vmatpush1.bf16.msra.mxu0 0
        %3758 = vmatprep.subr.bf16.mxu0 0
        %3759 = vmatpush1.bf16.msra.mxu0 0
        %3760 = vmatprep.subr.bf16.mxu0 0
        %3761 = vmatpush1.bf16.msra.mxu0 %v3422
        %3762 = vmatprep.subr.bf16.mxu0 0
        %3763 = vmatpush2.bf16.msra.mxu0 0
        %3764 = vmatprep.subr.bf16.mxu0 0
        %3765 = vmatpush2.bf16.msra.mxu0 0
        %3766 = vmatprep.subr.bf16.mxu0 0
        %3767 = vmatpush2.bf16.msra.mxu0 0
        %3768 = vmatprep.subr.bf16.mxu0 0
        %3769 = vmatpush2.bf16.msra.mxu0 0
        %3770 = vmatprep.subr.bf16.mxu0 0
        %3771 = vmatpush2.bf16.msra.mxu0 0
        %3772 = vmatprep.subr.bf16.mxu0 0
        %3773 = vmatpush2.bf16.msra.mxu0 0
        %3774 = vmatprep.subr.bf16.mxu0 0
        %3775 = vmatpush2.bf16.msra.mxu0 0
        %3776 = vmatprep.subr.bf16.mxu0 0
        %3777 = vmatpush2.bf16.msra.mxu0 0
        %3778 = vmatprep.mubr.bf16.mxu0 0
        %3779 = vmatmul.mubr.bf16.gmra.mxu0 %v3744
        %v3780 = vpop.f32.mrf.mxu0
        %v3781 = vadd.f32 0.0, %v3780
        %v3782 = vpop.f32.mrf.mxu0
        %v3783 = vpop.f32.mrf.mxu0
        %v3784 = vpop.f32.mrf.mxu0
        %3785 = vdwg.mxu0
        %v3786 = vpack.c.bf16 %v3781, %v3781
        %s3787 = scalar_lea.vmem %s8, 48
        %v3788 = vld [vmem:[%s3787] sm:$0xf]
        %v3789 = vld [vmem:[%s3787 + $0x4] sm:$0xf]
        %v3790 = vld [vmem:[%s3787 + $0x8] sm:$0xf]
        %v3791 = vld [vmem:[%s3787 + $0xc] sm:$0xf]
        %v3796 = vunpack.c.l.b16 %v3788
        %v3797 = vunpack.c.l.b16 %v3789
        %v3798 = vunpack.c.l.b16 %v3790
        %v3799 = vunpack.c.l.b16 %v3791
        %v3800 = vpack.c.b16 %v3797, %v3796
        %v3801 = vpack.c.b16 %v3799, %v3798
        %v3805 = vsel %vm3535, %v3786, 0
        %3807 = vmatprep.subr.bf16.mxu0 0
        %3808 = vmatpush1.bf16.msra.mxu0 0
        %3809 = vmatprep.subr.bf16.mxu0 0
        %3810 = vmatpush1.bf16.msra.mxu0 0
        %3811 = vmatprep.subr.bf16.mxu0 0
        %3812 = vmatpush1.bf16.msra.mxu0 0
        %3813 = vmatprep.subr.bf16.mxu0 0
        %3814 = vmatpush1.bf16.msra.mxu0 0
        %3815 = vmatprep.subr.bf16.mxu0 0
        %3816 = vmatpush1.bf16.msra.mxu0 0
        %3817 = vmatprep.subr.bf16.mxu0 0
        %3818 = vmatpush1.bf16.msra.mxu0 0
        %3819 = vmatprep.subr.bf16.mxu0 0
        %3820 = vmatpush1.bf16.msra.mxu0 %v3801
        %3821 = vmatprep.subr.bf16.mxu0 0
        %3822 = vmatpush1.bf16.msra.mxu0 %v3800
        %3823 = vmatprep.subr.bf16.mxu0 0
        %3824 = vmatpush2.bf16.msra.mxu0 0
        %3825 = vmatprep.subr.bf16.mxu0 0
        %3826 = vmatpush2.bf16.msra.mxu0 0
        %3827 = vmatprep.subr.bf16.mxu0 0
        %3828 = vmatpush2.bf16.msra.mxu0 0
        %3829 = vmatprep.subr.bf16.mxu0 0
        %3830 = vmatpush2.bf16.msra.mxu0 0
        %3831 = vmatprep.subr.bf16.mxu0 0
        %3832 = vmatpush2.bf16.msra.mxu0 0
        %3833 = vmatprep.subr.bf16.mxu0 0
        %3834 = vmatpush2.bf16.msra.mxu0 0
        %3835 = vmatprep.subr.bf16.mxu0 0
        %3836 = vmatpush2.bf16.msra.mxu0 0
        %3837 = vmatprep.subr.bf16.mxu0 0
        %3838 = vmatpush2.bf16.msra.mxu0 0
        %3839 = vmatprep.mubr.bf16.mxu0 0
        %3840 = vmatmul.mubr.bf16.gmra.mxu0 %v3805
        %v3841 = vpop.f32.mrf.mxu0
        %v3842 = vadd.f32 0.0, %v3841
        %v3843 = vpop.f32.mrf.mxu0
        %v3844 = vpop.f32.mrf.mxu0
        %v3845 = vpop.f32.mrf.mxu0
        %3846 = vdwg.mxu0
        %v3847 = vadd.f32 %v3740, %v3842
        %s3848 = scalar_lea.vmem %s7, 8
        %v3849 = vld [vmem:[%s3848] sm:$0x3]
        %v3851 = vsel %vm2560, %v3849, 0
        %3853 = vmatprep.subr.bf16.mxu0 0
        %3854 = vmatpush1.bf16.msra.mxu0 0
        %3855 = vmatprep.subr.bf16.mxu0 0
        %3856 = vmatpush1.bf16.msra.mxu0 0
        %3857 = vmatprep.subr.bf16.mxu0 0
        %3858 = vmatpush1.bf16.msra.mxu0 0
        %3859 = vmatprep.subr.bf16.mxu0 0
        %3860 = vmatpush1.bf16.msra.mxu0 0
        %3861 = vmatprep.subr.bf16.mxu0 0
        %3862 = vmatpush1.bf16.msra.mxu0 0
        %3863 = vmatprep.subr.bf16.mxu0 0
        %3864 = vmatpush1.bf16.msra.mxu0 0
        %3865 = vmatprep.subr.bf16.mxu0 0
        %3866 = vmatpush1.bf16.msra.mxu0 0
        %3867 = vmatprep.subr.bf16.mxu0 0
        %3868 = vmatpush1.bf16.msra.mxu0 %v3422
        %3869 = vmatprep.subr.bf16.mxu0 0
        %3870 = vmatpush2.bf16.msra.mxu0 0
        %3871 = vmatprep.subr.bf16.mxu0 0
        %3872 = vmatpush2.bf16.msra.mxu0 0
        %3873 = vmatprep.subr.bf16.mxu0 0
        %3874 = vmatpush2.bf16.msra.mxu0 0
        %3875 = vmatprep.subr.bf16.mxu0 0
        %3876 = vmatpush2.bf16.msra.mxu0 0
        %3877 = vmatprep.subr.bf16.mxu0 0
        %3878 = vmatpush2.bf16.msra.mxu0 0
        %3879 = vmatprep.subr.bf16.mxu0 0
        %3880 = vmatpush2.bf16.msra.mxu0 0
        %3881 = vmatprep.subr.bf16.mxu0 0
        %3882 = vmatpush2.bf16.msra.mxu0 0
        %3883 = vmatprep.subr.bf16.mxu0 0
        %3884 = vmatpush2.bf16.msra.mxu0 0
        %3885 = vmatprep.mubr.bf16.mxu0 0
        %3886 = vmatmul.mubr.bf16.gmra.mxu0 %v3851
        %v3887 = vpop.f32.mrf.mxu0
        %v3888 = vadd.f32 0.0, %v3887
        %v3889 = vpop.f32.mrf.mxu0
        %v3890 = vpop.f32.mrf.mxu0
        %v3891 = vpop.f32.mrf.mxu0
        %3892 = vdwg.mxu0
        %v3893 = vpack.c.bf16 %v3888, %v3888
        %s3894 = scalar_lea.vmem %s8, 64
        %v3895 = vld [vmem:[%s3894] sm:$0xf]
        %v3896 = vld [vmem:[%s3894 + $0x4] sm:$0xf]
        %v3897 = vld [vmem:[%s3894 + $0x8] sm:$0xf]
        %v3898 = vld [vmem:[%s3894 + $0xc] sm:$0xf]
        %v3903 = vunpack.c.l.b16 %v3895
        %v3904 = vunpack.c.l.b16 %v3896
        %v3905 = vunpack.c.l.b16 %v3897
        %v3906 = vunpack.c.l.b16 %v3898
        %v3907 = vpack.c.b16 %v3904, %v3903
        %v3908 = vpack.c.b16 %v3906, %v3905
        %v3912 = vsel %vm3535, %v3893, 0
        %3914 = vmatprep.subr.bf16.mxu0 0
        %3915 = vmatpush1.bf16.msra.mxu0 0
        %3916 = vmatprep.subr.bf16.mxu0 0
        %3917 = vmatpush1.bf16.msra.mxu0 0
        %3918 = vmatprep.subr.bf16.mxu0 0
        %3919 = vmatpush1.bf16.msra.mxu0 0
        %3920 = vmatprep.subr.bf16.mxu0 0
        %3921 = vmatpush1.bf16.msra.mxu0 0
        %3922 = vmatprep.subr.bf16.mxu0 0
        %3923 = vmatpush1.bf16.msra.mxu0 0
        %3924 = vmatprep.subr.bf16.mxu0 0
        %3925 = vmatpush1.bf16.msra.mxu0 0
        %3926 = vmatprep.subr.bf16.mxu0 0
        %3927 = vmatpush1.bf16.msra.mxu0 %v3908
        %3928 = vmatprep.subr.bf16.mxu0 0
        %3929 = vmatpush1.bf16.msra.mxu0 %v3907
        %3930 = vmatprep.subr.bf16.mxu0 0
        %3931 = vmatpush2.bf16.msra.mxu0 0
        %3932 = vmatprep.subr.bf16.mxu0 0
        %3933 = vmatpush2.bf16.msra.mxu0 0
        %3934 = vmatprep.subr.bf16.mxu0 0
        %3935 = vmatpush2.bf16.msra.mxu0 0
        %3936 = vmatprep.subr.bf16.mxu0 0
        %3937 = vmatpush2.bf16.msra.mxu0 0
        %3938 = vmatprep.subr.bf16.mxu0 0
        %3939 = vmatpush2.bf16.msra.mxu0 0
        %3940 = vmatprep.subr.bf16.mxu0 0
        %3941 = vmatpush2.bf16.msra.mxu0 0
        %3942 = vmatprep.subr.bf16.mxu0 0
        %3943 = vmatpush2.bf16.msra.mxu0 0
        %3944 = vmatprep.subr.bf16.mxu0 0
        %3945 = vmatpush2.bf16.msra.mxu0 0
        %3946 = vmatprep.mubr.bf16.mxu0 0
        %3947 = vmatmul.mubr.bf16.gmra.mxu0 %v3912
        %v3948 = vpop.f32.mrf.mxu0
        %v3949 = vadd.f32 0.0, %v3948
        %v3950 = vpop.f32.mrf.mxu0
        %v3951 = vpop.f32.mrf.mxu0
        %v3952 = vpop.f32.mrf.mxu0
        %3953 = vdwg.mxu0
        %v3954 = vadd.f32 %v3847, %v3949
        %s3955 = scalar_lea.vmem %s7, 10
        %v3956 = vld [vmem:[%s3955] sm:$0x3]
        %v3958 = vsel %vm2560, %v3956, 0
        %3960 = vmatprep.subr.bf16.mxu0 0
        %3961 = vmatpush1.bf16.msra.mxu0 0
        %3962 = vmatprep.subr.bf16.mxu0 0
        %3963 = vmatpush1.bf16.msra.mxu0 0
        %3964 = vmatprep.subr.bf16.mxu0 0
        %3965 = vmatpush1.bf16.msra.mxu0 0
        %3966 = vmatprep.subr.bf16.mxu0 0
        %3967 = vmatpush1.bf16.msra.mxu0 0
        %3968 = vmatprep.subr.bf16.mxu0 0
        %3969 = vmatpush1.bf16.msra.mxu0 0
        %3970 = vmatprep.subr.bf16.mxu0 0
        %3971 = vmatpush1.bf16.msra.mxu0 0
        %3972 = vmatprep.subr.bf16.mxu0 0
        %3973 = vmatpush1.bf16.msra.mxu0 0
        %3974 = vmatprep.subr.bf16.mxu0 0
        %3975 = vmatpush1.bf16.msra.mxu0 %v3422
        %3976 = vmatprep.subr.bf16.mxu0 0
        %3977 = vmatpush2.bf16.msra.mxu0 0
        %3978 = vmatprep.subr.bf16.mxu0 0
        %3979 = vmatpush2.bf16.msra.mxu0 0
        %3980 = vmatprep.subr.bf16.mxu0 0
        %3981 = vmatpush2.bf16.msra.mxu0 0
        %3982 = vmatprep.subr.bf16.mxu0 0
        %3983 = vmatpush2.bf16.msra.mxu0 0
        %3984 = vmatprep.subr.bf16.mxu0 0
        %3985 = vmatpush2.bf16.msra.mxu0 0
        %3986 = vmatprep.subr.bf16.mxu0 0
        %3987 = vmatpush2.bf16.msra.mxu0 0
        %3988 = vmatprep.subr.bf16.mxu0 0
        %3989 = vmatpush2.bf16.msra.mxu0 0
        %3990 = vmatprep.subr.bf16.mxu0 0
        %3991 = vmatpush2.bf16.msra.mxu0 0
        %3992 = vmatprep.mubr.bf16.mxu0 0
        %3993 = vmatmul.mubr.bf16.gmra.mxu0 %v3958
        %v3994 = vpop.f32.mrf.mxu0
        %v3995 = vadd.f32 0.0, %v3994
        %v3996 = vpop.f32.mrf.mxu0
        %v3997 = vpop.f32.mrf.mxu0
        %v3998 = vpop.f32.mrf.mxu0
        %3999 = vdwg.mxu0
        %v4000 = vpack.c.bf16 %v3995, %v3995
        %s4001 = scalar_lea.vmem %s8, 80
        %v4002 = vld [vmem:[%s4001] sm:$0xf]
        %v4003 = vld [vmem:[%s4001 + $0x4] sm:$0xf]
        %v4004 = vld [vmem:[%s4001 + $0x8] sm:$0xf]
        %v4005 = vld [vmem:[%s4001 + $0xc] sm:$0xf]
        %v4010 = vunpack.c.l.b16 %v4002
        %v4011 = vunpack.c.l.b16 %v4003
        %v4012 = vunpack.c.l.b16 %v4004
        %v4013 = vunpack.c.l.b16 %v4005
        %v4014 = vpack.c.b16 %v4011, %v4010
        %v4015 = vpack.c.b16 %v4013, %v4012
        %v4019 = vsel %vm3535, %v4000, 0
        %4021 = vmatprep.subr.bf16.mxu0 0
        %4022 = vmatpush1.bf16.msra.mxu0 0
        %4023 = vmatprep.subr.bf16.mxu0 0
        %4024 = vmatpush1.bf16.msra.mxu0 0
        %4025 = vmatprep.subr.bf16.mxu0 0
        %4026 = vmatpush1.bf16.msra.mxu0 0
        %4027 = vmatprep.subr.bf16.mxu0 0
        %4028 = vmatpush1.bf16.msra.mxu0 0
        %4029 = vmatprep.subr.bf16.mxu0 0
        %4030 = vmatpush1.bf16.msra.mxu0 0
        %4031 = vmatprep.subr.bf16.mxu0 0
        %4032 = vmatpush1.bf16.msra.mxu0 0
        %4033 = vmatprep.subr.bf16.mxu0 0
        %4034 = vmatpush1.bf16.msra.mxu0 %v4015
        %4035 = vmatprep.subr.bf16.mxu0 0
        %4036 = vmatpush1.bf16.msra.mxu0 %v4014
        %4037 = vmatprep.subr.bf16.mxu0 0
        %4038 = vmatpush2.bf16.msra.mxu0 0
        %4039 = vmatprep.subr.bf16.mxu0 0
        %4040 = vmatpush2.bf16.msra.mxu0 0
        %4041 = vmatprep.subr.bf16.mxu0 0
        %4042 = vmatpush2.bf16.msra.mxu0 0
        %4043 = vmatprep.subr.bf16.mxu0 0
        %4044 = vmatpush2.bf16.msra.mxu0 0
        %4045 = vmatprep.subr.bf16.mxu0 0
        %4046 = vmatpush2.bf16.msra.mxu0 0
        %4047 = vmatprep.subr.bf16.mxu0 0
        %4048 = vmatpush2.bf16.msra.mxu0 0
        %4049 = vmatprep.subr.bf16.mxu0 0
        %4050 = vmatpush2.bf16.msra.mxu0 0
        %4051 = vmatprep.subr.bf16.mxu0 0
        %4052 = vmatpush2.bf16.msra.mxu0 0
        %4053 = vmatprep.mubr.bf16.mxu0 0
        %4054 = vmatmul.mubr.bf16.gmra.mxu0 %v4019
        %v4055 = vpop.f32.mrf.mxu0
        %v4056 = vadd.f32 0.0, %v4055
        %v4057 = vpop.f32.mrf.mxu0
        %v4058 = vpop.f32.mrf.mxu0
        %v4059 = vpop.f32.mrf.mxu0
        %4060 = vdwg.mxu0
        %v4061 = vadd.f32 %v3954, %v4056
        %s4062 = scalar_lea.vmem %s7, 12
        %v4063 = vld [vmem:[%s4062] sm:$0x3]
        %v4065 = vsel %vm2560, %v4063, 0
        %4067 = vmatprep.subr.bf16.mxu0 0
        %4068 = vmatpush1.bf16.msra.mxu0 0
        %4069 = vmatprep.subr.bf16.mxu0 0
        %4070 = vmatpush1.bf16.msra.mxu0 0
        %4071 = vmatprep.subr.bf16.mxu0 0
        %4072 = vmatpush1.bf16.msra.mxu0 0
        %4073 = vmatprep.subr.bf16.mxu0 0
        %4074 = vmatpush1.bf16.msra.mxu0 0
        %4075 = vmatprep.subr.bf16.mxu0 0
        %4076 = vmatpush1.bf16.msra.mxu0 0
        %4077 = vmatprep.subr.bf16.mxu0 0
        %4078 = vmatpush1.bf16.msra.mxu0 0
        %4079 = vmatprep.subr.bf16.mxu0 0
        %4080 = vmatpush1.bf16.msra.mxu0 0
        %4081 = vmatprep.subr.bf16.mxu0 0
        %4082 = vmatpush1.bf16.msra.mxu0 %v3422
        %4083 = vmatprep.subr.bf16.mxu0 0
        %4084 = vmatpush2.bf16.msra.mxu0 0
        %4085 = vmatprep.subr.bf16.mxu0 0
        %4086 = vmatpush2.bf16.msra.mxu0 0
        %4087 = vmatprep.subr.bf16.mxu0 0
        %4088 = vmatpush2.bf16.msra.mxu0 0
        %4089 = vmatprep.subr.bf16.mxu0 0
        %4090 = vmatpush2.bf16.msra.mxu0 0
        %4091 = vmatprep.subr.bf16.mxu0 0
        %4092 = vmatpush2.bf16.msra.mxu0 0
        %4093 = vmatprep.subr.bf16.mxu0 0
        %4094 = vmatpush2.bf16.msra.mxu0 0
        %4095 = vmatprep.subr.bf16.mxu0 0
        %4096 = vmatpush2.bf16.msra.mxu0 0
        %4097 = vmatprep.subr.bf16.mxu0 0
        %4098 = vmatpush2.bf16.msra.mxu0 0
        %4099 = vmatprep.mubr.bf16.mxu0 0
        %4100 = vmatmul.mubr.bf16.gmra.mxu0 %v4065
        %v4101 = vpop.f32.mrf.mxu0
        %v4102 = vadd.f32 0.0, %v4101
        %v4103 = vpop.f32.mrf.mxu0
        %v4104 = vpop.f32.mrf.mxu0
        %v4105 = vpop.f32.mrf.mxu0
        %4106 = vdwg.mxu0
        %v4107 = vpack.c.bf16 %v4102, %v4102
        %s4108 = scalar_lea.vmem %s8, 96
        %v4109 = vld [vmem:[%s4108] sm:$0xf]
        %v4110 = vld [vmem:[%s4108 + $0x4] sm:$0xf]
        %v4111 = vld [vmem:[%s4108 + $0x8] sm:$0xf]
        %v4112 = vld [vmem:[%s4108 + $0xc] sm:$0xf]
        %v4117 = vunpack.c.l.b16 %v4109
        %v4118 = vunpack.c.l.b16 %v4110
        %v4119 = vunpack.c.l.b16 %v4111
        %v4120 = vunpack.c.l.b16 %v4112
        %v4121 = vpack.c.b16 %v4118, %v4117
        %v4122 = vpack.c.b16 %v4120, %v4119
        %v4126 = vsel %vm3535, %v4107, 0
        %4128 = vmatprep.subr.bf16.mxu0 0
        %4129 = vmatpush1.bf16.msra.mxu0 0
        %4130 = vmatprep.subr.bf16.mxu0 0
        %4131 = vmatpush1.bf16.msra.mxu0 0
        %4132 = vmatprep.subr.bf16.mxu0 0
        %4133 = vmatpush1.bf16.msra.mxu0 0
        %4134 = vmatprep.subr.bf16.mxu0 0
        %4135 = vmatpush1.bf16.msra.mxu0 0
        %4136 = vmatprep.subr.bf16.mxu0 0
        %4137 = vmatpush1.bf16.msra.mxu0 0
        %4138 = vmatprep.subr.bf16.mxu0 0
        %4139 = vmatpush1.bf16.msra.mxu0 0
        %4140 = vmatprep.subr.bf16.mxu0 0
        %4141 = vmatpush1.bf16.msra.mxu0 %v4122
        %4142 = vmatprep.subr.bf16.mxu0 0
        %4143 = vmatpush1.bf16.msra.mxu0 %v4121
        %4144 = vmatprep.subr.bf16.mxu0 0
        %4145 = vmatpush2.bf16.msra.mxu0 0
        %4146 = vmatprep.subr.bf16.mxu0 0
        %4147 = vmatpush2.bf16.msra.mxu0 0
        %4148 = vmatprep.subr.bf16.mxu0 0
        %4149 = vmatpush2.bf16.msra.mxu0 0
        %4150 = vmatprep.subr.bf16.mxu0 0
        %4151 = vmatpush2.bf16.msra.mxu0 0
        %4152 = vmatprep.subr.bf16.mxu0 0
        %4153 = vmatpush2.bf16.msra.mxu0 0
        %4154 = vmatprep.subr.bf16.mxu0 0
        %4155 = vmatpush2.bf16.msra.mxu0 0
        %4156 = vmatprep.subr.bf16.mxu0 0
        %4157 = vmatpush2.bf16.msra.mxu0 0
        %4158 = vmatprep.subr.bf16.mxu0 0
        %4159 = vmatpush2.bf16.msra.mxu0 0
        %4160 = vmatprep.mubr.bf16.mxu0 0
        %4161 = vmatmul.mubr.bf16.gmra.mxu0 %v4126
        %v4162 = vpop.f32.mrf.mxu0
        %v4163 = vadd.f32 0.0, %v4162
        %v4164 = vpop.f32.mrf.mxu0
        %v4165 = vpop.f32.mrf.mxu0
        %v4166 = vpop.f32.mrf.mxu0
        %4167 = vdwg.mxu0
        %v4168 = vadd.f32 %v4061, %v4163
        %s4169 = scalar_lea.vmem %s7, 14
        %v4170 = vld [vmem:[%s4169] sm:$0x3]
        %v4172 = vsel %vm2560, %v4170, 0
        %4174 = vmatprep.subr.bf16.mxu0 0
        %4175 = vmatpush1.bf16.msra.mxu0 0
        %4176 = vmatprep.subr.bf16.mxu0 0
        %4177 = vmatpush1.bf16.msra.mxu0 0
        %4178 = vmatprep.subr.bf16.mxu0 0
        %4179 = vmatpush1.bf16.msra.mxu0 0
        %4180 = vmatprep.subr.bf16.mxu0 0
        %4181 = vmatpush1.bf16.msra.mxu0 0
        %4182 = vmatprep.subr.bf16.mxu0 0
        %4183 = vmatpush1.bf16.msra.mxu0 0
        %4184 = vmatprep.subr.bf16.mxu0 0
        %4185 = vmatpush1.bf16.msra.mxu0 0
        %4186 = vmatprep.subr.bf16.mxu0 0
        %4187 = vmatpush1.bf16.msra.mxu0 0
        %4188 = vmatprep.subr.bf16.mxu0 0
        %4189 = vmatpush1.bf16.msra.mxu0 %v3422
        %4190 = vmatprep.subr.bf16.mxu0 0
        %4191 = vmatpush2.bf16.msra.mxu0 0
        %4192 = vmatprep.subr.bf16.mxu0 0
        %4193 = vmatpush2.bf16.msra.mxu0 0
        %4194 = vmatprep.subr.bf16.mxu0 0
        %4195 = vmatpush2.bf16.msra.mxu0 0
        %4196 = vmatprep.subr.bf16.mxu0 0
        %4197 = vmatpush2.bf16.msra.mxu0 0
        %4198 = vmatprep.subr.bf16.mxu0 0
        %4199 = vmatpush2.bf16.msra.mxu0 0
        %4200 = vmatprep.subr.bf16.mxu0 0
        %4201 = vmatpush2.bf16.msra.mxu0 0
        %4202 = vmatprep.subr.bf16.mxu0 0
        %4203 = vmatpush2.bf16.msra.mxu0 0
        %4204 = vmatprep.subr.bf16.mxu0 0
        %4205 = vmatpush2.bf16.msra.mxu0 0
        %4206 = vmatprep.mubr.bf16.mxu0 0
        %4207 = vmatmul.mubr.bf16.gmra.mxu0 %v4172
        %v4208 = vpop.f32.mrf.mxu0
        %v4209 = vadd.f32 0.0, %v4208
        %v4210 = vpop.f32.mrf.mxu0
        %v4211 = vpop.f32.mrf.mxu0
        %v4212 = vpop.f32.mrf.mxu0
        %4213 = vdwg.mxu0
        %v4214 = vpack.c.bf16 %v4209, %v4209
        %s4215 = scalar_lea.vmem %s8, 112
        %v4216 = vld [vmem:[%s4215] sm:$0xf]
        %v4217 = vld [vmem:[%s4215 + $0x4] sm:$0xf]
        %v4218 = vld [vmem:[%s4215 + $0x8] sm:$0xf]
        %v4219 = vld [vmem:[%s4215 + $0xc] sm:$0xf]
        %v4224 = vunpack.c.l.b16 %v4216
        %v4225 = vunpack.c.l.b16 %v4217
        %v4226 = vunpack.c.l.b16 %v4218
        %v4227 = vunpack.c.l.b16 %v4219
        %v4228 = vpack.c.b16 %v4225, %v4224
        %v4229 = vpack.c.b16 %v4227, %v4226
        %v4233 = vsel %vm3535, %v4214, 0
        %4235 = vmatprep.subr.bf16.mxu0 0
        %4236 = vmatpush1.bf16.msra.mxu0 0
        %4237 = vmatprep.subr.bf16.mxu0 0
        %4238 = vmatpush1.bf16.msra.mxu0 0
        %4239 = vmatprep.subr.bf16.mxu0 0
        %4240 = vmatpush1.bf16.msra.mxu0 0
        %4241 = vmatprep.subr.bf16.mxu0 0
        %4242 = vmatpush1.bf16.msra.mxu0 0
        %4243 = vmatprep.subr.bf16.mxu0 0
        %4244 = vmatpush1.bf16.msra.mxu0 0
        %4245 = vmatprep.subr.bf16.mxu0 0
        %4246 = vmatpush1.bf16.msra.mxu0 0
        %4247 = vmatprep.subr.bf16.mxu0 0
        %4248 = vmatpush1.bf16.msra.mxu0 %v4229
        %4249 = vmatprep.subr.bf16.mxu0 0
        %4250 = vmatpush1.bf16.msra.mxu0 %v4228
        %4251 = vmatprep.subr.bf16.mxu0 0
        %4252 = vmatpush2.bf16.msra.mxu0 0
        %4253 = vmatprep.subr.bf16.mxu0 0
        %4254 = vmatpush2.bf16.msra.mxu0 0
        %4255 = vmatprep.subr.bf16.mxu0 0
        %4256 = vmatpush2.bf16.msra.mxu0 0
        %4257 = vmatprep.subr.bf16.mxu0 0
        %4258 = vmatpush2.bf16.msra.mxu0 0
        %4259 = vmatprep.subr.bf16.mxu0 0
        %4260 = vmatpush2.bf16.msra.mxu0 0
        %4261 = vmatprep.subr.bf16.mxu0 0
        %4262 = vmatpush2.bf16.msra.mxu0 0
        %4263 = vmatprep.subr.bf16.mxu0 0
        %4264 = vmatpush2.bf16.msra.mxu0 0
        %4265 = vmatprep.subr.bf16.mxu0 0
        %4266 = vmatpush2.bf16.msra.mxu0 0
        %4267 = vmatprep.mubr.bf16.mxu0 0
        %4268 = vmatmul.mubr.bf16.gmra.mxu0 %v4233
        %v4269 = vpop.f32.mrf.mxu0
        %v4270 = vadd.f32 0.0, %v4269
        %v4271 = vpop.f32.mrf.mxu0
        %v4272 = vpop.f32.mrf.mxu0
        %v4273 = vpop.f32.mrf.mxu0
        %4274 = vdwg.mxu0
        %v4275 = vadd.f32 %v4168, %v4270
        %s4276 = scalar_lea.vmem %s7, 16
        %v4277 = vld [vmem:[%s4276] sm:$0x3]
        %v4279 = vsel %vm2560, %v4277, 0
        %4281 = vmatprep.subr.bf16.mxu0 0
        %4282 = vmatpush1.bf16.msra.mxu0 0
        %4283 = vmatprep.subr.bf16.mxu0 0
        %4284 = vmatpush1.bf16.msra.mxu0 0
        %4285 = vmatprep.subr.bf16.mxu0 0
        %4286 = vmatpush1.bf16.msra.mxu0 0
        %4287 = vmatprep.subr.bf16.mxu0 0
        %4288 = vmatpush1.bf16.msra.mxu0 0
        %4289 = vmatprep.subr.bf16.mxu0 0
        %4290 = vmatpush1.bf16.msra.mxu0 0
        %4291 = vmatprep.subr.bf16.mxu0 0
        %4292 = vmatpush1.bf16.msra.mxu0 0
        %4293 = vmatprep.subr.bf16.mxu0 0
        %4294 = vmatpush1.bf16.msra.mxu0 0
        %4295 = vmatprep.subr.bf16.mxu0 0
        %4296 = vmatpush1.bf16.msra.mxu0 %v3422
        %4297 = vmatprep.subr.bf16.mxu0 0
        %4298 = vmatpush2.bf16.msra.mxu0 0
        %4299 = vmatprep.subr.bf16.mxu0 0
        %4300 = vmatpush2.bf16.msra.mxu0 0
        %4301 = vmatprep.subr.bf16.mxu0 0
        %4302 = vmatpush2.bf16.msra.mxu0 0
        %4303 = vmatprep.subr.bf16.mxu0 0
        %4304 = vmatpush2.bf16.msra.mxu0 0
        %4305 = vmatprep.subr.bf16.mxu0 0
        %4306 = vmatpush2.bf16.msra.mxu0 0
        %4307 = vmatprep.subr.bf16.mxu0 0
        %4308 = vmatpush2.bf16.msra.mxu0 0
        %4309 = vmatprep.subr.bf16.mxu0 0
        %4310 = vmatpush2.bf16.msra.mxu0 0
        %4311 = vmatprep.subr.bf16.mxu0 0
        %4312 = vmatpush2.bf16.msra.mxu0 0
        %4313 = vmatprep.mubr.bf16.mxu0 0
        %4314 = vmatmul.mubr.bf16.gmra.mxu0 %v4279
        %v4315 = vpop.f32.mrf.mxu0
        %v4316 = vadd.f32 0.0, %v4315
        %v4317 = vpop.f32.mrf.mxu0
        %v4318 = vpop.f32.mrf.mxu0
        %v4319 = vpop.f32.mrf.mxu0
        %4320 = vdwg.mxu0
        %v4321 = vpack.c.bf16 %v4316, %v4316
        %s4322 = scalar_lea.vmem %s8, 128
        %v4323 = vld [vmem:[%s4322] sm:$0xf]
        %v4324 = vld [vmem:[%s4322 + $0x4] sm:$0xf]
        %v4325 = vld [vmem:[%s4322 + $0x8] sm:$0xf]
        %v4326 = vld [vmem:[%s4322 + $0xc] sm:$0xf]
        %v4331 = vunpack.c.l.b16 %v4323
        %v4332 = vunpack.c.l.b16 %v4324
        %v4333 = vunpack.c.l.b16 %v4325
        %v4334 = vunpack.c.l.b16 %v4326
        %v4335 = vpack.c.b16 %v4332, %v4331
        %v4336 = vpack.c.b16 %v4334, %v4333
        %v4340 = vsel %vm3535, %v4321, 0
        %4342 = vmatprep.subr.bf16.mxu0 0
        %4343 = vmatpush1.bf16.msra.mxu0 0
        %4344 = vmatprep.subr.bf16.mxu0 0
        %4345 = vmatpush1.bf16.msra.mxu0 0
        %4346 = vmatprep.subr.bf16.mxu0 0
        %4347 = vmatpush1.bf16.msra.mxu0 0
        %4348 = vmatprep.subr.bf16.mxu0 0
        %4349 = vmatpush1.bf16.msra.mxu0 0
        %4350 = vmatprep.subr.bf16.mxu0 0
        %4351 = vmatpush1.bf16.msra.mxu0 0
        %4352 = vmatprep.subr.bf16.mxu0 0
        %4353 = vmatpush1.bf16.msra.mxu0 0
        %4354 = vmatprep.subr.bf16.mxu0 0
        %4355 = vmatpush1.bf16.msra.mxu0 %v4336
        %4356 = vmatprep.subr.bf16.mxu0 0
        %4357 = vmatpush1.bf16.msra.mxu0 %v4335
        %4358 = vmatprep.subr.bf16.mxu0 0
        %4359 = vmatpush2.bf16.msra.mxu0 0
        %4360 = vmatprep.subr.bf16.mxu0 0
        %4361 = vmatpush2.bf16.msra.mxu0 0
        %4362 = vmatprep.subr.bf16.mxu0 0
        %4363 = vmatpush2.bf16.msra.mxu0 0
        %4364 = vmatprep.subr.bf16.mxu0 0
        %4365 = vmatpush2.bf16.msra.mxu0 0
        %4366 = vmatprep.subr.bf16.mxu0 0
        %4367 = vmatpush2.bf16.msra.mxu0 0
        %4368 = vmatprep.subr.bf16.mxu0 0
        %4369 = vmatpush2.bf16.msra.mxu0 0
        %4370 = vmatprep.subr.bf16.mxu0 0
        %4371 = vmatpush2.bf16.msra.mxu0 0
        %4372 = vmatprep.subr.bf16.mxu0 0
        %4373 = vmatpush2.bf16.msra.mxu0 0
        %4374 = vmatprep.mubr.bf16.mxu0 0
        %4375 = vmatmul.mubr.bf16.gmra.mxu0 %v4340
        %v4376 = vpop.f32.mrf.mxu0
        %v4377 = vadd.f32 0.0, %v4376
        %v4378 = vpop.f32.mrf.mxu0
        %v4379 = vpop.f32.mrf.mxu0
        %v4380 = vpop.f32.mrf.mxu0
        %4381 = vdwg.mxu0
        %v4382 = vadd.f32 %v4275, %v4377
        %v4383 = vld [vmem:[%s9] sm:$0x1]
        %v4385 = vlaneseq
        %v4386 = vshrl.u32 %v4385, 7
        %v4387 = vsub.s32 0, %v4386
        %v4388 = vrot.slane %v4383, %v4387
        %v4390 = vadd.f32 %v4382, %v4388
        %vm4391 = vcmp.gt.f32.partialorder %v4390, 0.0
        %v4392 = vmul.f32 %v4390, 0.2
        %v4393 = vsel %vm4391, %v4390, %v4392
        %v4394 = vpack.c.bf16 %v4393, %v4393
        %v4395 = vld [vmem:[%s10] sm:$0xf]
        %v4396 = vld [vmem:[%s10 + $0x4] sm:$0xf]
        %v4397 = vld [vmem:[%s10 + $0x8] sm:$0xf]
        %v4398 = vld [vmem:[%s10 + $0xc] sm:$0xf]
        %v4399 = vld [vmem:[%s10 + $0x10] sm:$0xf]
        %v4400 = vld [vmem:[%s10 + $0x14] sm:$0xf]
        %v4401 = vld [vmem:[%s10 + $0x18] sm:$0xf]
        %v4402 = vld [vmem:[%s10 + $0x1c] sm:$0xf]
        %v4403 = vld [vmem:[#allocation2] sm:$0x1]
        %v4405 = vlaneseq
        %v4406 = vshrl.u32 %v4405, 7
        %v4407 = vsub.s32 0, %v4406
        %v4408 = vrot.slane %v4403, %v4407
        %v4418 = vunpack.c.l.b16 %v4395
        %v4419 = vunpack.c.l.b16 %v4396
        %v4420 = vunpack.c.l.b16 %v4397
        %v4421 = vunpack.c.l.b16 %v4398
        %v4422 = vunpack.c.l.b16 %v4399
        %v4423 = vunpack.c.l.b16 %v4400
        %v4424 = vunpack.c.l.b16 %v4401
        %v4425 = vunpack.c.l.b16 %v4402
        %v4426 = vpack.c.b16 %v4419, %v4418
        %v4427 = vpack.c.b16 %v4421, %v4420
        %v4428 = vpack.c.b16 %v4423, %v4422
        %v4429 = vpack.c.b16 %v4425, %v4424
        %v4435 = vsel %vm2450, %v4394, 0
        %4437 = vmatprep.subr.bf16.mxu0 0
        %4438 = vmatpush1.bf16.msra.mxu0 0
        %4439 = vmatprep.subr.bf16.mxu0 0
        %4440 = vmatpush1.bf16.msra.mxu0 0
        %4441 = vmatprep.subr.bf16.mxu0 0
        %4442 = vmatpush1.bf16.msra.mxu0 0
        %4443 = vmatprep.subr.bf16.mxu0 0
        %4444 = vmatpush1.bf16.msra.mxu0 0
        %4445 = vmatprep.subr.bf16.mxu0 0
        %4446 = vmatpush1.bf16.msra.mxu0 %v4429
        %4447 = vmatprep.subr.bf16.mxu0 0
        %4448 = vmatpush1.bf16.msra.mxu0 %v4428
        %4449 = vmatprep.subr.bf16.mxu0 0
        %4450 = vmatpush1.bf16.msra.mxu0 %v4427
        %4451 = vmatprep.subr.bf16.mxu0 0
        %4452 = vmatpush1.bf16.msra.mxu0 %v4426
        %4453 = vmatprep.subr.bf16.mxu0 0
        %4454 = vmatpush2.bf16.msra.mxu0 0
        %4455 = vmatprep.subr.bf16.mxu0 0
        %4456 = vmatpush2.bf16.msra.mxu0 0
        %4457 = vmatprep.subr.bf16.mxu0 0
        %4458 = vmatpush2.bf16.msra.mxu0 0
        %4459 = vmatprep.subr.bf16.mxu0 0
        %4460 = vmatpush2.bf16.msra.mxu0 0
        %4461 = vmatprep.subr.bf16.mxu0 0
        %4462 = vmatpush2.bf16.msra.mxu0 0
        %4463 = vmatprep.subr.bf16.mxu0 0
        %4464 = vmatpush2.bf16.msra.mxu0 0
        %4465 = vmatprep.subr.bf16.mxu0 0
        %4466 = vmatpush2.bf16.msra.mxu0 0
        %4467 = vmatprep.subr.bf16.mxu0 0
        %4468 = vmatpush2.bf16.msra.mxu0 0
        %4469 = vmatprep.mubr.bf16.mxu0 0
        %4470 = vmatmul.mubr.bf16.gmra.mxu0 %v4435
        %v4471 = vpop.f32.mrf.mxu0
        %v4472 = vadd.f32 %v4408, %v4471
        %v4473 = vpop.f32.mrf.mxu0
        %v4474 = vpop.f32.mrf.mxu0
        %v4475 = vpop.f32.mrf.mxu0
        %4476 = vdwg.mxu0
        %vm4477 = vcmask 3072
        %4478 = vst.msk [vmem:[%s430] sm:$0xf] %vm4477, %v4472
        %p4479 = scmp.lt.s32.totalorder %s26, 1
        %s4480 = scalar_select %p4479, %s26, 1
        %s4481 = smul.addr %s4480, 4
        %s4482 = scalar_lea.vmem %s12, %s4481
        // Predicated region
        $region73: #{_lambda_.1} parent=67 // pred_check
          %p4483 = pneg %p301
        $region74: #{_lambda_.1} parent=67 // pred_check_branch
          %4485 = sbr.rel (%p4483) target = $region76
        $region75: #{_lambda_.1} parent=67 // pred_region
          _
        $region76: #{_lambda_.1} parent=67 // pred_fallthru
          _
      $region68: #{_lambda_.1} parent=5 // pred_fallthru
        _
      %p4486 = scmp.le.s32.totalorder 2, %s21
      // Predicated region
      $region77: #{_lambda_.1} parent=5 // pred_check
        %p4487 = pneg %p4486
      $region78: #{_lambda_.1} parent=5 // pred_check_branch
        %4489 = sbr.rel (%p4487) target = $region80
      $region79: #{_lambda_.1} parent=5 // pred_region
        %s4490 = ssub.s32 %s21, 2
        // Predicated region
        $region81: #{_lambda_.1} parent=79 // pred_check
          %p4491 = pneg %p307
        $region82: #{_lambda_.1} parent=79 // pred_check_branch
          %4493 = sbr.rel (%p4491) target = $region84
        $region83: #{_lambda_.1} parent=79 // pred_region
          %p4494 = scmp.lt.s32.totalorder %s27, 1
          %s4495 = scalar_select %p4494, %s27, 1
          %s4496 = smul.addr %s4495, 4
          %s4497 = scalar_lea.vmem %s12, %s4496
        $region84: #{_lambda_.1} parent=79 // pred_fallthru
          _
      $region80: #{_lambda_.1} parent=5 // pred_fallthru
        _
    $region6: #{_lambda_.1} parent=1 // loop_footer
      %s25 = sadd.s32 1, %s21
    $region7: #{_lambda_.1} parent=1 // loop_footer_branch
      %20 = sbr.rel target = $region3
    $region8: #{_lambda_.1} parent=1 // loop_exit
      _
    %4498 = vsyncpa [#allocation4], 1
    %s4499 = scalar_lea.sflag [#allocation4], 1
    %4500 = vsyncpa %s4499, 1

</llo_original>
